<compile_context>
chip_gen: v7x
topology: tpu7x:2x2x1
jax: 0.10.0
libtpu: 0.0.40
codegen_flags: <defaults>
</compile_context>

<pallas_src>
import functools
import math

import jax
import jax.numpy as jnp
from jax.experimental import pallas as pl
from jax.experimental.pallas import tpu as pltpu


CFG = dict(
    vocab_size=64,
    hidden=32,
    num_layers=2,
    num_heads=4,
    intermediate=64,
    max_pos=24,          # >= seq_len + pad_idx + 1
    num_labels=3,
    pad_token_id=1,
    ln_eps=1e-5,
)


# ----------------------------------------------------------------------------
# Fused forward kernel (one sequence per grid step; weights VMEM-resident)
# ----------------------------------------------------------------------------

def _fused_roberta_kernel(
    emb_ref, mask_ref, emb_ln_g_ref, emb_ln_b_ref,
    wqkv_ref, bqkv_ref, wo_ref, bo_ref, aln_g_ref, aln_b_ref,
    w1_ref, b1_ref, w2_ref, b2_ref, fln_g_ref, fln_b_ref,
    cls_w_ref, cls_b_ref, out_w_ref, out_b_ref,
    logits_ref,
    ctx_ref,
    *, num_layers, num_heads, head_dim, seq, eps):
    hidden = num_heads * head_dim
    scale = 1.0 / math.sqrt(head_dim)

    def ln(v, gamma, beta):
        mu = jnp.mean(v, axis=-1, keepdims=True)
        var = jnp.mean(jnp.square(v - mu), axis=-1, keepdims=True)
        return (v - mu) * jax.lax.rsqrt(var + eps) * gamma + beta

    # Additive attention-mask bias for this sequence, hoisted out of all loops.
    bias = mask_ref[0]                                              # [1, S]

    # ---- embedding LayerNorm ----
    x = ln(emb_ref[0], emb_ln_g_ref[...], emb_ln_b_ref[...])        # [S, H]

    for li in range(num_layers):
        # ---- fused QKV projection: one lane-dense [H, 3H] matmul ----
        qkv = jnp.dot(x, wqkv_ref[li],
                      preferred_element_type=jnp.float32) + bqkv_ref[li]   # [S, 3H]

        # ---- self-attention: per-head scores on VMEM-resident data, context
        #      accumulated into one [S, H] scratch block (no k.T, no per-head
        #      output-projection folds). ----
        for h in range(num_heads):
            c0 = h * head_dim
            q = qkv[:, c0:c0 + head_dim]                            # [S, Dh]
            k = qkv[:, hidden + c0:hidden + c0 + head_dim]
            v = qkv[:, 2 * hidden + c0:2 * hidden + c0 + head_dim]
            # contract last dim of both operands (MXU handles the "transpose")
            s = jax.lax.dot_general(
                q, k, (((1,), (1,)), ((), ())),
                preferred_element_type=jnp.float32) * scale + bias  # [S, S]
            s = s - jnp.max(s, axis=-1, keepdims=True)
            p = jnp.exp(s)
            p = p * pl.reciprocal(jnp.sum(p, axis=-1, keepdims=True), approx=True)
            ctx_ref[:, c0:c0 + head_dim] = jnp.dot(
                p, v, preferred_element_type=jnp.float32)           # [S, Dh]

        # one output projection per sequence
        attn_out = jnp.dot(ctx_ref[...], wo_ref[li],
                           preferred_element_type=jnp.float32) + bo_ref[li]   # [S, H]
        x = ln(attn_out + x, aln_g_ref[li], aln_b_ref[li])

        # ---- feed-forward ----
        h1 = jnp.dot(x, w1_ref[li], preferred_element_type=jnp.float32) + b1_ref[li]
        # TODO(synk): HF RoBERTa uses exact (erf) GELU; tanh-approx GELU used in-kernel.
        h1 = jax.nn.gelu(h1, approximate=True)
        ffn = jnp.dot(h1, w2_ref[li], preferred_element_type=jnp.float32) + b2_ref[li]
        x = ln(ffn + x, fln_g_ref[li], fln_b_ref[li])

    # ---- classification head on the <s> (token 0) row only ----
    cls = x[0:1, :]                                                 # [1, H]
    pooled = jnp.tanh(jnp.dot(cls, cls_w_ref[...],
                              preferred_element_type=jnp.float32) + cls_b_ref[...])
    logits = jnp.dot(pooled, out_w_ref[...],
                     preferred_element_type=jnp.float32) + out_b_ref[...]     # [1, NL]
    logits_ref[0] = logits.astype(logits_ref.dtype)


def _const_spec(shape):
    """Whole-array block, same block for every grid step (weights stay resident)."""
    zeros = (0,) * len(shape)
    return pl.BlockSpec(shape, lambda b, _z=zeros: _z)


# ----------------------------------------------------------------------------
# Forward wrapper (embedding gathers in plain JAX, everything else fused)
# ----------------------------------------------------------------------------

def roberta_classification_forward(params, input_ids, attention_mask, cfg):
    B, S = input_ids.shape
    H, NH, L = cfg["hidden"], cfg["num_heads"], cfg["num_layers"]
    DH = H // NH
    NL = cfg["num_labels"]
    pad = cfg["pad_token_id"]

    if attention_mask is None:
        attention_mask = jnp.ones((B, S), jnp.int32)

    # RoBERTa position ids + embedding gathers (data-dependent gather -> JAX glue).
    not_pad = (input_ids != pad).astype(jnp.int32)
    position_ids = jnp.cumsum(not_pad, axis=1) * not_pad + pad
    emb = (params["word_emb"][input_ids]
           + params["pos_emb"][position_ids]
           + params["type_emb"].reshape(1, 1, H)).astype(jnp.float32)          # [B,S,H]

    # Compact additive attention-mask bias [B, 1, S]; broadcast happens in-kernel.
    mask_bias = ((1.0 - attention_mask.astype(jnp.float32)) * -1e9).reshape(B, 1, S)

    st = params["stacked"]
    inputs = [
        emb, mask_bias, params["emb_ln_g"], params["emb_ln_b"],
        st["wqkv"], st["bqkv"], st["wo"], st["bo"], st["aln_g"], st["aln_b"],
        st["w1"], st["b1"], st["w2"], st["b2"], st["fln_g"], st["fln_b"],
        params["cls_dense_w"], params["cls_dense_b"],
        params["cls_out_w"], params["cls_out_b"],
    ]

    in_specs = [
        pl.BlockSpec((1, S, H), lambda b: (b, 0, 0)),    # per-sequence embeddings
        pl.BlockSpec((1, 1, S), lambda b: (b, 0, 0)),    # per-sequence mask bias
    ] + [_const_spec(a.shape) for a in inputs[2:]]       # weights: resident

    kernel = functools.partial(
        _fused_roberta_kernel, num_layers=L, num_heads=NH, head_dim=DH,
        seq=S, eps=cfg["ln_eps"])

    logits = pl.pallas_call(
        kernel,
        out_shape=jax.ShapeDtypeStruct((B, 1, NL), jnp.float32),
        grid=(B,),
        in_specs=in_specs,
        out_specs=pl.BlockSpec((1, 1, NL), lambda b: (b, 0, 0)),
        scratch_shapes=[pltpu.VMEM((S, H), jnp.float32)],
        compiler_params=pltpu.CompilerParams(dimension_semantics=("parallel",)),
    )(*inputs)

    return logits.reshape(B, NL)


# ----------------------------------------------------------------------------
# Pure-JAX reference (for tolerance testing of the fused kernel)
# ----------------------------------------------------------------------------

def _reference_forward(params, input_ids, attention_mask, cfg):
    B, S = input_ids.shape
    H, NH, L = cfg["hidden"], cfg["num_heads"], cfg["num_layers"]
    DH = H // NH
    pad = cfg["pad_token_id"]
    eps = cfg["ln_eps"]
    st = params["stacked"]
    hp = jax.lax.Precision.HIGHEST

    if attention_mask is None:
        attention_mask = jnp.ones((B, S), jnp.int32)
    not_pad = (input_ids != pad).astype(jnp.int32)
    position_ids = jnp.cumsum(not_pad, axis=1) * not_pad + pad
    emb = (params["word_emb"][input_ids] + params["pos_emb"][position_ids]
           + params["type_emb"].reshape(1, 1, H)).reshape(B * S, H)

    def ln(v, gamma, beta):
        mu = jnp.mean(v, axis=-1, keepdims=True)
        var = jnp.mean(jnp.square(v - mu), axis=-1, keepdims=True)
        return (v - mu) * jax.lax.rsqrt(var + eps) * gamma + beta

    x = ln(emb, params["emb_ln_g"], params["emb_ln_b"])
    bias = ((1.0 - attention_mask.astype(jnp.float32)) * -1e9)[:, None, None, :]
    scale = 1.0 / math.sqrt(DH)

    for li in range(L):
        qkv = jnp.dot(x, st["wqkv"][li], precision=hp) + st["bqkv"][li]
        q, k, v = qkv[:, :H], qkv[:, H:2 * H], qkv[:, 2 * H:]

        def heads(t):
            return t.reshape(B, S, NH, DH).transpose(0, 2, 1, 3)

        qh, kh, vh = heads(q), heads(k), heads(v)
        s = jnp.einsum("bhqd,bhkd->bhqk", qh, kh, precision=hp) * scale + bias
        p = jax.nn.softmax(s, axis=-1)
        ctx = jnp.einsum("bhqk,bhkd->bhqd", p, vh, precision=hp)
        ctx = ctx.transpose(0, 2, 1, 3).reshape(B * S, H)
        x = ln(jnp.dot(ctx, st["wo"][li], precision=hp) + st["bo"][li] + x,
               st["aln_g"][li], st["aln_b"][li])
        h1 = jax.nn.gelu(jnp.dot(x, st["w1"][li], precision=hp) + st["b1"][li],
                         approximate=True)
        x = ln(jnp.dot(h1, st["w2"][li], precision=hp) + st["b2"][li] + x,
               st["fln_g"][li], st["fln_b"][li])

    cls = x.reshape(B, S, H)[:, 0, :]
    pooled = jnp.tanh(jnp.dot(cls, params["cls_dense_w"], precision=hp)
                      + params["cls_dense_b"])
    return jnp.dot(pooled, params["cls_out_w"], precision=hp) + params["cls_out_b"]


# ----------------------------------------------------------------------------
# Deterministic synthetic weights
# ----------------------------------------------------------------------------

def init_params(key, cfg):
    H, I, V = cfg["hidden"], cfg["intermediate"], cfg["vocab_size"]
    L, NL = cfg["num_layers"], cfg["num_labels"]
    key_it = iter(jax.random.split(key, 32))

    def w(*shape, scale=0.02):
        return scale * jax.random.normal(next(key_it), shape, jnp.float32)

    def gain(*shape):
        return 1.0 + 0.01 * jax.random.normal(next(key_it), shape, jnp.float32)

    return {
        "word_emb": w(V, H),
        "pos_emb": w(cfg["max_pos"], H),
        "type_emb": w(1, H),
        "emb_ln_g": gain(1, H),
        "emb_ln_b": w(1, H, scale=0.01),
        "stacked": {
            "wqkv": w(L, H, 3 * H),
            "bqkv": w(L, 1, 3 * H, scale=0.01),
            "wo": w(L, H, H),
            "bo": w(L, 1, H, scale=0.01),
            "aln_g": gain(L, 1, H),
            "aln_b": w(L, 1, H, scale=0.01),
            "w1": w(L, H, I),
            "b1": w(L, 1, I, scale=0.01),
            "w2": w(L, I, H),
            "b2": w(L, 1, H, scale=0.01),
            "fln_g": gain(L, 1, H),
            "fln_b": w(L, 1, H, scale=0.01),
        },
        "cls_dense_w": w(H, H),
        "cls_dense_b": w(1, H, scale=0.01),
        "cls_out_w": w(H, NL),
        "cls_out_b": w(1, NL, scale=0.01),
    }


# ----------------------------------------------------------------------------
# Driver
# ----------------------------------------------------------------------------

if __name__ == "__main__":
    key = jax.random.PRNGKey(0)
    k_param, k_ids = jax.random.split(key)

    B, S = 2, 8
    params = init_params(k_param, CFG)
    input_ids = jax.random.randint(k_ids, (B, S), 2, CFG["vocab_size"], jnp.int32)
    # Pad the last token of sequence 1 to exercise the mask / position-id path.
    input_ids = input_ids.at[1, -1].set(CFG["pad_token_id"])
    attention_mask = (input_ids != CFG["pad_token_id"]).astype(jnp.int32)

    fwd = jax.jit(functools.partial(roberta_classification_forward, cfg=CFG))
    logits = fwd(params, input_ids, attention_mask)
    jax.block_until_ready(logits)

    assert logits.shape == (B, CFG["num_labels"])
    assert bool(jnp.all(jnp.isfinite(logits)))

    # Tolerance check against the pure-JAX reference.
    ref = _reference_forward(params, input_ids, attention_mask, CFG)
    assert bool(jnp.allclose(logits, ref, atol=5e-3, rtol=5e-2)), (
        "max abs err " + str(float(jnp.max(jnp.abs(logits - ref)))))

    print("KERNEL_OK")
</pallas_src>

<mosaic_0001>
module attributes {stable_mosaic.version = 11 : i64} {
  func.func @_fused_roberta_kernel(%arg0: i32, %arg1: memref<1x8x32xf32, #tpu.memory_space<vmem>>, %arg2: memref<1x1x8xf32, #tpu.memory_space<vmem>>, %arg3: memref<1x32xf32, #tpu.memory_space<vmem>>, %arg4: memref<1x32xf32, #tpu.memory_space<vmem>>, %arg5: memref<2x32x96xf32, #tpu.memory_space<vmem>>, %arg6: memref<2x1x96xf32, #tpu.memory_space<vmem>>, %arg7: memref<2x32x32xf32, #tpu.memory_space<vmem>>, %arg8: memref<2x1x32xf32, #tpu.memory_space<vmem>>, %arg9: memref<2x1x32xf32, #tpu.memory_space<vmem>>, %arg10: memref<2x1x32xf32, #tpu.memory_space<vmem>>, %arg11: memref<2x32x64xf32, #tpu.memory_space<vmem>>, %arg12: memref<2x1x64xf32, #tpu.memory_space<vmem>>, %arg13: memref<2x64x32xf32, #tpu.memory_space<vmem>>, %arg14: memref<2x1x32xf32, #tpu.memory_space<vmem>>, %arg15: memref<2x1x32xf32, #tpu.memory_space<vmem>>, %arg16: memref<2x1x32xf32, #tpu.memory_space<vmem>>, %arg17: memref<32x32xf32, #tpu.memory_space<vmem>>, %arg18: memref<1x32xf32, #tpu.memory_space<vmem>>, %arg19: memref<32x3xf32, #tpu.memory_space<vmem>>, %arg20: memref<1x3xf32, #tpu.memory_space<vmem>>, %arg21: memref<1x1x3xf32, #tpu.memory_space<vmem>>, %arg22: memref<8x32xf32, #tpu.memory_space<vmem>>) attributes {dimension_semantics = [#tpu.dimension_semantics<parallel>], iteration_bounds = array<i64: 2>, scalar_prefetch = 0 : i64, scratch_operands = 1 : i64, tpu.core_type = #tpu.core_type<tc>, window_params = [{transform_indices = @transform_0, window_bounds = array<i64: 1, 8, 32>}, {transform_indices = @transform_1, window_bounds = array<i64: 1, 1, 8>}, {pipeline_mode = #tpu.pipeline_mode<synchronous>, transform_indices = @transform_2, window_bounds = array<i64: 1, 32>}, {pipeline_mode = #tpu.pipeline_mode<synchronous>, transform_indices = @transform_3, window_bounds = array<i64: 1, 32>}, {pipeline_mode = #tpu.pipeline_mode<synchronous>, transform_indices = @transform_4, window_bounds = array<i64: 2, 32, 96>}, {pipeline_mode = #tpu.pipeline_mode<synchronous>, transform_indices = @transform_5, window_bounds = array<i64: 2, 1, 96>}, {pipeline_mode = #tpu.pipeline_mode<synchronous>, transform_indices = @transform_6, window_bounds = array<i64: 2, 32, 32>}, {pipeline_mode = #tpu.pipeline_mode<synchronous>, transform_indices = @transform_7, window_bounds = array<i64: 2, 1, 32>}, {pipeline_mode = #tpu.pipeline_mode<synchronous>, transform_indices = @transform_8, window_bounds = array<i64: 2, 1, 32>}, {pipeline_mode = #tpu.pipeline_mode<synchronous>, transform_indices = @transform_9, window_bounds = array<i64: 2, 1, 32>}, {pipeline_mode = #tpu.pipeline_mode<synchronous>, transform_indices = @transform_10, window_bounds = array<i64: 2, 32, 64>}, {pipeline_mode = #tpu.pipeline_mode<synchronous>, transform_indices = @transform_11, window_bounds = array<i64: 2, 1, 64>}, {pipeline_mode = #tpu.pipeline_mode<synchronous>, transform_indices = @transform_12, window_bounds = array<i64: 2, 64, 32>}, {pipeline_mode = #tpu.pipeline_mode<synchronous>, transform_indices = @transform_13, window_bounds = array<i64: 2, 1, 32>}, {pipeline_mode = #tpu.pipeline_mode<synchronous>, transform_indices = @transform_14, window_bounds = array<i64: 2, 1, 32>}, {pipeline_mode = #tpu.pipeline_mode<synchronous>, transform_indices = @transform_15, window_bounds = array<i64: 2, 1, 32>}, {pipeline_mode = #tpu.pipeline_mode<synchronous>, transform_indices = @transform_16, window_bounds = array<i64: 32, 32>}, {pipeline_mode = #tpu.pipeline_mode<synchronous>, transform_indices = @transform_17, window_bounds = array<i64: 1, 32>}, {pipeline_mode = #tpu.pipeline_mode<synchronous>, transform_indices = @transform_18, window_bounds = array<i64: 32, 3>}, {pipeline_mode = #tpu.pipeline_mode<synchronous>, transform_indices = @transform_19, window_bounds = array<i64: 1, 3>}, {transform_indices = @transform_20, window_bounds = array<i64: 1, 1, 3>}]} {
    %c0 = arith.constant 0 : index
    %c0_0 = arith.constant 0 : index
    %c0_1 = arith.constant 0 : index
    %0 = vector.load %arg2[%c0, %c0_0, %c0_1] : memref<1x1x8xf32, #tpu.memory_space<vmem>>, vector<1x1x8xf32>
    %1 = vector.shape_cast %0 : vector<1x1x8xf32> to vector<1x8xf32>
    %c0_2 = arith.constant 0 : index
    %c0_3 = arith.constant 0 : index
    %c0_4 = arith.constant 0 : index
    %2 = vector.load %arg1[%c0_2, %c0_3, %c0_4] : memref<1x8x32xf32, #tpu.memory_space<vmem>>, vector<1x8x32xf32>
    %3 = vector.shape_cast %2 : vector<1x8x32xf32> to vector<8x32xf32>
    %c0_5 = arith.constant 0 : index
    %c0_6 = arith.constant 0 : index
    %4 = vector.load %arg3[%c0_5, %c0_6] : memref<1x32xf32, #tpu.memory_space<vmem>>, vector<1x32xf32>
    %c0_7 = arith.constant 0 : index
    %c0_8 = arith.constant 0 : index
    %5 = vector.load %arg4[%c0_7, %c0_8] : memref<1x32xf32, #tpu.memory_space<vmem>>, vector<1x32xf32>
    %cst = arith.constant dense<0.000000e+00> : vector<8xf32>
    %6 = vector.multi_reduction <add>, %3, %cst [1] : vector<8x32xf32> to vector<8xf32>
    %7 = vector.shape_cast %6 : vector<8xf32> to vector<8x1xf32>
    %cst_9 = arith.constant 3.200000e+01 : f32
    %8 = vector.broadcast %cst_9 : f32 to vector<8x1xf32>
    %9 = arith.divf %7, %8 : vector<8x1xf32>
    %10 = vector.broadcast %9 : vector<8x1xf32> to vector<8x32xf32>
    %11 = arith.subf %3, %10 : vector<8x32xf32>
    %12 = arith.mulf %11, %11 : vector<8x32xf32>
    %cst_10 = arith.constant dense<0.000000e+00> : vector<8xf32>
    %13 = vector.multi_reduction <add>, %12, %cst_10 [1] : vector<8x32xf32> to vector<8xf32>
    %14 = vector.shape_cast %13 : vector<8xf32> to vector<8x1xf32>
    %cst_11 = arith.constant 3.200000e+01 : f32
    %15 = vector.broadcast %cst_11 : f32 to vector<8x1xf32>
    %16 = arith.divf %14, %15 : vector<8x1xf32>
    %17 = vector.broadcast %9 : vector<8x1xf32> to vector<8x32xf32>
    %18 = arith.subf %3, %17 : vector<8x32xf32>
    %cst_12 = arith.constant 9.99999974E-6 : f32
    %19 = vector.broadcast %cst_12 : f32 to vector<8x1xf32>
    %20 = arith.addf %16, %19 : vector<8x1xf32>
    %21 = math.rsqrt %20 : vector<8x1xf32>
    %22 = vector.broadcast %21 : vector<8x1xf32> to vector<8x32xf32>
    %23 = arith.mulf %18, %22 : vector<8x32xf32>
    %24 = vector.broadcast %4 : vector<1x32xf32> to vector<8x32xf32>
    %25 = arith.mulf %23, %24 : vector<8x32xf32>
    %26 = vector.broadcast %5 : vector<1x32xf32> to vector<8x32xf32>
    %27 = arith.addf %25, %26 : vector<8x32xf32>
    %c0_13 = arith.constant 0 : index
    %c0_14 = arith.constant 0 : index
    %c0_15 = arith.constant 0 : index
    %28 = vector.load %arg5[%c0_13, %c0_14, %c0_15] : memref<2x32x96xf32, #tpu.memory_space<vmem>>, vector<1x32x96xf32>
    %29 = vector.shape_cast %28 : vector<1x32x96xf32> to vector<32x96xf32>
    %cst_16 = arith.constant dense<0.000000e+00> : vector<8x96xf32>
    %30 = tpu.matmul %27, %29, %cst_16 {dimension_numbers = #tpu.dot_dimension_numbers<[1], [0], [0], [1], [0, 0, 1, 1], [], []>} : vector<8x32xf32>, vector<32x96xf32>, vector<8x96xf32> -> vector<8x96xf32>
    %c0_17 = arith.constant 0 : index
    %c0_18 = arith.constant 0 : index
    %c0_19 = arith.constant 0 : index
    %31 = vector.load %arg6[%c0_17, %c0_18, %c0_19] : memref<2x1x96xf32, #tpu.memory_space<vmem>>, vector<1x1x96xf32>
    %32 = vector.shape_cast %31 : vector<1x1x96xf32> to vector<1x96xf32>
    %33 = vector.broadcast %32 : vector<1x96xf32> to vector<8x96xf32>
    %34 = arith.addf %30, %33 : vector<8x96xf32>
    %35 = vector.extract_strided_slice %34 {offsets = [0, 0], sizes = [8, 8], strides = [1, 1]} : vector<8x96xf32> to vector<8x8xf32>
    %36 = vector.extract_strided_slice %34 {offsets = [0, 32], sizes = [8, 8], strides = [1, 1]} : vector<8x96xf32> to vector<8x8xf32>
    %37 = vector.extract_strided_slice %34 {offsets = [0, 64], sizes = [8, 8], strides = [1, 1]} : vector<8x96xf32> to vector<8x8xf32>
    %cst_20 = arith.constant dense<0.000000e+00> : vector<8x8xf32>
    %38 = tpu.matmul %35, %36, %cst_20 {dimension_numbers = #tpu.dot_dimension_numbers<[1], [1], [0], [0], [0, 0, 1, 0], [], []>} : vector<8x8xf32>, vector<8x8xf32>, vector<8x8xf32> -> vector<8x8xf32>
    %cst_21 = arith.constant 0.353553385 : f32
    %39 = vector.broadcast %cst_21 : f32 to vector<8x8xf32>
    %40 = arith.mulf %38, %39 : vector<8x8xf32>
    %41 = vector.broadcast %1 : vector<1x8xf32> to vector<8x8xf32>
    %42 = arith.addf %40, %41 : vector<8x8xf32>
    %cst_22 = arith.constant dense<0xFF800000> : vector<8xf32>
    %43 = vector.multi_reduction <maximumf>, %42, %cst_22 [1] : vector<8x8xf32> to vector<8xf32>
    %44 = vector.shape_cast %43 : vector<8xf32> to vector<8x1xf32>
    %45 = vector.broadcast %44 : vector<8x1xf32> to vector<8x8xf32>
    %46 = arith.subf %42, %45 : vector<8x8xf32>
    %47 = math.exp %46 : vector<8x8xf32>
    %cst_23 = arith.constant dense<0.000000e+00> : vector<8xf32>
    %48 = vector.multi_reduction <add>, %47, %cst_23 [1] : vector<8x8xf32> to vector<8xf32>
    %49 = vector.shape_cast %48 : vector<8xf32> to vector<8x1xf32>
    %50 = tpu.reciprocal %49 {approx = true} : vector<8x1xf32> -> vector<8x1xf32>
    %51 = vector.broadcast %50 : vector<8x1xf32> to vector<8x8xf32>
    %52 = arith.mulf %47, %51 : vector<8x8xf32>
    %cst_24 = arith.constant dense<0.000000e+00> : vector<8x8xf32>
    %53 = tpu.matmul %52, %37, %cst_24 {dimension_numbers = #tpu.dot_dimension_numbers<[1], [0], [0], [1], [0, 0, 1, 1], [], []>} : vector<8x8xf32>, vector<8x8xf32>, vector<8x8xf32> -> vector<8x8xf32>
    %c0_25 = arith.constant 0 : index
    %c0_26 = arith.constant 0 : index
    %54 = vector.load %arg22[%c0_25, %c0_26] : memref<8x32xf32, #tpu.memory_space<vmem>>, vector<8x8xf32>
    tpu.vector_store %arg22[%c0_25, %c0_26], %53 {strides = array<i32>} : memref<8x32xf32, #tpu.memory_space<vmem>>, vector<8x8xf32>,
    %55 = vector.extract_strided_slice %34 {offsets = [0, 8], sizes = [8, 8], strides = [1, 1]} : vector<8x96xf32> to vector<8x8xf32>
    %56 = vector.extract_strided_slice %34 {offsets = [0, 40], sizes = [8, 8], strides = [1, 1]} : vector<8x96xf32> to vector<8x8xf32>
    %57 = vector.extract_strided_slice %34 {offsets = [0, 72], sizes = [8, 8], strides = [1, 1]} : vector<8x96xf32> to vector<8x8xf32>
    %cst_27 = arith.constant dense<0.000000e+00> : vector<8x8xf32>
    %58 = tpu.matmul %55, %56, %cst_27 {dimension_numbers = #tpu.dot_dimension_numbers<[1], [1], [0], [0], [0, 0, 1, 0], [], []>} : vector<8x8xf32>, vector<8x8xf32>, vector<8x8xf32> -> vector<8x8xf32>
    %cst_28 = arith.constant 0.353553385 : f32
    %59 = vector.broadcast %cst_28 : f32 to vector<8x8xf32>
    %60 = arith.mulf %58, %59 : vector<8x8xf32>
    %61 = vector.broadcast %1 : vector<1x8xf32> to vector<8x8xf32>
    %62 = arith.addf %60, %61 : vector<8x8xf32>
    %cst_29 = arith.constant dense<0xFF800000> : vector<8xf32>
    %63 = vector.multi_reduction <maximumf>, %62, %cst_29 [1] : vector<8x8xf32> to vector<8xf32>
    %64 = vector.shape_cast %63 : vector<8xf32> to vector<8x1xf32>
    %65 = vector.broadcast %64 : vector<8x1xf32> to vector<8x8xf32>
    %66 = arith.subf %62, %65 : vector<8x8xf32>
    %67 = math.exp %66 : vector<8x8xf32>
    %cst_30 = arith.constant dense<0.000000e+00> : vector<8xf32>
    %68 = vector.multi_reduction <add>, %67, %cst_30 [1] : vector<8x8xf32> to vector<8xf32>
    %69 = vector.shape_cast %68 : vector<8xf32> to vector<8x1xf32>
    %70 = tpu.reciprocal %69 {approx = true} : vector<8x1xf32> -> vector<8x1xf32>
    %71 = vector.broadcast %70 : vector<8x1xf32> to vector<8x8xf32>
    %72 = arith.mulf %67, %71 : vector<8x8xf32>
    %cst_31 = arith.constant dense<0.000000e+00> : vector<8x8xf32>
    %73 = tpu.matmul %72, %57, %cst_31 {dimension_numbers = #tpu.dot_dimension_numbers<[1], [0], [0], [1], [0, 0, 1, 1], [], []>} : vector<8x8xf32>, vector<8x8xf32>, vector<8x8xf32> -> vector<8x8xf32>
    %c0_32 = arith.constant 0 : index
    %c8 = arith.constant 8 : index
    %74 = vector.load %arg22[%c0_32, %c8] : memref<8x32xf32, #tpu.memory_space<vmem>>, vector<8x8xf32>
    tpu.vector_store %arg22[%c0_32, %c8], %73 {strides = array<i32>} : memref<8x32xf32, #tpu.memory_space<vmem>>, vector<8x8xf32>,
    %75 = vector.extract_strided_slice %34 {offsets = [0, 16], sizes = [8, 8], strides = [1, 1]} : vector<8x96xf32> to vector<8x8xf32>
    %76 = vector.extract_strided_slice %34 {offsets = [0, 48], sizes = [8, 8], strides = [1, 1]} : vector<8x96xf32> to vector<8x8xf32>
    %77 = vector.extract_strided_slice %34 {offsets = [0, 80], sizes = [8, 8], strides = [1, 1]} : vector<8x96xf32> to vector<8x8xf32>
    %cst_33 = arith.constant dense<0.000000e+00> : vector<8x8xf32>
    %78 = tpu.matmul %75, %76, %cst_33 {dimension_numbers = #tpu.dot_dimension_numbers<[1], [1], [0], [0], [0, 0, 1, 0], [], []>} : vector<8x8xf32>, vector<8x8xf32>, vector<8x8xf32> -> vector<8x8xf32>
    %cst_34 = arith.constant 0.353553385 : f32
    %79 = vector.broadcast %cst_34 : f32 to vector<8x8xf32>
    %80 = arith.mulf %78, %79 : vector<8x8xf32>
    %81 = vector.broadcast %1 : vector<1x8xf32> to vector<8x8xf32>
    %82 = arith.addf %80, %81 : vector<8x8xf32>
    %cst_35 = arith.constant dense<0xFF800000> : vector<8xf32>
    %83 = vector.multi_reduction <maximumf>, %82, %cst_35 [1] : vector<8x8xf32> to vector<8xf32>
    %84 = vector.shape_cast %83 : vector<8xf32> to vector<8x1xf32>
    %85 = vector.broadcast %84 : vector<8x1xf32> to vector<8x8xf32>
    %86 = arith.subf %82, %85 : vector<8x8xf32>
    %87 = math.exp %86 : vector<8x8xf32>
    %cst_36 = arith.constant dense<0.000000e+00> : vector<8xf32>
    %88 = vector.multi_reduction <add>, %87, %cst_36 [1] : vector<8x8xf32> to vector<8xf32>
    %89 = vector.shape_cast %88 : vector<8xf32> to vector<8x1xf32>
    %90 = tpu.reciprocal %89 {approx = true} : vector<8x1xf32> -> vector<8x1xf32>
    %91 = vector.broadcast %90 : vector<8x1xf32> to vector<8x8xf32>
    %92 = arith.mulf %87, %91 : vector<8x8xf32>
    %cst_37 = arith.constant dense<0.000000e+00> : vector<8x8xf32>
    %93 = tpu.matmul %92, %77, %cst_37 {dimension_numbers = #tpu.dot_dimension_numbers<[1], [0], [0], [1], [0, 0, 1, 1], [], []>} : vector<8x8xf32>, vector<8x8xf32>, vector<8x8xf32> -> vector<8x8xf32>
    %c0_38 = arith.constant 0 : index
    %c16 = arith.constant 16 : index
    %94 = vector.load %arg22[%c0_38, %c16] : memref<8x32xf32, #tpu.memory_space<vmem>>, vector<8x8xf32>
    tpu.vector_store %arg22[%c0_38, %c16], %93 {strides = array<i32>} : memref<8x32xf32, #tpu.memory_space<vmem>>, vector<8x8xf32>,
    %95 = vector.extract_strided_slice %34 {offsets = [0, 24], sizes = [8, 8], strides = [1, 1]} : vector<8x96xf32> to vector<8x8xf32>
    %96 = vector.extract_strided_slice %34 {offsets = [0, 56], sizes = [8, 8], strides = [1, 1]} : vector<8x96xf32> to vector<8x8xf32>
    %97 = vector.extract_strided_slice %34 {offsets = [0, 88], sizes = [8, 8], strides = [1, 1]} : vector<8x96xf32> to vector<8x8xf32>
    %cst_39 = arith.constant dense<0.000000e+00> : vector<8x8xf32>
    %98 = tpu.matmul %95, %96, %cst_39 {dimension_numbers = #tpu.dot_dimension_numbers<[1], [1], [0], [0], [0, 0, 1, 0], [], []>} : vector<8x8xf32>, vector<8x8xf32>, vector<8x8xf32> -> vector<8x8xf32>
    %cst_40 = arith.constant 0.353553385 : f32
    %99 = vector.broadcast %cst_40 : f32 to vector<8x8xf32>
    %100 = arith.mulf %98, %99 : vector<8x8xf32>
    %101 = vector.broadcast %1 : vector<1x8xf32> to vector<8x8xf32>
    %102 = arith.addf %100, %101 : vector<8x8xf32>
    %cst_41 = arith.constant dense<0xFF800000> : vector<8xf32>
    %103 = vector.multi_reduction <maximumf>, %102, %cst_41 [1] : vector<8x8xf32> to vector<8xf32>
    %104 = vector.shape_cast %103 : vector<8xf32> to vector<8x1xf32>
    %105 = vector.broadcast %104 : vector<8x1xf32> to vector<8x8xf32>
    %106 = arith.subf %102, %105 : vector<8x8xf32>
    %107 = math.exp %106 : vector<8x8xf32>
    %cst_42 = arith.constant dense<0.000000e+00> : vector<8xf32>
    %108 = vector.multi_reduction <add>, %107, %cst_42 [1] : vector<8x8xf32> to vector<8xf32>
    %109 = vector.shape_cast %108 : vector<8xf32> to vector<8x1xf32>
    %110 = tpu.reciprocal %109 {approx = true} : vector<8x1xf32> -> vector<8x1xf32>
    %111 = vector.broadcast %110 : vector<8x1xf32> to vector<8x8xf32>
    %112 = arith.mulf %107, %111 : vector<8x8xf32>
    %cst_43 = arith.constant dense<0.000000e+00> : vector<8x8xf32>
    %113 = tpu.matmul %112, %97, %cst_43 {dimension_numbers = #tpu.dot_dimension_numbers<[1], [0], [0], [1], [0, 0, 1, 1], [], []>} : vector<8x8xf32>, vector<8x8xf32>, vector<8x8xf32> -> vector<8x8xf32>
    %c0_44 = arith.constant 0 : index
    %c24 = arith.constant 24 : index
    %114 = vector.load %arg22[%c0_44, %c24] : memref<8x32xf32, #tpu.memory_space<vmem>>, vector<8x8xf32>
    tpu.vector_store %arg22[%c0_44, %c24], %113 {strides = array<i32>} : memref<8x32xf32, #tpu.memory_space<vmem>>, vector<8x8xf32>,
    %c0_45 = arith.constant 0 : index
    %c0_46 = arith.constant 0 : index
    %115 = vector.load %arg22[%c0_45, %c0_46] : memref<8x32xf32, #tpu.memory_space<vmem>>, vector<8x32xf32>
    %c0_47 = arith.constant 0 : index
    %c0_48 = arith.constant 0 : index
    %c0_49 = arith.constant 0 : index
    %116 = vector.load %arg7[%c0_47, %c0_48, %c0_49] : memref<2x32x32xf32, #tpu.memory_space<vmem>>, vector<1x32x32xf32>
    %117 = vector.shape_cast %116 : vector<1x32x32xf32> to vector<32x32xf32>
    %cst_50 = arith.constant dense<0.000000e+00> : vector<8x32xf32>
    %118 = tpu.matmul %115, %117, %cst_50 {dimension_numbers = #tpu.dot_dimension_numbers<[1], [0], [0], [1], [0, 0, 1, 1], [], []>} : vector<8x32xf32>, vector<32x32xf32>, vector<8x32xf32> -> vector<8x32xf32>
    %c0_51 = arith.constant 0 : index
    %c0_52 = arith.constant 0 : index
    %c0_53 = arith.constant 0 : index
    %119 = vector.load %arg8[%c0_51, %c0_52, %c0_53] : memref<2x1x32xf32, #tpu.memory_space<vmem>>, vector<1x1x32xf32>
    %120 = vector.shape_cast %119 : vector<1x1x32xf32> to vector<1x32xf32>
    %121 = vector.broadcast %120 : vector<1x32xf32> to vector<8x32xf32>
    %122 = arith.addf %118, %121 : vector<8x32xf32>
    %123 = arith.addf %122, %27 : vector<8x32xf32>
    %c0_54 = arith.constant 0 : index
    %c0_55 = arith.constant 0 : index
    %c0_56 = arith.constant 0 : index
    %124 = vector.load %arg9[%c0_54, %c0_55, %c0_56] : memref<2x1x32xf32, #tpu.memory_space<vmem>>, vector<1x1x32xf32>
    %125 = vector.shape_cast %124 : vector<1x1x32xf32> to vector<1x32xf32>
    %c0_57 = arith.constant 0 : index
    %c0_58 = arith.constant 0 : index
    %c0_59 = arith.constant 0 : index
    %126 = vector.load %arg10[%c0_57, %c0_58, %c0_59] : memref<2x1x32xf32, #tpu.memory_space<vmem>>, vector<1x1x32xf32>
    %127 = vector.shape_cast %126 : vector<1x1x32xf32> to vector<1x32xf32>
    %cst_60 = arith.constant dense<0.000000e+00> : vector<8xf32>
    %128 = vector.multi_reduction <add>, %123, %cst_60 [1] : vector<8x32xf32> to vector<8xf32>
    %129 = vector.shape_cast %128 : vector<8xf32> to vector<8x1xf32>
    %cst_61 = arith.constant 3.200000e+01 : f32
    %130 = vector.broadcast %cst_61 : f32 to vector<8x1xf32>
    %131 = arith.divf %129, %130 : vector<8x1xf32>
    %132 = vector.broadcast %131 : vector<8x1xf32> to vector<8x32xf32>
    %133 = arith.subf %123, %132 : vector<8x32xf32>
    %134 = arith.mulf %133, %133 : vector<8x32xf32>
    %cst_62 = arith.constant dense<0.000000e+00> : vector<8xf32>
    %135 = vector.multi_reduction <add>, %134, %cst_62 [1] : vector<8x32xf32> to vector<8xf32>
    %136 = vector.shape_cast %135 : vector<8xf32> to vector<8x1xf32>
    %cst_63 = arith.constant 3.200000e+01 : f32
    %137 = vector.broadcast %cst_63 : f32 to vector<8x1xf32>
    %138 = arith.divf %136, %137 : vector<8x1xf32>
    %139 = vector.broadcast %131 : vector<8x1xf32> to vector<8x32xf32>
    %140 = arith.subf %123, %139 : vector<8x32xf32>
    %cst_64 = arith.constant 9.99999974E-6 : f32
    %141 = vector.broadcast %cst_64 : f32 to vector<8x1xf32>
    %142 = arith.addf %138, %141 : vector<8x1xf32>
    %143 = math.rsqrt %142 : vector<8x1xf32>
    %144 = vector.broadcast %143 : vector<8x1xf32> to vector<8x32xf32>
    %145 = arith.mulf %140, %144 : vector<8x32xf32>
    %146 = vector.broadcast %125 : vector<1x32xf32> to vector<8x32xf32>
    %147 = arith.mulf %145, %146 : vector<8x32xf32>
    %148 = vector.broadcast %127 : vector<1x32xf32> to vector<8x32xf32>
    %149 = arith.addf %147, %148 : vector<8x32xf32>
    %c0_65 = arith.constant 0 : index
    %c0_66 = arith.constant 0 : index
    %c0_67 = arith.constant 0 : index
    %150 = vector.load %arg11[%c0_65, %c0_66, %c0_67] : memref<2x32x64xf32, #tpu.memory_space<vmem>>, vector<1x32x64xf32>
    %151 = vector.shape_cast %150 : vector<1x32x64xf32> to vector<32x64xf32>
    %cst_68 = arith.constant dense<0.000000e+00> : vector<8x64xf32>
    %152 = tpu.matmul %149, %151, %cst_68 {dimension_numbers = #tpu.dot_dimension_numbers<[1], [0], [0], [1], [0, 0, 1, 1], [], []>} : vector<8x32xf32>, vector<32x64xf32>, vector<8x64xf32> -> vector<8x64xf32>
    %c0_69 = arith.constant 0 : index
    %c0_70 = arith.constant 0 : index
    %c0_71 = arith.constant 0 : index
    %153 = vector.load %arg12[%c0_69, %c0_70, %c0_71] : memref<2x1x64xf32, #tpu.memory_space<vmem>>, vector<1x1x64xf32>
    %154 = vector.shape_cast %153 : vector<1x1x64xf32> to vector<1x64xf32>
    %155 = vector.broadcast %154 : vector<1x64xf32> to vector<8x64xf32>
    %156 = arith.addf %152, %155 : vector<8x64xf32>
    %157 = arith.mulf %156, %156 : vector<8x64xf32>
    %158 = arith.mulf %156, %157 : vector<8x64xf32>
    %cst_72 = arith.constant 4.471500e-02 : f32
    %159 = vector.broadcast %cst_72 : f32 to vector<8x64xf32>
    %160 = arith.mulf %159, %158 : vector<8x64xf32>
    %161 = arith.addf %156, %160 : vector<8x64xf32>
    %cst_73 = arith.constant 0.797884583 : f32
    %162 = vector.broadcast %cst_73 : f32 to vector<8x64xf32>
    %163 = arith.mulf %162, %161 : vector<8x64xf32>
    %164 = math.tanh %163 : vector<8x64xf32>
    %cst_74 = arith.constant 1.000000e+00 : f32
    %165 = vector.broadcast %cst_74 : f32 to vector<8x64xf32>
    %166 = arith.addf %165, %164 : vector<8x64xf32>
    %cst_75 = arith.constant 5.000000e-01 : f32
    %167 = vector.broadcast %cst_75 : f32 to vector<8x64xf32>
    %168 = arith.mulf %167, %166 : vector<8x64xf32>
    %169 = arith.mulf %156, %168 : vector<8x64xf32>
    %c0_76 = arith.constant 0 : index
    %c0_77 = arith.constant 0 : index
    %c0_78 = arith.constant 0 : index
    %170 = vector.load %arg13[%c0_76, %c0_77, %c0_78] : memref<2x64x32xf32, #tpu.memory_space<vmem>>, vector<1x64x32xf32>
    %171 = vector.shape_cast %170 : vector<1x64x32xf32> to vector<64x32xf32>
    %cst_79 = arith.constant dense<0.000000e+00> : vector<8x32xf32>
    %172 = tpu.matmul %169, %171, %cst_79 {dimension_numbers = #tpu.dot_dimension_numbers<[1], [0], [0], [1], [0, 0, 1, 1], [], []>} : vector<8x64xf32>, vector<64x32xf32>, vector<8x32xf32> -> vector<8x32xf32>
    %c0_80 = arith.constant 0 : index
    %c0_81 = arith.constant 0 : index
    %c0_82 = arith.constant 0 : index
    %173 = vector.load %arg14[%c0_80, %c0_81, %c0_82] : memref<2x1x32xf32, #tpu.memory_space<vmem>>, vector<1x1x32xf32>
    %174 = vector.shape_cast %173 : vector<1x1x32xf32> to vector<1x32xf32>
    %175 = vector.broadcast %174 : vector<1x32xf32> to vector<8x32xf32>
    %176 = arith.addf %172, %175 : vector<8x32xf32>
    %177 = arith.addf %176, %149 : vector<8x32xf32>
    %c0_83 = arith.constant 0 : index
    %c0_84 = arith.constant 0 : index
    %c0_85 = arith.constant 0 : index
    %178 = vector.load %arg15[%c0_83, %c0_84, %c0_85] : memref<2x1x32xf32, #tpu.memory_space<vmem>>, vector<1x1x32xf32>
    %179 = vector.shape_cast %178 : vector<1x1x32xf32> to vector<1x32xf32>
    %c0_86 = arith.constant 0 : index
    %c0_87 = arith.constant 0 : index
    %c0_88 = arith.constant 0 : index
    %180 = vector.load %arg16[%c0_86, %c0_87, %c0_88] : memref<2x1x32xf32, #tpu.memory_space<vmem>>, vector<1x1x32xf32>
    %181 = vector.shape_cast %180 : vector<1x1x32xf32> to vector<1x32xf32>
    %cst_89 = arith.constant dense<0.000000e+00> : vector<8xf32>
    %182 = vector.multi_reduction <add>, %177, %cst_89 [1] : vector<8x32xf32> to vector<8xf32>
    %183 = vector.shape_cast %182 : vector<8xf32> to vector<8x1xf32>
    %cst_90 = arith.constant 3.200000e+01 : f32
    %184 = vector.broadcast %cst_90 : f32 to vector<8x1xf32>
    %185 = arith.divf %183, %184 : vector<8x1xf32>
    %186 = vector.broadcast %185 : vector<8x1xf32> to vector<8x32xf32>
    %187 = arith.subf %177, %186 : vector<8x32xf32>
    %188 = arith.mulf %187, %187 : vector<8x32xf32>
    %cst_91 = arith.constant dense<0.000000e+00> : vector<8xf32>
    %189 = vector.multi_reduction <add>, %188, %cst_91 [1] : vector<8x32xf32> to vector<8xf32>
    %190 = vector.shape_cast %189 : vector<8xf32> to vector<8x1xf32>
    %cst_92 = arith.constant 3.200000e+01 : f32
    %191 = vector.broadcast %cst_92 : f32 to vector<8x1xf32>
    %192 = arith.divf %190, %191 : vector<8x1xf32>
    %193 = vector.broadcast %185 : vector<8x1xf32> to vector<8x32xf32>
    %194 = arith.subf %177, %193 : vector<8x32xf32>
    %cst_93 = arith.constant 9.99999974E-6 : f32
    %195 = vector.broadcast %cst_93 : f32 to vector<8x1xf32>
    %196 = arith.addf %192, %195 : vector<8x1xf32>
    %197 = math.rsqrt %196 : vector<8x1xf32>
    %198 = vector.broadcast %197 : vector<8x1xf32> to vector<8x32xf32>
    %199 = arith.mulf %194, %198 : vector<8x32xf32>
    %200 = vector.broadcast %179 : vector<1x32xf32> to vector<8x32xf32>
    %201 = arith.mulf %199, %200 : vector<8x32xf32>
    %202 = vector.broadcast %181 : vector<1x32xf32> to vector<8x32xf32>
    %203 = arith.addf %201, %202 : vector<8x32xf32>
    %c1 = arith.constant 1 : index
    %c0_94 = arith.constant 0 : index
    %c0_95 = arith.constant 0 : index
    %204 = vector.load %arg5[%c1, %c0_94, %c0_95] : memref<2x32x96xf32, #tpu.memory_space<vmem>>, vector<1x32x96xf32>
    %205 = vector.shape_cast %204 : vector<1x32x96xf32> to vector<32x96xf32>
    %cst_96 = arith.constant dense<0.000000e+00> : vector<8x96xf32>
    %206 = tpu.matmul %203, %205, %cst_96 {dimension_numbers = #tpu.dot_dimension_numbers<[1], [0], [0], [1], [0, 0, 1, 1], [], []>} : vector<8x32xf32>, vector<32x96xf32>, vector<8x96xf32> -> vector<8x96xf32>
    %c1_97 = arith.constant 1 : index
    %c0_98 = arith.constant 0 : index
    %c0_99 = arith.constant 0 : index
    %207 = vector.load %arg6[%c1_97, %c0_98, %c0_99] : memref<2x1x96xf32, #tpu.memory_space<vmem>>, vector<1x1x96xf32>
    %208 = vector.shape_cast %207 : vector<1x1x96xf32> to vector<1x96xf32>
    %209 = vector.broadcast %208 : vector<1x96xf32> to vector<8x96xf32>
    %210 = arith.addf %206, %209 : vector<8x96xf32>
    %211 = vector.extract_strided_slice %210 {offsets = [0, 0], sizes = [8, 8], strides = [1, 1]} : vector<8x96xf32> to vector<8x8xf32>
    %212 = vector.extract_strided_slice %210 {offsets = [0, 32], sizes = [8, 8], strides = [1, 1]} : vector<8x96xf32> to vector<8x8xf32>
    %213 = vector.extract_strided_slice %210 {offsets = [0, 64], sizes = [8, 8], strides = [1, 1]} : vector<8x96xf32> to vector<8x8xf32>
    %cst_100 = arith.constant dense<0.000000e+00> : vector<8x8xf32>
    %214 = tpu.matmul %211, %212, %cst_100 {dimension_numbers = #tpu.dot_dimension_numbers<[1], [1], [0], [0], [0, 0, 1, 0], [], []>} : vector<8x8xf32>, vector<8x8xf32>, vector<8x8xf32> -> vector<8x8xf32>
    %cst_101 = arith.constant 0.353553385 : f32
    %215 = vector.broadcast %cst_101 : f32 to vector<8x8xf32>
    %216 = arith.mulf %214, %215 : vector<8x8xf32>
    %217 = vector.broadcast %1 : vector<1x8xf32> to vector<8x8xf32>
    %218 = arith.addf %216, %217 : vector<8x8xf32>
    %cst_102 = arith.constant dense<0xFF800000> : vector<8xf32>
    %219 = vector.multi_reduction <maximumf>, %218, %cst_102 [1] : vector<8x8xf32> to vector<8xf32>
    %220 = vector.shape_cast %219 : vector<8xf32> to vector<8x1xf32>
    %221 = vector.broadcast %220 : vector<8x1xf32> to vector<8x8xf32>
    %222 = arith.subf %218, %221 : vector<8x8xf32>
    %223 = math.exp %222 : vector<8x8xf32>
    %cst_103 = arith.constant dense<0.000000e+00> : vector<8xf32>
    %224 = vector.multi_reduction <add>, %223, %cst_103 [1] : vector<8x8xf32> to vector<8xf32>
    %225 = vector.shape_cast %224 : vector<8xf32> to vector<8x1xf32>
    %226 = tpu.reciprocal %225 {approx = true} : vector<8x1xf32> -> vector<8x1xf32>
    %227 = vector.broadcast %226 : vector<8x1xf32> to vector<8x8xf32>
    %228 = arith.mulf %223, %227 : vector<8x8xf32>
    %cst_104 = arith.constant dense<0.000000e+00> : vector<8x8xf32>
    %229 = tpu.matmul %228, %213, %cst_104 {dimension_numbers = #tpu.dot_dimension_numbers<[1], [0], [0], [1], [0, 0, 1, 1], [], []>} : vector<8x8xf32>, vector<8x8xf32>, vector<8x8xf32> -> vector<8x8xf32>
    %c0_105 = arith.constant 0 : index
    %c0_106 = arith.constant 0 : index
    %230 = vector.load %arg22[%c0_105, %c0_106] : memref<8x32xf32, #tpu.memory_space<vmem>>, vector<8x8xf32>
    tpu.vector_store %arg22[%c0_105, %c0_106], %229 {strides = array<i32>} : memref<8x32xf32, #tpu.memory_space<vmem>>, vector<8x8xf32>,
    %231 = vector.extract_strided_slice %210 {offsets = [0, 8], sizes = [8, 8], strides = [1, 1]} : vector<8x96xf32> to vector<8x8xf32>
    %232 = vector.extract_strided_slice %210 {offsets = [0, 40], sizes = [8, 8], strides = [1, 1]} : vector<8x96xf32> to vector<8x8xf32>
    %233 = vector.extract_strided_slice %210 {offsets = [0, 72], sizes = [8, 8], strides = [1, 1]} : vector<8x96xf32> to vector<8x8xf32>
    %cst_107 = arith.constant dense<0.000000e+00> : vector<8x8xf32>
    %234 = tpu.matmul %231, %232, %cst_107 {dimension_numbers = #tpu.dot_dimension_numbers<[1], [1], [0], [0], [0, 0, 1, 0], [], []>} : vector<8x8xf32>, vector<8x8xf32>, vector<8x8xf32> -> vector<8x8xf32>
    %cst_108 = arith.constant 0.353553385 : f32
    %235 = vector.broadcast %cst_108 : f32 to vector<8x8xf32>
    %236 = arith.mulf %234, %235 : vector<8x8xf32>
    %237 = vector.broadcast %1 : vector<1x8xf32> to vector<8x8xf32>
    %238 = arith.addf %236, %237 : vector<8x8xf32>
    %cst_109 = arith.constant dense<0xFF800000> : vector<8xf32>
    %239 = vector.multi_reduction <maximumf>, %238, %cst_109 [1] : vector<8x8xf32> to vector<8xf32>
    %240 = vector.shape_cast %239 : vector<8xf32> to vector<8x1xf32>
    %241 = vector.broadcast %240 : vector<8x1xf32> to vector<8x8xf32>
    %242 = arith.subf %238, %241 : vector<8x8xf32>
    %243 = math.exp %242 : vector<8x8xf32>
    %cst_110 = arith.constant dense<0.000000e+00> : vector<8xf32>
    %244 = vector.multi_reduction <add>, %243, %cst_110 [1] : vector<8x8xf32> to vector<8xf32>
    %245 = vector.shape_cast %244 : vector<8xf32> to vector<8x1xf32>
    %246 = tpu.reciprocal %245 {approx = true} : vector<8x1xf32> -> vector<8x1xf32>
    %247 = vector.broadcast %246 : vector<8x1xf32> to vector<8x8xf32>
    %248 = arith.mulf %243, %247 : vector<8x8xf32>
    %cst_111 = arith.constant dense<0.000000e+00> : vector<8x8xf32>
    %249 = tpu.matmul %248, %233, %cst_111 {dimension_numbers = #tpu.dot_dimension_numbers<[1], [0], [0], [1], [0, 0, 1, 1], [], []>} : vector<8x8xf32>, vector<8x8xf32>, vector<8x8xf32> -> vector<8x8xf32>
    %c0_112 = arith.constant 0 : index
    %c8_113 = arith.constant 8 : index
    %250 = vector.load %arg22[%c0_112, %c8_113] : memref<8x32xf32, #tpu.memory_space<vmem>>, vector<8x8xf32>
    tpu.vector_store %arg22[%c0_112, %c8_113], %249 {strides = array<i32>} : memref<8x32xf32, #tpu.memory_space<vmem>>, vector<8x8xf32>,
    %251 = vector.extract_strided_slice %210 {offsets = [0, 16], sizes = [8, 8], strides = [1, 1]} : vector<8x96xf32> to vector<8x8xf32>
    %252 = vector.extract_strided_slice %210 {offsets = [0, 48], sizes = [8, 8], strides = [1, 1]} : vector<8x96xf32> to vector<8x8xf32>
    %253 = vector.extract_strided_slice %210 {offsets = [0, 80], sizes = [8, 8], strides = [1, 1]} : vector<8x96xf32> to vector<8x8xf32>
    %cst_114 = arith.constant dense<0.000000e+00> : vector<8x8xf32>
    %254 = tpu.matmul %251, %252, %cst_114 {dimension_numbers = #tpu.dot_dimension_numbers<[1], [1], [0], [0], [0, 0, 1, 0], [], []>} : vector<8x8xf32>, vector<8x8xf32>, vector<8x8xf32> -> vector<8x8xf32>
    %cst_115 = arith.constant 0.353553385 : f32
    %255 = vector.broadcast %cst_115 : f32 to vector<8x8xf32>
    %256 = arith.mulf %254, %255 : vector<8x8xf32>
    %257 = vector.broadcast %1 : vector<1x8xf32> to vector<8x8xf32>
    %258 = arith.addf %256, %257 : vector<8x8xf32>
    %cst_116 = arith.constant dense<0xFF800000> : vector<8xf32>
    %259 = vector.multi_reduction <maximumf>, %258, %cst_116 [1] : vector<8x8xf32> to vector<8xf32>
    %260 = vector.shape_cast %259 : vector<8xf32> to vector<8x1xf32>
    %261 = vector.broadcast %260 : vector<8x1xf32> to vector<8x8xf32>
    %262 = arith.subf %258, %261 : vector<8x8xf32>
    %263 = math.exp %262 : vector<8x8xf32>
    %cst_117 = arith.constant dense<0.000000e+00> : vector<8xf32>
    %264 = vector.multi_reduction <add>, %263, %cst_117 [1] : vector<8x8xf32> to vector<8xf32>
    %265 = vector.shape_cast %264 : vector<8xf32> to vector<8x1xf32>
    %266 = tpu.reciprocal %265 {approx = true} : vector<8x1xf32> -> vector<8x1xf32>
    %267 = vector.broadcast %266 : vector<8x1xf32> to vector<8x8xf32>
    %268 = arith.mulf %263, %267 : vector<8x8xf32>
    %cst_118 = arith.constant dense<0.000000e+00> : vector<8x8xf32>
    %269 = tpu.matmul %268, %253, %cst_118 {dimension_numbers = #tpu.dot_dimension_numbers<[1], [0], [0], [1], [0, 0, 1, 1], [], []>} : vector<8x8xf32>, vector<8x8xf32>, vector<8x8xf32> -> vector<8x8xf32>
    %c0_119 = arith.constant 0 : index
    %c16_120 = arith.constant 16 : index
    %270 = vector.load %arg22[%c0_119, %c16_120] : memref<8x32xf32, #tpu.memory_space<vmem>>, vector<8x8xf32>
    tpu.vector_store %arg22[%c0_119, %c16_120], %269 {strides = array<i32>} : memref<8x32xf32, #tpu.memory_space<vmem>>, vector<8x8xf32>,
    %271 = vector.extract_strided_slice %210 {offsets = [0, 24], sizes = [8, 8], strides = [1, 1]} : vector<8x96xf32> to vector<8x8xf32>
    %272 = vector.extract_strided_slice %210 {offsets = [0, 56], sizes = [8, 8], strides = [1, 1]} : vector<8x96xf32> to vector<8x8xf32>
    %273 = vector.extract_strided_slice %210 {offsets = [0, 88], sizes = [8, 8], strides = [1, 1]} : vector<8x96xf32> to vector<8x8xf32>
    %cst_121 = arith.constant dense<0.000000e+00> : vector<8x8xf32>
    %274 = tpu.matmul %271, %272, %cst_121 {dimension_numbers = #tpu.dot_dimension_numbers<[1], [1], [0], [0], [0, 0, 1, 0], [], []>} : vector<8x8xf32>, vector<8x8xf32>, vector<8x8xf32> -> vector<8x8xf32>
    %cst_122 = arith.constant 0.353553385 : f32
    %275 = vector.broadcast %cst_122 : f32 to vector<8x8xf32>
    %276 = arith.mulf %274, %275 : vector<8x8xf32>
    %277 = vector.broadcast %1 : vector<1x8xf32> to vector<8x8xf32>
    %278 = arith.addf %276, %277 : vector<8x8xf32>
    %cst_123 = arith.constant dense<0xFF800000> : vector<8xf32>
    %279 = vector.multi_reduction <maximumf>, %278, %cst_123 [1] : vector<8x8xf32> to vector<8xf32>
    %280 = vector.shape_cast %279 : vector<8xf32> to vector<8x1xf32>
    %281 = vector.broadcast %280 : vector<8x1xf32> to vector<8x8xf32>
    %282 = arith.subf %278, %281 : vector<8x8xf32>
    %283 = math.exp %282 : vector<8x8xf32>
    %cst_124 = arith.constant dense<0.000000e+00> : vector<8xf32>
    %284 = vector.multi_reduction <add>, %283, %cst_124 [1] : vector<8x8xf32> to vector<8xf32>
    %285 = vector.shape_cast %284 : vector<8xf32> to vector<8x1xf32>
    %286 = tpu.reciprocal %285 {approx = true} : vector<8x1xf32> -> vector<8x1xf32>
    %287 = vector.broadcast %286 : vector<8x1xf32> to vector<8x8xf32>
    %288 = arith.mulf %283, %287 : vector<8x8xf32>
    %cst_125 = arith.constant dense<0.000000e+00> : vector<8x8xf32>
    %289 = tpu.matmul %288, %273, %cst_125 {dimension_numbers = #tpu.dot_dimension_numbers<[1], [0], [0], [1], [0, 0, 1, 1], [], []>} : vector<8x8xf32>, vector<8x8xf32>, vector<8x8xf32> -> vector<8x8xf32>
    %c0_126 = arith.constant 0 : index
    %c24_127 = arith.constant 24 : index
    %290 = vector.load %arg22[%c0_126, %c24_127] : memref<8x32xf32, #tpu.memory_space<vmem>>, vector<8x8xf32>
    tpu.vector_store %arg22[%c0_126, %c24_127], %289 {strides = array<i32>} : memref<8x32xf32, #tpu.memory_space<vmem>>, vector<8x8xf32>,
    %c0_128 = arith.constant 0 : index
    %c0_129 = arith.constant 0 : index
    %291 = vector.load %arg22[%c0_128, %c0_129] : memref<8x32xf32, #tpu.memory_space<vmem>>, vector<8x32xf32>
    %c1_130 = arith.constant 1 : index
    %c0_131 = arith.constant 0 : index
    %c0_132 = arith.constant 0 : index
    %292 = vector.load %arg7[%c1_130, %c0_131, %c0_132] : memref<2x32x32xf32, #tpu.memory_space<vmem>>, vector<1x32x32xf32>
    %293 = vector.shape_cast %292 : vector<1x32x32xf32> to vector<32x32xf32>
    %cst_133 = arith.constant dense<0.000000e+00> : vector<8x32xf32>
    %294 = tpu.matmul %291, %293, %cst_133 {dimension_numbers = #tpu.dot_dimension_numbers<[1], [0], [0], [1], [0, 0, 1, 1], [], []>} : vector<8x32xf32>, vector<32x32xf32>, vector<8x32xf32> -> vector<8x32xf32>
    %c1_134 = arith.constant 1 : index
    %c0_135 = arith.constant 0 : index
    %c0_136 = arith.constant 0 : index
    %295 = vector.load %arg8[%c1_134, %c0_135, %c0_136] : memref<2x1x32xf32, #tpu.memory_space<vmem>>, vector<1x1x32xf32>
    %296 = vector.shape_cast %295 : vector<1x1x32xf32> to vector<1x32xf32>
    %297 = vector.broadcast %296 : vector<1x32xf32> to vector<8x32xf32>
    %298 = arith.addf %294, %297 : vector<8x32xf32>
    %299 = arith.addf %298, %203 : vector<8x32xf32>
    %c1_137 = arith.constant 1 : index
    %c0_138 = arith.constant 0 : index
    %c0_139 = arith.constant 0 : index
    %300 = vector.load %arg9[%c1_137, %c0_138, %c0_139] : memref<2x1x32xf32, #tpu.memory_space<vmem>>, vector<1x1x32xf32>
    %301 = vector.shape_cast %300 : vector<1x1x32xf32> to vector<1x32xf32>
    %c1_140 = arith.constant 1 : index
    %c0_141 = arith.constant 0 : index
    %c0_142 = arith.constant 0 : index
    %302 = vector.load %arg10[%c1_140, %c0_141, %c0_142] : memref<2x1x32xf32, #tpu.memory_space<vmem>>, vector<1x1x32xf32>
    %303 = vector.shape_cast %302 : vector<1x1x32xf32> to vector<1x32xf32>
    %cst_143 = arith.constant dense<0.000000e+00> : vector<8xf32>
    %304 = vector.multi_reduction <add>, %299, %cst_143 [1] : vector<8x32xf32> to vector<8xf32>
    %305 = vector.shape_cast %304 : vector<8xf32> to vector<8x1xf32>
    %cst_144 = arith.constant 3.200000e+01 : f32
    %306 = vector.broadcast %cst_144 : f32 to vector<8x1xf32>
    %307 = arith.divf %305, %306 : vector<8x1xf32>
    %308 = vector.broadcast %307 : vector<8x1xf32> to vector<8x32xf32>
    %309 = arith.subf %299, %308 : vector<8x32xf32>
    %310 = arith.mulf %309, %309 : vector<8x32xf32>
    %cst_145 = arith.constant dense<0.000000e+00> : vector<8xf32>
    %311 = vector.multi_reduction <add>, %310, %cst_145 [1] : vector<8x32xf32> to vector<8xf32>
    %312 = vector.shape_cast %311 : vector<8xf32> to vector<8x1xf32>
    %cst_146 = arith.constant 3.200000e+01 : f32
    %313 = vector.broadcast %cst_146 : f32 to vector<8x1xf32>
    %314 = arith.divf %312, %313 : vector<8x1xf32>
    %315 = vector.broadcast %307 : vector<8x1xf32> to vector<8x32xf32>
    %316 = arith.subf %299, %315 : vector<8x32xf32>
    %cst_147 = arith.constant 9.99999974E-6 : f32
    %317 = vector.broadcast %cst_147 : f32 to vector<8x1xf32>
    %318 = arith.addf %314, %317 : vector<8x1xf32>
    %319 = math.rsqrt %318 : vector<8x1xf32>
    %320 = vector.broadcast %319 : vector<8x1xf32> to vector<8x32xf32>
    %321 = arith.mulf %316, %320 : vector<8x32xf32>
    %322 = vector.broadcast %301 : vector<1x32xf32> to vector<8x32xf32>
    %323 = arith.mulf %321, %322 : vector<8x32xf32>
    %324 = vector.broadcast %303 : vector<1x32xf32> to vector<8x32xf32>
    %325 = arith.addf %323, %324 : vector<8x32xf32>
    %c1_148 = arith.constant 1 : index
    %c0_149 = arith.constant 0 : index
    %c0_150 = arith.constant 0 : index
    %326 = vector.load %arg11[%c1_148, %c0_149, %c0_150] : memref<2x32x64xf32, #tpu.memory_space<vmem>>, vector<1x32x64xf32>
    %327 = vector.shape_cast %326 : vector<1x32x64xf32> to vector<32x64xf32>
    %cst_151 = arith.constant dense<0.000000e+00> : vector<8x64xf32>
    %328 = tpu.matmul %325, %327, %cst_151 {dimension_numbers = #tpu.dot_dimension_numbers<[1], [0], [0], [1], [0, 0, 1, 1], [], []>} : vector<8x32xf32>, vector<32x64xf32>, vector<8x64xf32> -> vector<8x64xf32>
    %c1_152 = arith.constant 1 : index
    %c0_153 = arith.constant 0 : index
    %c0_154 = arith.constant 0 : index
    %329 = vector.load %arg12[%c1_152, %c0_153, %c0_154] : memref<2x1x64xf32, #tpu.memory_space<vmem>>, vector<1x1x64xf32>
    %330 = vector.shape_cast %329 : vector<1x1x64xf32> to vector<1x64xf32>
    %331 = vector.broadcast %330 : vector<1x64xf32> to vector<8x64xf32>
    %332 = arith.addf %328, %331 : vector<8x64xf32>
    %333 = arith.mulf %332, %332 : vector<8x64xf32>
    %334 = arith.mulf %332, %333 : vector<8x64xf32>
    %cst_155 = arith.constant 4.471500e-02 : f32
    %335 = vector.broadcast %cst_155 : f32 to vector<8x64xf32>
    %336 = arith.mulf %335, %334 : vector<8x64xf32>
    %337 = arith.addf %332, %336 : vector<8x64xf32>
    %cst_156 = arith.constant 0.797884583 : f32
    %338 = vector.broadcast %cst_156 : f32 to vector<8x64xf32>
    %339 = arith.mulf %338, %337 : vector<8x64xf32>
    %340 = math.tanh %339 : vector<8x64xf32>
    %cst_157 = arith.constant 1.000000e+00 : f32
    %341 = vector.broadcast %cst_157 : f32 to vector<8x64xf32>
    %342 = arith.addf %341, %340 : vector<8x64xf32>
    %cst_158 = arith.constant 5.000000e-01 : f32
    %343 = vector.broadcast %cst_158 : f32 to vector<8x64xf32>
    %344 = arith.mulf %343, %342 : vector<8x64xf32>
    %345 = arith.mulf %332, %344 : vector<8x64xf32>
    %c1_159 = arith.constant 1 : index
    %c0_160 = arith.constant 0 : index
    %c0_161 = arith.constant 0 : index
    %346 = vector.load %arg13[%c1_159, %c0_160, %c0_161] : memref<2x64x32xf32, #tpu.memory_space<vmem>>, vector<1x64x32xf32>
    %347 = vector.shape_cast %346 : vector<1x64x32xf32> to vector<64x32xf32>
    %cst_162 = arith.constant dense<0.000000e+00> : vector<8x32xf32>
    %348 = tpu.matmul %345, %347, %cst_162 {dimension_numbers = #tpu.dot_dimension_numbers<[1], [0], [0], [1], [0, 0, 1, 1], [], []>} : vector<8x64xf32>, vector<64x32xf32>, vector<8x32xf32> -> vector<8x32xf32>
    %c1_163 = arith.constant 1 : index
    %c0_164 = arith.constant 0 : index
    %c0_165 = arith.constant 0 : index
    %349 = vector.load %arg14[%c1_163, %c0_164, %c0_165] : memref<2x1x32xf32, #tpu.memory_space<vmem>>, vector<1x1x32xf32>
    %350 = vector.shape_cast %349 : vector<1x1x32xf32> to vector<1x32xf32>
    %351 = vector.broadcast %350 : vector<1x32xf32> to vector<8x32xf32>
    %352 = arith.addf %348, %351 : vector<8x32xf32>
    %353 = arith.addf %352, %325 : vector<8x32xf32>
    %c1_166 = arith.constant 1 : index
    %c0_167 = arith.constant 0 : index
    %c0_168 = arith.constant 0 : index
    %354 = vector.load %arg15[%c1_166, %c0_167, %c0_168] : memref<2x1x32xf32, #tpu.memory_space<vmem>>, vector<1x1x32xf32>
    %355 = vector.shape_cast %354 : vector<1x1x32xf32> to vector<1x32xf32>
    %c1_169 = arith.constant 1 : index
    %c0_170 = arith.constant 0 : index
    %c0_171 = arith.constant 0 : index
    %356 = vector.load %arg16[%c1_169, %c0_170, %c0_171] : memref<2x1x32xf32, #tpu.memory_space<vmem>>, vector<1x1x32xf32>
    %357 = vector.shape_cast %356 : vector<1x1x32xf32> to vector<1x32xf32>
    %cst_172 = arith.constant dense<0.000000e+00> : vector<8xf32>
    %358 = vector.multi_reduction <add>, %353, %cst_172 [1] : vector<8x32xf32> to vector<8xf32>
    %359 = vector.shape_cast %358 : vector<8xf32> to vector<8x1xf32>
    %cst_173 = arith.constant 3.200000e+01 : f32
    %360 = vector.broadcast %cst_173 : f32 to vector<8x1xf32>
    %361 = arith.divf %359, %360 : vector<8x1xf32>
    %362 = vector.broadcast %361 : vector<8x1xf32> to vector<8x32xf32>
    %363 = arith.subf %353, %362 : vector<8x32xf32>
    %364 = arith.mulf %363, %363 : vector<8x32xf32>
    %cst_174 = arith.constant dense<0.000000e+00> : vector<8xf32>
    %365 = vector.multi_reduction <add>, %364, %cst_174 [1] : vector<8x32xf32> to vector<8xf32>
    %366 = vector.shape_cast %365 : vector<8xf32> to vector<8x1xf32>
    %cst_175 = arith.constant 3.200000e+01 : f32
    %367 = vector.broadcast %cst_175 : f32 to vector<8x1xf32>
    %368 = arith.divf %366, %367 : vector<8x1xf32>
    %369 = vector.broadcast %361 : vector<8x1xf32> to vector<8x32xf32>
    %370 = arith.subf %353, %369 : vector<8x32xf32>
    %cst_176 = arith.constant 9.99999974E-6 : f32
    %371 = vector.broadcast %cst_176 : f32 to vector<8x1xf32>
    %372 = arith.addf %368, %371 : vector<8x1xf32>
    %373 = math.rsqrt %372 : vector<8x1xf32>
    %374 = vector.broadcast %373 : vector<8x1xf32> to vector<8x32xf32>
    %375 = arith.mulf %370, %374 : vector<8x32xf32>
    %376 = vector.broadcast %355 : vector<1x32xf32> to vector<8x32xf32>
    %377 = arith.mulf %375, %376 : vector<8x32xf32>
    %378 = vector.broadcast %357 : vector<1x32xf32> to vector<8x32xf32>
    %379 = arith.addf %377, %378 : vector<8x32xf32>
    %380 = vector.extract_strided_slice %379 {offsets = [0, 0], sizes = [1, 32], strides = [1, 1]} : vector<8x32xf32> to vector<1x32xf32>
    %c0_177 = arith.constant 0 : index
    %c0_178 = arith.constant 0 : index
    %381 = vector.load %arg17[%c0_177, %c0_178] : memref<32x32xf32, #tpu.memory_space<vmem>>, vector<32x32xf32>
    %cst_179 = arith.constant dense<0.000000e+00> : vector<1x32xf32>
    %382 = tpu.matmul %380, %381, %cst_179 {dimension_numbers = #tpu.dot_dimension_numbers<[1], [0], [0], [1], [0, 0, 1, 1], [], []>} : vector<1x32xf32>, vector<32x32xf32>, vector<1x32xf32> -> vector<1x32xf32>
    %c0_180 = arith.constant 0 : index
    %c0_181 = arith.constant 0 : index
    %383 = vector.load %arg18[%c0_180, %c0_181] : memref<1x32xf32, #tpu.memory_space<vmem>>, vector<1x32xf32>
    %384 = arith.addf %382, %383 : vector<1x32xf32>
    %385 = math.tanh %384 : vector<1x32xf32>
    %c0_182 = arith.constant 0 : index
    %c0_183 = arith.constant 0 : index
    %386 = vector.load %arg19[%c0_182, %c0_183] : memref<32x3xf32, #tpu.memory_space<vmem>>, vector<32x3xf32>
    %cst_184 = arith.constant dense<0.000000e+00> : vector<1x3xf32>
    %387 = tpu.matmul %385, %386, %cst_184 {dimension_numbers = #tpu.dot_dimension_numbers<[1], [0], [0], [1], [0, 0, 1, 1], [], []>} : vector<1x32xf32>, vector<32x3xf32>, vector<1x3xf32> -> vector<1x3xf32>
    %c0_185 = arith.constant 0 : index
    %c0_186 = arith.constant 0 : index
    %388 = vector.load %arg20[%c0_185, %c0_186] : memref<1x3xf32, #tpu.memory_space<vmem>>, vector<1x3xf32>
    %389 = arith.addf %387, %388 : vector<1x3xf32>
    %c0_187 = arith.constant 0 : index
    %c0_188 = arith.constant 0 : index
    %c0_189 = arith.constant 0 : index
    %390 = vector.load %arg21[%c0_187, %c0_188, %c0_189] : memref<1x1x3xf32, #tpu.memory_space<vmem>>, vector<1x1x3xf32>
    %391 = vector.shape_cast %390 : vector<1x1x3xf32> to vector<1x3xf32>
    %392 = vector.shape_cast %389 : vector<1x3xf32> to vector<1x1x3xf32>
    tpu.vector_store %arg21[%c0_187, %c0_188, %c0_189], %392 {strides = array<i32>} : memref<1x1x3xf32, #tpu.memory_space<vmem>>, vector<1x1x3xf32>,
    return
  }
  func.func @transform_0(%arg0: i32) -> (i32, i32, i32) {
    %c0_i32 = arith.constant 0 : i32
    %c0_i32_0 = arith.constant 0 : i32
    %c0_i32_1 = arith.constant 0 : i32
    return %arg0, %c0_i32, %c0_i32_0 : i32, i32, i32
  }
  func.func @transform_1(%arg0: i32) -> (i32, i32, i32) {
    %c0_i32 = arith.constant 0 : i32
    %c0_i32_0 = arith.constant 0 : i32
    %c0_i32_1 = arith.constant 0 : i32
    return %arg0, %c0_i32, %c0_i32_0 : i32, i32, i32
  }
  func.func @transform_2(%arg0: i32) -> (i32, i32) {
    %c0_i32 = arith.constant 0 : i32
    %c0_i32_0 = arith.constant 0 : i32
    %c0_i32_1 = arith.constant 0 : i32
    return %c0_i32, %c0_i32_0 : i32, i32
  }
  func.func @transform_3(%arg0: i32) -> (i32, i32) {
    %c0_i32 = arith.constant 0 : i32
    %c0_i32_0 = arith.constant 0 : i32
    %c0_i32_1 = arith.constant 0 : i32
    return %c0_i32, %c0_i32_0 : i32, i32
  }
  func.func @transform_4(%arg0: i32) -> (i32, i32, i32) {
    %c0_i32 = arith.constant 0 : i32
    %c0_i32_0 = arith.constant 0 : i32
    %c0_i32_1 = arith.constant 0 : i32
    %c0_i32_2 = arith.constant 0 : i32
    return %c0_i32, %c0_i32_0, %c0_i32_1 : i32, i32, i32
  }
  func.func @transform_5(%arg0: i32) -> (i32, i32, i32) {
    %c0_i32 = arith.constant 0 : i32
    %c0_i32_0 = arith.constant 0 : i32
    %c0_i32_1 = arith.constant 0 : i32
    %c0_i32_2 = arith.constant 0 : i32
    return %c0_i32, %c0_i32_0, %c0_i32_1 : i32, i32, i32
  }
  func.func @transform_6(%arg0: i32) -> (i32, i32, i32) {
    %c0_i32 = arith.constant 0 : i32
    %c0_i32_0 = arith.constant 0 : i32
    %c0_i32_1 = arith.constant 0 : i32
    %c0_i32_2 = arith.constant 0 : i32
    return %c0_i32, %c0_i32_0, %c0_i32_1 : i32, i32, i32
  }
  func.func @transform_7(%arg0: i32) -> (i32, i32, i32) {
    %c0_i32 = arith.constant 0 : i32
    %c0_i32_0 = arith.constant 0 : i32
    %c0_i32_1 = arith.constant 0 : i32
    %c0_i32_2 = arith.constant 0 : i32
    return %c0_i32, %c0_i32_0, %c0_i32_1 : i32, i32, i32
  }
  func.func @transform_8(%arg0: i32) -> (i32, i32, i32) {
    %c0_i32 = arith.constant 0 : i32
    %c0_i32_0 = arith.constant 0 : i32
    %c0_i32_1 = arith.constant 0 : i32
    %c0_i32_2 = arith.constant 0 : i32
    return %c0_i32, %c0_i32_0, %c0_i32_1 : i32, i32, i32
  }
  func.func @transform_9(%arg0: i32) -> (i32, i32, i32) {
    %c0_i32 = arith.constant 0 : i32
    %c0_i32_0 = arith.constant 0 : i32
    %c0_i32_1 = arith.constant 0 : i32
    %c0_i32_2 = arith.constant 0 : i32
    return %c0_i32, %c0_i32_0, %c0_i32_1 : i32, i32, i32
  }
  func.func @transform_10(%arg0: i32) -> (i32, i32, i32) {
    %c0_i32 = arith.constant 0 : i32
    %c0_i32_0 = arith.constant 0 : i32
    %c0_i32_1 = arith.constant 0 : i32
    %c0_i32_2 = arith.constant 0 : i32
    return %c0_i32, %c0_i32_0, %c0_i32_1 : i32, i32, i32
  }
  func.func @transform_11(%arg0: i32) -> (i32, i32, i32) {
    %c0_i32 = arith.constant 0 : i32
    %c0_i32_0 = arith.constant 0 : i32
    %c0_i32_1 = arith.constant 0 : i32
    %c0_i32_2 = arith.constant 0 : i32
    return %c0_i32, %c0_i32_0, %c0_i32_1 : i32, i32, i32
  }
  func.func @transform_12(%arg0: i32) -> (i32, i32, i32) {
    %c0_i32 = arith.constant 0 : i32
    %c0_i32_0 = arith.constant 0 : i32
    %c0_i32_1 = arith.constant 0 : i32
    %c0_i32_2 = arith.constant 0 : i32
    return %c0_i32, %c0_i32_0, %c0_i32_1 : i32, i32, i32
  }
  func.func @transform_13(%arg0: i32) -> (i32, i32, i32) {
    %c0_i32 = arith.constant 0 : i32
    %c0_i32_0 = arith.constant 0 : i32
    %c0_i32_1 = arith.constant 0 : i32
    %c0_i32_2 = arith.constant 0 : i32
    return %c0_i32, %c0_i32_0, %c0_i32_1 : i32, i32, i32
  }
  func.func @transform_14(%arg0: i32) -> (i32, i32, i32) {
    %c0_i32 = arith.constant 0 : i32
    %c0_i32_0 = arith.constant 0 : i32
    %c0_i32_1 = arith.constant 0 : i32
    %c0_i32_2 = arith.constant 0 : i32
    return %c0_i32, %c0_i32_0, %c0_i32_1 : i32, i32, i32
  }
  func.func @transform_15(%arg0: i32) -> (i32, i32, i32) {
    %c0_i32 = arith.constant 0 : i32
    %c0_i32_0 = arith.constant 0 : i32
    %c0_i32_1 = arith.constant 0 : i32
    %c0_i32_2 = arith.constant 0 : i32
    return %c0_i32, %c0_i32_0, %c0_i32_1 : i32, i32, i32
  }
  func.func @transform_16(%arg0: i32) -> (i32, i32) {
    %c0_i32 = arith.constant 0 : i32
    %c0_i32_0 = arith.constant 0 : i32
    %c0_i32_1 = arith.constant 0 : i32
    return %c0_i32, %c0_i32_0 : i32, i32
  }
  func.func @transform_17(%arg0: i32) -> (i32, i32) {
    %c0_i32 = arith.constant 0 : i32
    %c0_i32_0 = arith.constant 0 : i32
    %c0_i32_1 = arith.constant 0 : i32
    return %c0_i32, %c0_i32_0 : i32, i32
  }
  func.func @transform_18(%arg0: i32) -> (i32, i32) {
    %c0_i32 = arith.constant 0 : i32
    %c0_i32_0 = arith.constant 0 : i32
    %c0_i32_1 = arith.constant 0 : i32
    return %c0_i32, %c0_i32_0 : i32, i32
  }
  func.func @transform_19(%arg0: i32) -> (i32, i32) {
    %c0_i32 = arith.constant 0 : i32
    %c0_i32_0 = arith.constant 0 : i32
    %c0_i32_1 = arith.constant 0 : i32
    return %c0_i32, %c0_i32_0 : i32, i32
  }
  func.func @transform_20(%arg0: i32) -> (i32, i32, i32) {
    %c0_i32 = arith.constant 0 : i32
    %c0_i32_0 = arith.constant 0 : i32
    %c0_i32_1 = arith.constant 0 : i32
    return %arg0, %c0_i32, %c0_i32_0 : i32, i32, i32
  }
}

</mosaic_0001>

<llo_original>
// kernel: roberta_classification_forward.1
$region0: #{roberta_classification_forward.1}
  #allocation0 [shape = 'u32[]', space=smem, size = 0x4, offset = 0x4, fixed_abs, tag = 'smem constant byte address 0x4 - core index']
  #allocation1 [shape = 'u32[144,128]{1,0:T(1,128)}', space=vmem, size = 0x12000, scoped, tag = 'internal scratch']
  #allocation2 [shape = 'f32[8,32]{1,0:T(8,128)}', space=vmem, size = 0x1000, scoped, tag = 'scratch operand']
  %s0 = inlined_call_operand.vmem [shape: f32[2,8,32], index: 0, kind: input, shape index: {}]
  %s1 = inlined_call_operand.vmem [shape: f32[2,1,8], index: 1, kind: input, shape index: {}]
  %s2 = inlined_call_operand.vmem [shape: f32[1,32], index: 2, kind: input, shape index: {}]
  %s3 = inlined_call_operand.vmem [shape: f32[1,32], index: 3, kind: input, shape index: {}]
  %s4 = inlined_call_operand.vmem [shape: f32[2,32,96], index: 4, kind: input, shape index: {}]
  %s5 = inlined_call_operand.vmem [shape: f32[2,1,96], index: 5, kind: input, shape index: {}]
  %s6 = inlined_call_operand.vmem [shape: f32[2,32,32], index: 6, kind: input, shape index: {}]
  %s7 = inlined_call_operand.vmem [shape: f32[2,1,32], index: 7, kind: input, shape index: {}]
  %s8 = inlined_call_operand.vmem [shape: f32[2,1,32], index: 8, kind: input, shape index: {}]
  %s9 = inlined_call_operand.vmem [shape: f32[2,1,32], index: 9, kind: input, shape index: {}]
  %s10 = inlined_call_operand.vmem [shape: f32[2,32,64], index: 10, kind: input, shape index: {}]
  %s11 = inlined_call_operand.vmem [shape: f32[2,1,64], index: 11, kind: input, shape index: {}]
  %s12 = inlined_call_operand.vmem [shape: f32[2,64,32], index: 12, kind: input, shape index: {}]
  %s13 = inlined_call_operand.vmem [shape: f32[2,1,32], index: 13, kind: input, shape index: {}]
  %s14 = inlined_call_operand.vmem [shape: f32[2,1,32], index: 14, kind: input, shape index: {}]
  %s15 = inlined_call_operand.vmem [shape: f32[2,1,32], index: 15, kind: input, shape index: {}]
  %s16 = inlined_call_operand.vmem [shape: f32[32,32], index: 16, kind: input, shape index: {}]
  %s17 = inlined_call_operand.vmem [shape: f32[1,32], index: 17, kind: input, shape index: {}]
  %s18 = inlined_call_operand.vmem [shape: f32[32,3], index: 18, kind: input, shape index: {}]
  %s19 = inlined_call_operand.vmem [shape: f32[1,3], index: 19, kind: input, shape index: {}]
  %s20 = inlined_call_operand.hbm [shape: f32[2,1,3], index: 20, kind: output, shape index: {}]
  %s21 = sld [smem:[#allocation0]]
  $region113: #{roberta_classification_forward.1} parent=0
    _
  %s23 = ssub.s32 1, %s21
  %s24 = scalar_select 0, %s23, %s21
  $region1: #{roberta_classification_forward.1} parent=0
    #allocation3 [shape = 'u8[1024]{0}', space=vmem, size = 0x400, scoped, tag = 'output window, operand 0']
    #allocation4 [shape = 's32[2]{0}', space=sflag, size = 0x8, scoped, tag = 'scoped memory for roberta_classification_forward.1']
    %25 = vsyncpa [#allocation4], 0
    %s26 = scalar_lea.sflag [#allocation4], 1
    %27 = vsyncpa %s26, 0
    loop: start=0, step=1, limit=4
    $region2: #{roberta_classification_forward.1} parent=1 // loop_pre_header
      _
    $region3: #{roberta_classification_forward.1} parent=1 // loop_header
      %s29 = sphi 0, %s33
      %p30 = scmp.ge.s32.totalorder %s29, 4
      %s39 = sphi 0, %s41
      %s42 = sphi 0, %s39
      %s43 = sphi 0, %s42
      %s59 = sphi 0, %s43
      %s65 = sphi 0, %s67
      %s68 = sphi 0, %s65
      %s69 = sphi 0, %s68
      %s85 = sphi 0, %s69
      %s89 = sphi 0, %s89
      %s91 = sphi 0, %s89
      %s92 = sphi 0, %s91
      %s106 = sphi 0, %s92
      %s110 = sphi 0, %s110
      %s112 = sphi 0, %s110
      %s113 = sphi 0, %s112
      %s127 = sphi 0, %s113
      %s131 = sphi 0, %s131
      %s133 = sphi 0, %s131
      %s134 = sphi 0, %s133
      %s148 = sphi 0, %s134
      %s152 = sphi 0, %s152
      %s154 = sphi 0, %s152
      %s155 = sphi 0, %s154
      %s169 = sphi 0, %s155
      %s173 = sphi 0, %s173
      %s175 = sphi 0, %s173
      %s176 = sphi 0, %s175
      %s190 = sphi 0, %s176
      %s194 = sphi 0, %s194
      %s196 = sphi 0, %s194
      %s197 = sphi 0, %s196
      %s211 = sphi 0, %s197
      %s215 = sphi 0, %s215
      %s217 = sphi 0, %s215
      %s218 = sphi 0, %s217
      %s232 = sphi 0, %s218
      %s236 = sphi 0, %s236
      %s238 = sphi 0, %s236
      %s239 = sphi 0, %s238
      %s253 = sphi 0, %s239
      %s257 = sphi 0, %s257
      %s259 = sphi 0, %s257
      %s260 = sphi 0, %s259
      %s274 = sphi 0, %s260
      %s278 = sphi 0, %s278
      %s280 = sphi 0, %s278
      %s281 = sphi 0, %s280
      %s295 = sphi 0, %s281
      %s299 = sphi 0, %s299
      %s301 = sphi 0, %s299
      %s302 = sphi 0, %s301
      %s316 = sphi 0, %s302
      %s320 = sphi 0, %s320
      %s322 = sphi 0, %s320
      %s323 = sphi 0, %s322
      %s337 = sphi 0, %s323
      %s341 = sphi 0, %s341
      %s343 = sphi 0, %s341
      %s344 = sphi 0, %s343
      %s358 = sphi 0, %s344
      %s362 = sphi 0, %s362
      %s364 = sphi 0, %s362
      %s365 = sphi 0, %s364
      %s379 = sphi 0, %s365
      %s383 = sphi 0, %s383
      %s385 = sphi 0, %s383
      %s386 = sphi 0, %s385
      %s400 = sphi 0, %s386
      %s404 = sphi 0, %s404
      %s406 = sphi 0, %s404
      %s407 = sphi 0, %s406
      %s421 = sphi 0, %s407
      %s425 = sphi 0, %s425
      %s427 = sphi 0, %s425
      %s428 = sphi 0, %s427
      %s442 = sphi 0, %s428
      %s446 = sphi 0, %s446
      %s448 = sphi 0, %s446
      %s449 = sphi 0, %s448
      %s463 = sphi 0, %s449
      %s469 = sphi 0, %s471
      %s472 = sphi 0, %s469
      %s473 = sphi 0, %s472
      %s489 = sphi 0, %s473
    $region4: #{roberta_classification_forward.1} parent=1 // loop_header_branch
      %32 = sbr.rel (%p30) target = $region8
    $region5: #{roberta_classification_forward.1} parent=1 // loop_body
      %s34 = ssub.s32 %s29, 1
      %s35 = ssub.s32 %s29, 2
      %s36 = sadd.s32 %s29, 1
      %s37 = ssub.s32 %s29, %s36
      %p38 = scmp.eq.s32.totalorder %s37, 0
      %s40 = sadd.s32 %s39, 1
      %s41 = scalar_select %p38, %s39, %s40
      %p44 = pneg %p38
      %p45 = scmp.eq.s32.totalorder %s29, 1
      %p46 = por %p44, %p45
      %p47 = scmp.ne.s32.totalorder %s39, %s42
      %p48 = scmp.eq.s32.totalorder %s29, 0
      %p49 = por %p47, %p48
      %p50 = scmp.ne.s32.totalorder %s39, %s42
      %p51 = scmp.eq.s32.totalorder %s34, 1
      %p52 = por %p50, %p51
      %p53 = scmp.ne.s32.totalorder %s42, %s43
      %p54 = scmp.eq.s32.totalorder %s34, 0
      %p55 = por %p53, %p54
      %p56 = scmp.ne.s32.totalorder %s42, %s43
      %p57 = scmp.eq.s32.totalorder %s35, 1
      %p58 = por %p56, %p57
      %p60 = scmp.ne.s32.totalorder %s43, %s59
      %p61 = scmp.eq.s32.totalorder %s35, 0
      %p62 = por %p60, %p61
      %s63 = ssub.s32 %s29, %s36
      %p64 = scmp.eq.s32.totalorder %s63, 0
      %s66 = sadd.s32 %s65, 1
      %s67 = scalar_select %p64, %s65, %s66
      %p70 = pneg %p64
      %p71 = scmp.eq.s32.totalorder %s29, 1
      %p72 = por %p70, %p71
      %p73 = scmp.ne.s32.totalorder %s65, %s68
      %p74 = scmp.eq.s32.totalorder %s29, 0
      %p75 = por %p73, %p74
      %p76 = scmp.ne.s32.totalorder %s65, %s68
      %p77 = scmp.eq.s32.totalorder %s34, 1
      %p78 = por %p76, %p77
      %p79 = scmp.ne.s32.totalorder %s68, %s69
      %p80 = scmp.eq.s32.totalorder %s34, 0
      %p81 = por %p79, %p80
      %p82 = scmp.ne.s32.totalorder %s68, %s69
      %p83 = scmp.eq.s32.totalorder %s35, 1
      %p84 = por %p82, %p83
      %p86 = scmp.ne.s32.totalorder %s69, %s85
      %p87 = scmp.eq.s32.totalorder %s35, 0
      %p88 = por %p86, %p87
      %s90 = sadd.s32 %s89, 1
      %p93 = scmp.eq.s32.totalorder %s29, 1
      %p94 = scmp.ne.s32.totalorder %s89, %s91
      %p95 = scmp.eq.s32.totalorder %s29, 0
      %p96 = por %p94, %p95
      %p97 = scmp.ne.s32.totalorder %s89, %s91
      %p98 = scmp.eq.s32.totalorder %s34, 1
      %p99 = por %p97, %p98
      %p100 = scmp.ne.s32.totalorder %s91, %s92
      %p101 = scmp.eq.s32.totalorder %s34, 0
      %p102 = por %p100, %p101
      %p103 = scmp.ne.s32.totalorder %s91, %s92
      %p104 = scmp.eq.s32.totalorder %s35, 1
      %p105 = por %p103, %p104
      %p107 = scmp.ne.s32.totalorder %s92, %s106
      %p108 = scmp.eq.s32.totalorder %s35, 0
      %p109 = por %p107, %p108
      %s111 = sadd.s32 %s110, 1
      %p114 = scmp.eq.s32.totalorder %s29, 1
      %p115 = scmp.ne.s32.totalorder %s110, %s112
      %p116 = scmp.eq.s32.totalorder %s29, 0
      %p117 = por %p115, %p116
      %p118 = scmp.ne.s32.totalorder %s110, %s112
      %p119 = scmp.eq.s32.totalorder %s34, 1
      %p120 = por %p118, %p119
      %p121 = scmp.ne.s32.totalorder %s112, %s113
      %p122 = scmp.eq.s32.totalorder %s34, 0
      %p123 = por %p121, %p122
      %p124 = scmp.ne.s32.totalorder %s112, %s113
      %p125 = scmp.eq.s32.totalorder %s35, 1
      %p126 = por %p124, %p125
      %p128 = scmp.ne.s32.totalorder %s113, %s127
      %p129 = scmp.eq.s32.totalorder %s35, 0
      %p130 = por %p128, %p129
      %s132 = sadd.s32 %s131, 1
      %p135 = scmp.eq.s32.totalorder %s29, 1
      %p136 = scmp.ne.s32.totalorder %s131, %s133
      %p137 = scmp.eq.s32.totalorder %s29, 0
      %p138 = por %p136, %p137
      %p139 = scmp.ne.s32.totalorder %s131, %s133
      %p140 = scmp.eq.s32.totalorder %s34, 1
      %p141 = por %p139, %p140
      %p142 = scmp.ne.s32.totalorder %s133, %s134
      %p143 = scmp.eq.s32.totalorder %s34, 0
      %p144 = por %p142, %p143
      %p145 = scmp.ne.s32.totalorder %s133, %s134
      %p146 = scmp.eq.s32.totalorder %s35, 1
      %p147 = por %p145, %p146
      %p149 = scmp.ne.s32.totalorder %s134, %s148
      %p150 = scmp.eq.s32.totalorder %s35, 0
      %p151 = por %p149, %p150
      %s153 = sadd.s32 %s152, 1
      %p156 = scmp.eq.s32.totalorder %s29, 1
      %p157 = scmp.ne.s32.totalorder %s152, %s154
      %p158 = scmp.eq.s32.totalorder %s29, 0
      %p159 = por %p157, %p158
      %p160 = scmp.ne.s32.totalorder %s152, %s154
      %p161 = scmp.eq.s32.totalorder %s34, 1
      %p162 = por %p160, %p161
      %p163 = scmp.ne.s32.totalorder %s154, %s155
      %p164 = scmp.eq.s32.totalorder %s34, 0
      %p165 = por %p163, %p164
      %p166 = scmp.ne.s32.totalorder %s154, %s155
      %p167 = scmp.eq.s32.totalorder %s35, 1
      %p168 = por %p166, %p167
      %p170 = scmp.ne.s32.totalorder %s155, %s169
      %p171 = scmp.eq.s32.totalorder %s35, 0
      %p172 = por %p170, %p171
      %s174 = sadd.s32 %s173, 1
      %p177 = scmp.eq.s32.totalorder %s29, 1
      %p178 = scmp.ne.s32.totalorder %s173, %s175
      %p179 = scmp.eq.s32.totalorder %s29, 0
      %p180 = por %p178, %p179
      %p181 = scmp.ne.s32.totalorder %s173, %s175
      %p182 = scmp.eq.s32.totalorder %s34, 1
      %p183 = por %p181, %p182
      %p184 = scmp.ne.s32.totalorder %s175, %s176
      %p185 = scmp.eq.s32.totalorder %s34, 0
      %p186 = por %p184, %p185
      %p187 = scmp.ne.s32.totalorder %s175, %s176
      %p188 = scmp.eq.s32.totalorder %s35, 1
      %p189 = por %p187, %p188
      %p191 = scmp.ne.s32.totalorder %s176, %s190
      %p192 = scmp.eq.s32.totalorder %s35, 0
      %p193 = por %p191, %p192
      %s195 = sadd.s32 %s194, 1
      %p198 = scmp.eq.s32.totalorder %s29, 1
      %p199 = scmp.ne.s32.totalorder %s194, %s196
      %p200 = scmp.eq.s32.totalorder %s29, 0
      %p201 = por %p199, %p200
      %p202 = scmp.ne.s32.totalorder %s194, %s196
      %p203 = scmp.eq.s32.totalorder %s34, 1
      %p204 = por %p202, %p203
      %p205 = scmp.ne.s32.totalorder %s196, %s197
      %p206 = scmp.eq.s32.totalorder %s34, 0
      %p207 = por %p205, %p206
      %p208 = scmp.ne.s32.totalorder %s196, %s197
      %p209 = scmp.eq.s32.totalorder %s35, 1
      %p210 = por %p208, %p209
      %p212 = scmp.ne.s32.totalorder %s197, %s211
      %p213 = scmp.eq.s32.totalorder %s35, 0
      %p214 = por %p212, %p213
      %s216 = sadd.s32 %s215, 1
      %p219 = scmp.eq.s32.totalorder %s29, 1
      %p220 = scmp.ne.s32.totalorder %s215, %s217
      %p221 = scmp.eq.s32.totalorder %s29, 0
      %p222 = por %p220, %p221
      %p223 = scmp.ne.s32.totalorder %s215, %s217
      %p224 = scmp.eq.s32.totalorder %s34, 1
      %p225 = por %p223, %p224
      %p226 = scmp.ne.s32.totalorder %s217, %s218
      %p227 = scmp.eq.s32.totalorder %s34, 0
      %p228 = por %p226, %p227
      %p229 = scmp.ne.s32.totalorder %s217, %s218
      %p230 = scmp.eq.s32.totalorder %s35, 1
      %p231 = por %p229, %p230
      %p233 = scmp.ne.s32.totalorder %s218, %s232
      %p234 = scmp.eq.s32.totalorder %s35, 0
      %p235 = por %p233, %p234
      %s237 = sadd.s32 %s236, 1
      %p240 = scmp.eq.s32.totalorder %s29, 1
      %p241 = scmp.ne.s32.totalorder %s236, %s238
      %p242 = scmp.eq.s32.totalorder %s29, 0
      %p243 = por %p241, %p242
      %p244 = scmp.ne.s32.totalorder %s236, %s238
      %p245 = scmp.eq.s32.totalorder %s34, 1
      %p246 = por %p244, %p245
      %p247 = scmp.ne.s32.totalorder %s238, %s239
      %p248 = scmp.eq.s32.totalorder %s34, 0
      %p249 = por %p247, %p248
      %p250 = scmp.ne.s32.totalorder %s238, %s239
      %p251 = scmp.eq.s32.totalorder %s35, 1
      %p252 = por %p250, %p251
      %p254 = scmp.ne.s32.totalorder %s239, %s253
      %p255 = scmp.eq.s32.totalorder %s35, 0
      %p256 = por %p254, %p255
      %s258 = sadd.s32 %s257, 1
      %p261 = scmp.eq.s32.totalorder %s29, 1
      %p262 = scmp.ne.s32.totalorder %s257, %s259
      %p263 = scmp.eq.s32.totalorder %s29, 0
      %p264 = por %p262, %p263
      %p265 = scmp.ne.s32.totalorder %s257, %s259
      %p266 = scmp.eq.s32.totalorder %s34, 1
      %p267 = por %p265, %p266
      %p268 = scmp.ne.s32.totalorder %s259, %s260
      %p269 = scmp.eq.s32.totalorder %s34, 0
      %p270 = por %p268, %p269
      %p271 = scmp.ne.s32.totalorder %s259, %s260
      %p272 = scmp.eq.s32.totalorder %s35, 1
      %p273 = por %p271, %p272
      %p275 = scmp.ne.s32.totalorder %s260, %s274
      %p276 = scmp.eq.s32.totalorder %s35, 0
      %p277 = por %p275, %p276
      %s279 = sadd.s32 %s278, 1
      %p282 = scmp.eq.s32.totalorder %s29, 1
      %p283 = scmp.ne.s32.totalorder %s278, %s280
      %p284 = scmp.eq.s32.totalorder %s29, 0
      %p285 = por %p283, %p284
      %p286 = scmp.ne.s32.totalorder %s278, %s280
      %p287 = scmp.eq.s32.totalorder %s34, 1
      %p288 = por %p286, %p287
      %p289 = scmp.ne.s32.totalorder %s280, %s281
      %p290 = scmp.eq.s32.totalorder %s34, 0
      %p291 = por %p289, %p290
      %p292 = scmp.ne.s32.totalorder %s280, %s281
      %p293 = scmp.eq.s32.totalorder %s35, 1
      %p294 = por %p292, %p293
      %p296 = scmp.ne.s32.totalorder %s281, %s295
      %p297 = scmp.eq.s32.totalorder %s35, 0
      %p298 = por %p296, %p297
      %s300 = sadd.s32 %s299, 1
      %p303 = scmp.eq.s32.totalorder %s29, 1
      %p304 = scmp.ne.s32.totalorder %s299, %s301
      %p305 = scmp.eq.s32.totalorder %s29, 0
      %p306 = por %p304, %p305
      %p307 = scmp.ne.s32.totalorder %s299, %s301
      %p308 = scmp.eq.s32.totalorder %s34, 1
      %p309 = por %p307, %p308
      %p310 = scmp.ne.s32.totalorder %s301, %s302
      %p311 = scmp.eq.s32.totalorder %s34, 0
      %p312 = por %p310, %p311
      %p313 = scmp.ne.s32.totalorder %s301, %s302
      %p314 = scmp.eq.s32.totalorder %s35, 1
      %p315 = por %p313, %p314
      %p317 = scmp.ne.s32.totalorder %s302, %s316
      %p318 = scmp.eq.s32.totalorder %s35, 0
      %p319 = por %p317, %p318
      %s321 = sadd.s32 %s320, 1
      %p324 = scmp.eq.s32.totalorder %s29, 1
      %p325 = scmp.ne.s32.totalorder %s320, %s322
      %p326 = scmp.eq.s32.totalorder %s29, 0
      %p327 = por %p325, %p326
      %p328 = scmp.ne.s32.totalorder %s320, %s322
      %p329 = scmp.eq.s32.totalorder %s34, 1
      %p330 = por %p328, %p329
      %p331 = scmp.ne.s32.totalorder %s322, %s323
      %p332 = scmp.eq.s32.totalorder %s34, 0
      %p333 = por %p331, %p332
      %p334 = scmp.ne.s32.totalorder %s322, %s323
      %p335 = scmp.eq.s32.totalorder %s35, 1
      %p336 = por %p334, %p335
      %p338 = scmp.ne.s32.totalorder %s323, %s337
      %p339 = scmp.eq.s32.totalorder %s35, 0
      %p340 = por %p338, %p339
      %s342 = sadd.s32 %s341, 1
      %p345 = scmp.eq.s32.totalorder %s29, 1
      %p346 = scmp.ne.s32.totalorder %s341, %s343
      %p347 = scmp.eq.s32.totalorder %s29, 0
      %p348 = por %p346, %p347
      %p349 = scmp.ne.s32.totalorder %s341, %s343
      %p350 = scmp.eq.s32.totalorder %s34, 1
      %p351 = por %p349, %p350
      %p352 = scmp.ne.s32.totalorder %s343, %s344
      %p353 = scmp.eq.s32.totalorder %s34, 0
      %p354 = por %p352, %p353
      %p355 = scmp.ne.s32.totalorder %s343, %s344
      %p356 = scmp.eq.s32.totalorder %s35, 1
      %p357 = por %p355, %p356
      %p359 = scmp.ne.s32.totalorder %s344, %s358
      %p360 = scmp.eq.s32.totalorder %s35, 0
      %p361 = por %p359, %p360
      %s363 = sadd.s32 %s362, 1
      %p366 = scmp.eq.s32.totalorder %s29, 1
      %p367 = scmp.ne.s32.totalorder %s362, %s364
      %p368 = scmp.eq.s32.totalorder %s29, 0
      %p369 = por %p367, %p368
      %p370 = scmp.ne.s32.totalorder %s362, %s364
      %p371 = scmp.eq.s32.totalorder %s34, 1
      %p372 = por %p370, %p371
      %p373 = scmp.ne.s32.totalorder %s364, %s365
      %p374 = scmp.eq.s32.totalorder %s34, 0
      %p375 = por %p373, %p374
      %p376 = scmp.ne.s32.totalorder %s364, %s365
      %p377 = scmp.eq.s32.totalorder %s35, 1
      %p378 = por %p376, %p377
      %p380 = scmp.ne.s32.totalorder %s365, %s379
      %p381 = scmp.eq.s32.totalorder %s35, 0
      %p382 = por %p380, %p381
      %s384 = sadd.s32 %s383, 1
      %p387 = scmp.eq.s32.totalorder %s29, 1
      %p388 = scmp.ne.s32.totalorder %s383, %s385
      %p389 = scmp.eq.s32.totalorder %s29, 0
      %p390 = por %p388, %p389
      %p391 = scmp.ne.s32.totalorder %s383, %s385
      %p392 = scmp.eq.s32.totalorder %s34, 1
      %p393 = por %p391, %p392
      %p394 = scmp.ne.s32.totalorder %s385, %s386
      %p395 = scmp.eq.s32.totalorder %s34, 0
      %p396 = por %p394, %p395
      %p397 = scmp.ne.s32.totalorder %s385, %s386
      %p398 = scmp.eq.s32.totalorder %s35, 1
      %p399 = por %p397, %p398
      %p401 = scmp.ne.s32.totalorder %s386, %s400
      %p402 = scmp.eq.s32.totalorder %s35, 0
      %p403 = por %p401, %p402
      %s405 = sadd.s32 %s404, 1
      %p408 = scmp.eq.s32.totalorder %s29, 1
      %p409 = scmp.ne.s32.totalorder %s404, %s406
      %p410 = scmp.eq.s32.totalorder %s29, 0
      %p411 = por %p409, %p410
      %p412 = scmp.ne.s32.totalorder %s404, %s406
      %p413 = scmp.eq.s32.totalorder %s34, 1
      %p414 = por %p412, %p413
      %p415 = scmp.ne.s32.totalorder %s406, %s407
      %p416 = scmp.eq.s32.totalorder %s34, 0
      %p417 = por %p415, %p416
      %p418 = scmp.ne.s32.totalorder %s406, %s407
      %p419 = scmp.eq.s32.totalorder %s35, 1
      %p420 = por %p418, %p419
      %p422 = scmp.ne.s32.totalorder %s407, %s421
      %p423 = scmp.eq.s32.totalorder %s35, 0
      %p424 = por %p422, %p423
      %s426 = sadd.s32 %s425, 1
      %p429 = scmp.eq.s32.totalorder %s29, 1
      %p430 = scmp.ne.s32.totalorder %s425, %s427
      %p431 = scmp.eq.s32.totalorder %s29, 0
      %p432 = por %p430, %p431
      %p433 = scmp.ne.s32.totalorder %s425, %s427
      %p434 = scmp.eq.s32.totalorder %s34, 1
      %p435 = por %p433, %p434
      %p436 = scmp.ne.s32.totalorder %s427, %s428
      %p437 = scmp.eq.s32.totalorder %s34, 0
      %p438 = por %p436, %p437
      %p439 = scmp.ne.s32.totalorder %s427, %s428
      %p440 = scmp.eq.s32.totalorder %s35, 1
      %p441 = por %p439, %p440
      %p443 = scmp.ne.s32.totalorder %s428, %s442
      %p444 = scmp.eq.s32.totalorder %s35, 0
      %p445 = por %p443, %p444
      %s447 = sadd.s32 %s446, 1
      %p450 = scmp.eq.s32.totalorder %s29, 1
      %p451 = scmp.ne.s32.totalorder %s446, %s448
      %p452 = scmp.eq.s32.totalorder %s29, 0
      %p453 = por %p451, %p452
      %p454 = scmp.ne.s32.totalorder %s446, %s448
      %p455 = scmp.eq.s32.totalorder %s34, 1
      %p456 = por %p454, %p455
      %p457 = scmp.ne.s32.totalorder %s448, %s449
      %p458 = scmp.eq.s32.totalorder %s34, 0
      %p459 = por %p457, %p458
      %p460 = scmp.ne.s32.totalorder %s448, %s449
      %p461 = scmp.eq.s32.totalorder %s35, 1
      %p462 = por %p460, %p461
      %p464 = scmp.ne.s32.totalorder %s449, %s463
      %p465 = scmp.eq.s32.totalorder %s35, 0
      %p466 = por %p464, %p465
      %s467 = ssub.s32 %s29, %s36
      %p468 = scmp.eq.s32.totalorder %s467, 0
      %s470 = sadd.s32 %s469, 1
      %s471 = scalar_select %p468, %s469, %s470
      %p474 = pneg %p468
      %p475 = scmp.eq.s32.totalorder %s29, 1
      %p476 = por %p474, %p475
      %p477 = scmp.ne.s32.totalorder %s469, %s472
      %p478 = scmp.eq.s32.totalorder %s29, 0
      %p479 = por %p477, %p478
      %p480 = scmp.ne.s32.totalorder %s469, %s472
      %p481 = scmp.eq.s32.totalorder %s34, 1
      %p482 = por %p480, %p481
      %p483 = scmp.ne.s32.totalorder %s472, %s473
      %p484 = scmp.eq.s32.totalorder %s34, 0
      %p485 = por %p483, %p484
      %p486 = scmp.ne.s32.totalorder %s472, %s473
      %p487 = scmp.eq.s32.totalorder %s35, 1
      %p488 = por %p486, %p487
      %p490 = scmp.ne.s32.totalorder %s473, %s489
      %p491 = scmp.eq.s32.totalorder %s35, 0
      %p492 = por %p490, %p491
      %p493 = scmp.le.s32.totalorder 1, %s29
      %p494 = scmp.lt.s32.totalorder %s29, 3
      %p495 = pnand %p493, %p494
      %p496 = pneg %p495
      // Predicated region
      $region9: #{roberta_classification_forward.1} parent=5 // pred_check
        _
      $region10: #{roberta_classification_forward.1} parent=5 // pred_check_branch
        %498 = sbr.rel (%p495) target = $region12
      $region11: #{roberta_classification_forward.1} parent=5 // pred_region
        %s499 = ssub.s32 %s29, 1
        // Predicated region
        $region13: #{roberta_classification_forward.1} parent=11 // pred_check
          %p500 = pneg %p102
        $region14: #{roberta_classification_forward.1} parent=11 // pred_check_branch
          %502 = sbr.rel (%p500) target = $region16
        $region15: #{roberta_classification_forward.1} parent=11 // pred_region
          _
        $region16: #{roberta_classification_forward.1} parent=11 // pred_fallthru
          _
        // Predicated region
        $region17: #{roberta_classification_forward.1} parent=11 // pred_check
          %p503 = pneg %p123
        $region18: #{roberta_classification_forward.1} parent=11 // pred_check_branch
          %505 = sbr.rel (%p503) target = $region20
        $region19: #{roberta_classification_forward.1} parent=11 // pred_region
          _
        $region20: #{roberta_classification_forward.1} parent=11 // pred_fallthru
          _
        // Predicated region
        $region21: #{roberta_classification_forward.1} parent=11 // pred_check
          %p506 = pneg %p144
        $region22: #{roberta_classification_forward.1} parent=11 // pred_check_branch
          %508 = sbr.rel (%p506) target = $region24
        $region23: #{roberta_classification_forward.1} parent=11 // pred_region
          _
        $region24: #{roberta_classification_forward.1} parent=11 // pred_fallthru
          _
        // Predicated region
        $region25: #{roberta_classification_forward.1} parent=11 // pred_check
          %p509 = pneg %p165
        $region26: #{roberta_classification_forward.1} parent=11 // pred_check_branch
          %511 = sbr.rel (%p509) target = $region28
        $region27: #{roberta_classification_forward.1} parent=11 // pred_region
          _
        $region28: #{roberta_classification_forward.1} parent=11 // pred_fallthru
          _
        // Predicated region
        $region29: #{roberta_classification_forward.1} parent=11 // pred_check
          %p512 = pneg %p186
        $region30: #{roberta_classification_forward.1} parent=11 // pred_check_branch
          %514 = sbr.rel (%p512) target = $region32
        $region31: #{roberta_classification_forward.1} parent=11 // pred_region
          _
        $region32: #{roberta_classification_forward.1} parent=11 // pred_fallthru
          _
        // Predicated region
        $region33: #{roberta_classification_forward.1} parent=11 // pred_check
          %p515 = pneg %p207
        $region34: #{roberta_classification_forward.1} parent=11 // pred_check_branch
          %517 = sbr.rel (%p515) target = $region36
        $region35: #{roberta_classification_forward.1} parent=11 // pred_region
          _
        $region36: #{roberta_classification_forward.1} parent=11 // pred_fallthru
          _
        // Predicated region
        $region37: #{roberta_classification_forward.1} parent=11 // pred_check
          %p518 = pneg %p228
        $region38: #{roberta_classification_forward.1} parent=11 // pred_check_branch
          %520 = sbr.rel (%p518) target = $region40
        $region39: #{roberta_classification_forward.1} parent=11 // pred_region
          _
        $region40: #{roberta_classification_forward.1} parent=11 // pred_fallthru
          _
        // Predicated region
        $region41: #{roberta_classification_forward.1} parent=11 // pred_check
          %p521 = pneg %p249
        $region42: #{roberta_classification_forward.1} parent=11 // pred_check_branch
          %523 = sbr.rel (%p521) target = $region44
        $region43: #{roberta_classification_forward.1} parent=11 // pred_region
          _
        $region44: #{roberta_classification_forward.1} parent=11 // pred_fallthru
          _
        // Predicated region
        $region45: #{roberta_classification_forward.1} parent=11 // pred_check
          %p524 = pneg %p270
        $region46: #{roberta_classification_forward.1} parent=11 // pred_check_branch
          %526 = sbr.rel (%p524) target = $region48
        $region47: #{roberta_classification_forward.1} parent=11 // pred_region
          _
        $region48: #{roberta_classification_forward.1} parent=11 // pred_fallthru
          _
        // Predicated region
        $region49: #{roberta_classification_forward.1} parent=11 // pred_check
          %p527 = pneg %p291
        $region50: #{roberta_classification_forward.1} parent=11 // pred_check_branch
          %529 = sbr.rel (%p527) target = $region52
        $region51: #{roberta_classification_forward.1} parent=11 // pred_region
          _
        $region52: #{roberta_classification_forward.1} parent=11 // pred_fallthru
          _
        // Predicated region
        $region53: #{roberta_classification_forward.1} parent=11 // pred_check
          %p530 = pneg %p312
        $region54: #{roberta_classification_forward.1} parent=11 // pred_check_branch
          %532 = sbr.rel (%p530) target = $region56
        $region55: #{roberta_classification_forward.1} parent=11 // pred_region
          _
        $region56: #{roberta_classification_forward.1} parent=11 // pred_fallthru
          _
        // Predicated region
        $region57: #{roberta_classification_forward.1} parent=11 // pred_check
          %p533 = pneg %p333
        $region58: #{roberta_classification_forward.1} parent=11 // pred_check_branch
          %535 = sbr.rel (%p533) target = $region60
        $region59: #{roberta_classification_forward.1} parent=11 // pred_region
          _
        $region60: #{roberta_classification_forward.1} parent=11 // pred_fallthru
          _
        // Predicated region
        $region61: #{roberta_classification_forward.1} parent=11 // pred_check
          %p536 = pneg %p354
        $region62: #{roberta_classification_forward.1} parent=11 // pred_check_branch
          %538 = sbr.rel (%p536) target = $region64
        $region63: #{roberta_classification_forward.1} parent=11 // pred_region
          _
        $region64: #{roberta_classification_forward.1} parent=11 // pred_fallthru
          _
        // Predicated region
        $region65: #{roberta_classification_forward.1} parent=11 // pred_check
          %p539 = pneg %p375
        $region66: #{roberta_classification_forward.1} parent=11 // pred_check_branch
          %541 = sbr.rel (%p539) target = $region68
        $region67: #{roberta_classification_forward.1} parent=11 // pred_region
          _
        $region68: #{roberta_classification_forward.1} parent=11 // pred_fallthru
          _
        // Predicated region
        $region69: #{roberta_classification_forward.1} parent=11 // pred_check
          %p542 = pneg %p396
        $region70: #{roberta_classification_forward.1} parent=11 // pred_check_branch
          %544 = sbr.rel (%p542) target = $region72
        $region71: #{roberta_classification_forward.1} parent=11 // pred_region
          _
        $region72: #{roberta_classification_forward.1} parent=11 // pred_fallthru
          _
        // Predicated region
        $region73: #{roberta_classification_forward.1} parent=11 // pred_check
          %p545 = pneg %p417
        $region74: #{roberta_classification_forward.1} parent=11 // pred_check_branch
          %547 = sbr.rel (%p545) target = $region76
        $region75: #{roberta_classification_forward.1} parent=11 // pred_region
          _
        $region76: #{roberta_classification_forward.1} parent=11 // pred_fallthru
          _
        // Predicated region
        $region77: #{roberta_classification_forward.1} parent=11 // pred_check
          %p548 = pneg %p438
        $region78: #{roberta_classification_forward.1} parent=11 // pred_check_branch
          %550 = sbr.rel (%p548) target = $region80
        $region79: #{roberta_classification_forward.1} parent=11 // pred_region
          _
        $region80: #{roberta_classification_forward.1} parent=11 // pred_fallthru
          _
        // Predicated region
        $region81: #{roberta_classification_forward.1} parent=11 // pred_check
          %p551 = pneg %p459
        $region82: #{roberta_classification_forward.1} parent=11 // pred_check_branch
          %553 = sbr.rel (%p551) target = $region84
        $region83: #{roberta_classification_forward.1} parent=11 // pred_region
          _
        $region84: #{roberta_classification_forward.1} parent=11 // pred_fallthru
          _
      $region12: #{roberta_classification_forward.1} parent=5 // pred_fallthru
        _
      %p554 = scmp.lt.s32.totalorder %s29, 2
      // Predicated region
      $region85: #{roberta_classification_forward.1} parent=5 // pred_check
        %p555 = pneg %p554
      $region86: #{roberta_classification_forward.1} parent=5 // pred_check_branch
        %557 = sbr.rel (%p555) target = $region88
      $region87: #{roberta_classification_forward.1} parent=5 // pred_region
        // Predicated region
        $region89: #{roberta_classification_forward.1} parent=87 // pred_check
          %p558 = pneg %p49
        $region90: #{roberta_classification_forward.1} parent=87 // pred_check_branch
          %560 = sbr.rel (%p558) target = $region92
        $region91: #{roberta_classification_forward.1} parent=87 // pred_region
          %p561 = scmp.lt.s32.totalorder %s29, 1
          %s562 = scalar_select %p561, %s29, 1
          %s563 = smul.addr %s562, 8
          %s564 = scalar_lea.vmem %s0, %s563
        $region92: #{roberta_classification_forward.1} parent=87 // pred_fallthru
          _
        // Predicated region
        $region93: #{roberta_classification_forward.1} parent=87 // pred_check
          %p565 = pneg %p75
        $region94: #{roberta_classification_forward.1} parent=87 // pred_check_branch
          %567 = sbr.rel (%p565) target = $region96
        $region95: #{roberta_classification_forward.1} parent=87 // pred_region
          %p568 = scmp.lt.s32.totalorder %s29, 1
          %s569 = scalar_select %p568, %s29, 1
          %s570 = scalar_lea.vmem %s1, %s569
        $region96: #{roberta_classification_forward.1} parent=87 // pred_fallthru
          _
      $region88: #{roberta_classification_forward.1} parent=5 // pred_fallthru
        _
      %p571 = scmp.le.s32.totalorder 1, %s29
      %p572 = scmp.lt.s32.totalorder %s29, 3
      %p573 = pnand %p571, %p572
      %p574 = pneg %p573
      // Predicated region
      $region97: #{roberta_classification_forward.1} parent=5 // pred_check
        _
      $region98: #{roberta_classification_forward.1} parent=5 // pred_check_branch
        %576 = sbr.rel (%p573) target = $region100
      $region99: #{roberta_classification_forward.1} parent=5 // pred_region
        %s577 = ssub.s32 %s29, 1
        %p578 = scmp.lt.s32.totalorder %s34, 1
        %s579 = scalar_select %p578, %s34, 1
        %s580 = smul.addr %s579, 8
        %s581 = scalar_lea.vmem %s0, %s580
        %p582 = pneg %p55
        %p583 = pneg %p52
        %p584 = scmp.lt.s32.totalorder %s34, 1
        %s585 = scalar_select %p584, %s34, 1
        %s586 = scalar_lea.vmem %s1, %s585
        %p587 = pneg %p81
        %p588 = pneg %p78
        %p589 = pneg %p102
        %p590 = pneg %p99
        %p591 = pneg %p123
        %p592 = pneg %p120
        %p593 = pneg %p144
        %p594 = pneg %p141
        %p595 = pneg %p165
        %p596 = pneg %p162
        %p597 = pneg %p186
        %p598 = pneg %p183
        %p599 = pneg %p207
        %p600 = pneg %p204
        %p601 = pneg %p228
        %p602 = pneg %p225
        %p603 = pneg %p249
        %p604 = pneg %p246
        %p605 = pneg %p270
        %p606 = pneg %p267
        %p607 = pneg %p291
        %p608 = pneg %p288
        %p609 = pneg %p312
        %p610 = pneg %p309
        %p611 = pneg %p333
        %p612 = pneg %p330
        %p613 = pneg %p354
        %p614 = pneg %p351
        %p615 = pneg %p375
        %p616 = pneg %p372
        %p617 = pneg %p396
        %p618 = pneg %p393
        %p619 = pneg %p417
        %p620 = pneg %p414
        %p621 = pneg %p438
        %p622 = pneg %p435
        %p623 = pneg %p459
        %p624 = pneg %p456
        %p625 = pneg %p485
        %p626 = pneg %p482
        %s627 = sand.u32 %s472, 1
        %s628 = scalar_lea.sflag [#allocation4], %s627
        %s629 = sand.u32 %s472, 1
        %s630 = scalar_lea.vmem [#allocation3], %s629
        %p631 = scmp.lt.s32.totalorder %s34, 1
        %s632 = scalar_select %p631, %s34, 1
        %s633 = smul.addr %s632, 8
        %s634 = scalar_lea.vmem %s0, %s633
        %p635 = scmp.lt.s32.totalorder %s34, 1
        %s636 = scalar_select %p635, %s34, 1
        %s637 = scalar_lea.vmem %s1, %s636
        %v638 = vld [vmem:[%s637] sm:$0x1]
        %v639 = vld [vmem:[%s634] sm:$0xff]
        %v640 = vld [vmem:[%s2] sm:$0x1]
        %v641 = vld [vmem:[%s3] sm:$0x1]
        %vm642 = vcmask 261120
        %v643 = vsel %vm642, %v639, 0.0
        %644 = vadd.xlane.f32.xlu0 %v643
        %v645 = vpop.xlane.xlu0 %644
        %v646 = vrcp.pop 32.0
        %v647 = vmul.f32 %v645, %v646
        %v648 = vsub.f32 %v639, %v647
        %v649 = vmul.f32 %v648, %v648
        %v650 = vsel %vm642, %v649, 0.0
        %651 = vadd.xlane.f32.xlu0 %v650
        %v652 = vpop.xlane.xlu0 %651
        %v653 = vmul.f32 %v652, %v646
        %v654 = vadd.f32 %v653, 1e-05
        %v655 = vrsqrt.pop %v654
        %v656 = vmul.f32 %v648, %v655
        %v658 = vlaneseq
        %v659 = vshrl.u32 %v658, 7
        %v660 = vsub.s32 0, %v659
        %v661 = vrot.slane %v640, %v660
        %v663 = vmul.f32 %v656, %v661
        %v665 = vlaneseq
        %v666 = vshrl.u32 %v665, 7
        %v667 = vsub.s32 0, %v666
        %v668 = vrot.slane %v641, %v667
        %v670 = vadd.f32 %v663, %v668
        %v671 = vld [vmem:[%s4] sm:$0xff]
        %v672 = vld [vmem:[%s4 + $0x8] sm:$0xff]
        %v673 = vld [vmem:[%s4 + $0x10] sm:$0xff]
        %v674 = vld [vmem:[%s4 + $0x18] sm:$0xff]
        %v675 = vld [vmem:[%s5] sm:$0x1]
        %v677 = vlaneseq
        %v678 = vshrl.u32 %v677, 7
        %v679 = vsub.s32 0, %v678
        %v680 = vrot.slane %v675, %v679
        %v683 = vsel %vm642, %v670, 0
        %685 = vmatprep.subr.mxu0 0.0
        %686 = vmatpush1.msra.mxu0 %v671
        %687 = vmatprep.subr.mxu0 0.0
        %688 = vmatpush1.msra.mxu0 %v672
        %689 = vmatprep.subr.mxu0 0.0
        %690 = vmatpush1.msra.mxu0 %v673
        %691 = vmatprep.subr.mxu0 0.0
        %692 = vmatpush1.msra.mxu0 %v674
        %693 = vmatprep.subr.mxu0 0.0
        %694 = vmatpush1.msra.mxu0 0.0
        %695 = vmatprep.subr.mxu0 0.0
        %696 = vmatpush1.msra.mxu0 0.0
        %697 = vmatprep.subr.mxu0 0.0
        %698 = vmatpush1.msra.mxu0 0.0
        %699 = vmatprep.subr.mxu0 0.0
        %700 = vmatpush1.msra.mxu0 0.0
        %701 = vmatprep.subr.mxu0 0.0
        %702 = vmatpush1.msra.mxu0 0.0
        %703 = vmatprep.subr.mxu0 0.0
        %704 = vmatpush1.msra.mxu0 0.0
        %705 = vmatprep.subr.mxu0 0.0
        %706 = vmatpush1.msra.mxu0 0.0
        %707 = vmatprep.subr.mxu0 0.0
        %708 = vmatpush1.msra.mxu0 0.0
        %709 = vmatprep.subr.mxu0 0.0
        %710 = vmatpush1.msra.mxu0 0.0
        %711 = vmatprep.subr.mxu0 0.0
        %712 = vmatpush1.msra.mxu0 0.0
        %713 = vmatprep.subr.mxu0 0.0
        %714 = vmatpush1.msra.mxu0 0.0
        %715 = vmatprep.subr.mxu0 0.0
        %716 = vmatpush1.msra.mxu0 0.0
        %717 = vmatprep.subr.mxu0 0.0
        %718 = vmatpush1.msra.mxu0 0.0
        %719 = vmatprep.subr.mxu0 0.0
        %720 = vmatpush1.msra.mxu0 0.0
        %721 = vmatprep.subr.mxu0 0.0
        %722 = vmatpush1.msra.mxu0 0.0
        %723 = vmatprep.subr.mxu0 0.0
        %724 = vmatpush1.msra.mxu0 0.0
        %725 = vmatprep.subr.mxu0 0.0
        %726 = vmatpush1.msra.mxu0 0.0
        %727 = vmatprep.subr.mxu0 0.0
        %728 = vmatpush1.msra.mxu0 0.0
        %729 = vmatprep.subr.mxu0 0.0
        %730 = vmatpush1.msra.mxu0 0.0
        %731 = vmatprep.subr.mxu0 0.0
        %732 = vmatpush1.msra.mxu0 0.0
        %733 = vmatprep.subr.mxu0 0.0
        %734 = vmatpush1.msra.mxu0 0.0
        %735 = vmatprep.subr.mxu0 0.0
        %736 = vmatpush1.msra.mxu0 0.0
        %737 = vmatprep.subr.mxu0 0.0
        %738 = vmatpush1.msra.mxu0 0.0
        %739 = vmatprep.subr.mxu0 0.0
        %740 = vmatpush1.msra.mxu0 0.0
        %741 = vmatprep.subr.mxu0 0.0
        %742 = vmatpush1.msra.mxu0 0.0
        %743 = vmatprep.subr.mxu0 0.0
        %744 = vmatpush1.msra.mxu0 0.0
        %745 = vmatprep.subr.mxu0 0.0
        %746 = vmatpush1.msra.mxu0 0.0
        %747 = vmatprep.subr.mxu0 0.0
        %748 = vmatpush1.msra.mxu0 0.0
        %749 = vmatprep.mubr.f32.mxu0 0.0
        %750 = vmatmul.mubr.f32.gmra.mrb[0].mxu0 %v683
        %v751 = vpop.f32.mrb[0].mxu0
        %v752 = vadd.f32 %v680, %v751
        %v753 = vpop.f32.mrb[0].mxu0
        %754 = vdwg.mxu0
        %756 = vrot.lane.b32.xlu0 %v752, 96
        %v757 = vpop.permute.xlu0 %756
        %vm758 = vcmask 64512
        %v759 = vsel %vm758, %v752, 0
        %v761 = vsel %vm758, %v757, 0
        %763 = vmatprep.subr.mxu0 0.0
        %764 = vmatpush1.xpose.msra.mxu0 %v761
        %765 = vmatprep.subr.mxu0 0.0
        %766 = vmatpush1.xpose.msra.mxu0 0.0
        %767 = vmatprep.subr.mxu0 0.0
        %768 = vmatpush1.xpose.msra.mxu0 0.0
        %769 = vmatprep.subr.mxu0 0.0
        %770 = vmatpush1.xpose.msra.mxu0 0.0
        %771 = vmatprep.subr.mxu0 0.0
        %772 = vmatpush1.xpose.msra.mxu0 0.0
        %773 = vmatprep.subr.mxu0 0.0
        %774 = vmatpush1.xpose.msra.mxu0 0.0
        %775 = vmatprep.subr.mxu0 0.0
        %776 = vmatpush1.xpose.msra.mxu0 0.0
        %777 = vmatprep.subr.mxu0 0.0
        %778 = vmatpush1.xpose.msra.mxu0 0.0
        %779 = vmatprep.subr.mxu0 0.0
        %780 = vmatpush1.xpose.msra.mxu0 0.0
        %781 = vmatprep.subr.mxu0 0.0
        %782 = vmatpush1.xpose.msra.mxu0 0.0
        %783 = vmatprep.subr.mxu0 0.0
        %784 = vmatpush1.xpose.msra.mxu0 0.0
        %785 = vmatprep.subr.mxu0 0.0
        %786 = vmatpush1.xpose.msra.mxu0 0.0
        %787 = vmatprep.subr.mxu0 0.0
        %788 = vmatpush1.xpose.msra.mxu0 0.0
        %789 = vmatprep.subr.mxu0 0.0
        %790 = vmatpush1.xpose.msra.mxu0 0.0
        %791 = vmatprep.subr.mxu0 0.0
        %792 = vmatpush1.xpose.msra.mxu0 0.0
        %793 = vmatprep.subr.mxu0 0.0
        %794 = vmatpush1.xpose.msra.mxu0 0.0
        %795 = vmatprep.subr.mxu0 0.0
        %796 = vmatpush1.xpose.msra.mxu0 0.0
        %797 = vmatprep.subr.mxu0 0.0
        %798 = vmatpush1.xpose.msra.mxu0 0.0
        %799 = vmatprep.subr.mxu0 0.0
        %800 = vmatpush1.xpose.msra.mxu0 0.0
        %801 = vmatprep.subr.mxu0 0.0
        %802 = vmatpush1.xpose.msra.mxu0 0.0
        %803 = vmatprep.subr.mxu0 0.0
        %804 = vmatpush1.xpose.msra.mxu0 0.0
        %805 = vmatprep.subr.mxu0 0.0
        %806 = vmatpush1.xpose.msra.mxu0 0.0
        %807 = vmatprep.subr.mxu0 0.0
        %808 = vmatpush1.xpose.msra.mxu0 0.0
        %809 = vmatprep.subr.mxu0 0.0
        %810 = vmatpush1.xpose.msra.mxu0 0.0
        %811 = vmatprep.subr.mxu0 0.0
        %812 = vmatpush1.xpose.msra.mxu0 0.0
        %813 = vmatprep.subr.mxu0 0.0
        %814 = vmatpush1.xpose.msra.mxu0 0.0
        %815 = vmatprep.subr.mxu0 0.0
        %816 = vmatpush1.xpose.msra.mxu0 0.0
        %817 = vmatprep.subr.mxu0 0.0
        %818 = vmatpush1.xpose.msra.mxu0 0.0
        %819 = vmatprep.subr.mxu0 0.0
        %820 = vmatpush1.xpose.msra.mxu0 0.0
        %821 = vmatprep.subr.mxu0 0.0
        %822 = vmatpush1.xpose.msra.mxu0 0.0
        %823 = vmatprep.subr.mxu0 0.0
        %824 = vmatpush1.xpose.msra.mxu0 0.0
        %825 = vmatprep.subr.mxu0 0.0
        %826 = vmatpush1.xpose.msra.mxu0 0.0
        %827 = vmatprep.mubr.f32.mxu0 0.0
        %828 = vmatmul.mubr.f32.gmra.mrb[0].mxu0 %v759
        %v829 = vpop.f32.mrb[0].mxu0
        %v830 = vadd.f32 0.0, %v829
        %v831 = vpop.f32.mrb[0].mxu0
        %832 = vdwg.mxu0
        %v833 = vmul.f32 %v830, 0.35355338
        %v835 = vlaneseq
        %v836 = vshrl.u32 %v835, 7
        %v837 = vsub.s32 0, %v836
        %v838 = vrot.slane %v638, %v837
        %v840 = vadd.f32 %v833, %v838
        %v841 = vsel %vm758, %v840, -inf
        %842 = vmax.xlane.f32.xlu0 %v841
        %v843 = vpop.xlane.xlu0 %842
        %v844 = vsub.f32 %v840, %v843
        %v845 = vmul.f32 %v844, 1.442695
        %v846 = vpow.pop %v845
        %v847 = vsel %vm758, %v846, 0.0
        %848 = vadd.xlane.f32.xlu0 %v847
        %v849 = vpop.xlane.xlu0 %848
        %v850 = vrcp.pop %v849
        %v851 = vmul.f32 %v846, %v850
        %852 = vrot.lane.b32.xlu0 %v752, 64
        %v853 = vpop.permute.xlu0 %852
        %v856 = vsel %vm758, %v851, 0
        %858 = vmatprep.subr.mxu0 0.0
        %859 = vmatpush1.msra.mxu0 %v853
        %860 = vmatprep.subr.mxu0 0.0
        %861 = vmatpush1.msra.mxu0 0.0
        %862 = vmatprep.subr.mxu0 0.0
        %863 = vmatpush1.msra.mxu0 0.0
        %864 = vmatprep.subr.mxu0 0.0
        %865 = vmatpush1.msra.mxu0 0.0
        %866 = vmatprep.subr.mxu0 0.0
        %867 = vmatpush1.msra.mxu0 0.0
        %868 = vmatprep.subr.mxu0 0.0
        %869 = vmatpush1.msra.mxu0 0.0
        %870 = vmatprep.subr.mxu0 0.0
        %871 = vmatpush1.msra.mxu0 0.0
        %872 = vmatprep.subr.mxu0 0.0
        %873 = vmatpush1.msra.mxu0 0.0
        %874 = vmatprep.subr.mxu0 0.0
        %875 = vmatpush1.msra.mxu0 0.0
        %876 = vmatprep.subr.mxu0 0.0
        %877 = vmatpush1.msra.mxu0 0.0
        %878 = vmatprep.subr.mxu0 0.0
        %879 = vmatpush1.msra.mxu0 0.0
        %880 = vmatprep.subr.mxu0 0.0
        %881 = vmatpush1.msra.mxu0 0.0
        %882 = vmatprep.subr.mxu0 0.0
        %883 = vmatpush1.msra.mxu0 0.0
        %884 = vmatprep.subr.mxu0 0.0
        %885 = vmatpush1.msra.mxu0 0.0
        %886 = vmatprep.subr.mxu0 0.0
        %887 = vmatpush1.msra.mxu0 0.0
        %888 = vmatprep.subr.mxu0 0.0
        %889 = vmatpush1.msra.mxu0 0.0
        %890 = vmatprep.subr.mxu0 0.0
        %891 = vmatpush1.msra.mxu0 0.0
        %892 = vmatprep.subr.mxu0 0.0
        %893 = vmatpush1.msra.mxu0 0.0
        %894 = vmatprep.subr.mxu0 0.0
        %895 = vmatpush1.msra.mxu0 0.0
        %896 = vmatprep.subr.mxu0 0.0
        %897 = vmatpush1.msra.mxu0 0.0
        %898 = vmatprep.subr.mxu0 0.0
        %899 = vmatpush1.msra.mxu0 0.0
        %900 = vmatprep.subr.mxu0 0.0
        %901 = vmatpush1.msra.mxu0 0.0
        %902 = vmatprep.subr.mxu0 0.0
        %903 = vmatpush1.msra.mxu0 0.0
        %904 = vmatprep.subr.mxu0 0.0
        %905 = vmatpush1.msra.mxu0 0.0
        %906 = vmatprep.subr.mxu0 0.0
        %907 = vmatpush1.msra.mxu0 0.0
        %908 = vmatprep.subr.mxu0 0.0
        %909 = vmatpush1.msra.mxu0 0.0
        %910 = vmatprep.subr.mxu0 0.0
        %911 = vmatpush1.msra.mxu0 0.0
        %912 = vmatprep.subr.mxu0 0.0
        %913 = vmatpush1.msra.mxu0 0.0
        %914 = vmatprep.subr.mxu0 0.0
        %915 = vmatpush1.msra.mxu0 0.0
        %916 = vmatprep.subr.mxu0 0.0
        %917 = vmatpush1.msra.mxu0 0.0
        %918 = vmatprep.subr.mxu0 0.0
        %919 = vmatpush1.msra.mxu0 0.0
        %920 = vmatprep.subr.mxu0 0.0
        %921 = vmatpush1.msra.mxu0 0.0
        %922 = vmatprep.mubr.f32.mxu0 0.0
        %923 = vmatmul.mubr.f32.gmra.mrb[0].mxu0 %v856
        %v924 = vpop.f32.mrb[0].mxu0
        %v925 = vadd.f32 0.0, %v924
        %v926 = vpop.f32.mrb[0].mxu0
        %927 = vdwg.mxu0
        %928 = vst.msk [vmem:[#allocation2] sm:$0xff] %vm758, %v925
        %929 = vrot.lane.b32.xlu0 %v752, 120
        %v930 = vpop.permute.xlu0 %929
        %931 = vrot.lane.b32.xlu0 %v752, 88
        %v932 = vpop.permute.xlu0 %931
        %v933 = vsel %vm758, %v930, 0
        %v935 = vsel %vm758, %v932, 0
        %937 = vmatprep.subr.mxu0 0.0
        %938 = vmatpush1.xpose.msra.mxu0 %v935
        %939 = vmatprep.subr.mxu0 0.0
        %940 = vmatpush1.xpose.msra.mxu0 0.0
        %941 = vmatprep.subr.mxu0 0.0
        %942 = vmatpush1.xpose.msra.mxu0 0.0
        %943 = vmatprep.subr.mxu0 0.0
        %944 = vmatpush1.xpose.msra.mxu0 0.0
        %945 = vmatprep.subr.mxu0 0.0
        %946 = vmatpush1.xpose.msra.mxu0 0.0
        %947 = vmatprep.subr.mxu0 0.0
        %948 = vmatpush1.xpose.msra.mxu0 0.0
        %949 = vmatprep.subr.mxu0 0.0
        %950 = vmatpush1.xpose.msra.mxu0 0.0
        %951 = vmatprep.subr.mxu0 0.0
        %952 = vmatpush1.xpose.msra.mxu0 0.0
        %953 = vmatprep.subr.mxu0 0.0
        %954 = vmatpush1.xpose.msra.mxu0 0.0
        %955 = vmatprep.subr.mxu0 0.0
        %956 = vmatpush1.xpose.msra.mxu0 0.0
        %957 = vmatprep.subr.mxu0 0.0
        %958 = vmatpush1.xpose.msra.mxu0 0.0
        %959 = vmatprep.subr.mxu0 0.0
        %960 = vmatpush1.xpose.msra.mxu0 0.0
        %961 = vmatprep.subr.mxu0 0.0
        %962 = vmatpush1.xpose.msra.mxu0 0.0
        %963 = vmatprep.subr.mxu0 0.0
        %964 = vmatpush1.xpose.msra.mxu0 0.0
        %965 = vmatprep.subr.mxu0 0.0
        %966 = vmatpush1.xpose.msra.mxu0 0.0
        %967 = vmatprep.subr.mxu0 0.0
        %968 = vmatpush1.xpose.msra.mxu0 0.0
        %969 = vmatprep.subr.mxu0 0.0
        %970 = vmatpush1.xpose.msra.mxu0 0.0
        %971 = vmatprep.subr.mxu0 0.0
        %972 = vmatpush1.xpose.msra.mxu0 0.0
        %973 = vmatprep.subr.mxu0 0.0
        %974 = vmatpush1.xpose.msra.mxu0 0.0
        %975 = vmatprep.subr.mxu0 0.0
        %976 = vmatpush1.xpose.msra.mxu0 0.0
        %977 = vmatprep.subr.mxu0 0.0
        %978 = vmatpush1.xpose.msra.mxu0 0.0
        %979 = vmatprep.subr.mxu0 0.0
        %980 = vmatpush1.xpose.msra.mxu0 0.0
        %981 = vmatprep.subr.mxu0 0.0
        %982 = vmatpush1.xpose.msra.mxu0 0.0
        %983 = vmatprep.subr.mxu0 0.0
        %984 = vmatpush1.xpose.msra.mxu0 0.0
        %985 = vmatprep.subr.mxu0 0.0
        %986 = vmatpush1.xpose.msra.mxu0 0.0
        %987 = vmatprep.subr.mxu0 0.0
        %988 = vmatpush1.xpose.msra.mxu0 0.0
        %989 = vmatprep.subr.mxu0 0.0
        %990 = vmatpush1.xpose.msra.mxu0 0.0
        %991 = vmatprep.subr.mxu0 0.0
        %992 = vmatpush1.xpose.msra.mxu0 0.0
        %993 = vmatprep.subr.mxu0 0.0
        %994 = vmatpush1.xpose.msra.mxu0 0.0
        %995 = vmatprep.subr.mxu0 0.0
        %996 = vmatpush1.xpose.msra.mxu0 0.0
        %997 = vmatprep.subr.mxu0 0.0
        %998 = vmatpush1.xpose.msra.mxu0 0.0
        %999 = vmatprep.subr.mxu0 0.0
        %1000 = vmatpush1.xpose.msra.mxu0 0.0
        %1001 = vmatprep.mubr.f32.mxu0 0.0
        %1002 = vmatmul.mubr.f32.gmra.mrb[0].mxu0 %v933
        %v1003 = vpop.f32.mrb[0].mxu0
        %v1004 = vadd.f32 0.0, %v1003
        %v1005 = vpop.f32.mrb[0].mxu0
        %1006 = vdwg.mxu0
        %v1007 = vmul.f32 %v1004, 0.35355338
        %v1008 = vadd.f32 %v1007, %v838
        %v1009 = vsel %vm758, %v1008, -inf
        %1010 = vmax.xlane.f32.xlu0 %v1009
        %v1011 = vpop.xlane.xlu0 %1010
        %v1012 = vsub.f32 %v1008, %v1011
        %v1013 = vmul.f32 %v1012, 1.442695
        %v1014 = vpow.pop %v1013
        %v1015 = vsel %vm758, %v1014, 0.0
        %1016 = vadd.xlane.f32.xlu0 %v1015
        %v1017 = vpop.xlane.xlu0 %1016
        %v1018 = vrcp.pop %v1017
        %v1019 = vmul.f32 %v1014, %v1018
        %1020 = vrot.lane.b32.xlu0 %v752, 56
        %v1021 = vpop.permute.xlu0 %1020
        %v1024 = vsel %vm758, %v1019, 0
        %1026 = vmatprep.subr.mxu0 0.0
        %1027 = vmatpush1.msra.mxu0 %v1021
        %1028 = vmatprep.subr.mxu0 0.0
        %1029 = vmatpush1.msra.mxu0 0.0
        %1030 = vmatprep.subr.mxu0 0.0
        %1031 = vmatpush1.msra.mxu0 0.0
        %1032 = vmatprep.subr.mxu0 0.0
        %1033 = vmatpush1.msra.mxu0 0.0
        %1034 = vmatprep.subr.mxu0 0.0
        %1035 = vmatpush1.msra.mxu0 0.0
        %1036 = vmatprep.subr.mxu0 0.0
        %1037 = vmatpush1.msra.mxu0 0.0
        %1038 = vmatprep.subr.mxu0 0.0
        %1039 = vmatpush1.msra.mxu0 0.0
        %1040 = vmatprep.subr.mxu0 0.0
        %1041 = vmatpush1.msra.mxu0 0.0
        %1042 = vmatprep.subr.mxu0 0.0
        %1043 = vmatpush1.msra.mxu0 0.0
        %1044 = vmatprep.subr.mxu0 0.0
        %1045 = vmatpush1.msra.mxu0 0.0
        %1046 = vmatprep.subr.mxu0 0.0
        %1047 = vmatpush1.msra.mxu0 0.0
        %1048 = vmatprep.subr.mxu0 0.0
        %1049 = vmatpush1.msra.mxu0 0.0
        %1050 = vmatprep.subr.mxu0 0.0
        %1051 = vmatpush1.msra.mxu0 0.0
        %1052 = vmatprep.subr.mxu0 0.0
        %1053 = vmatpush1.msra.mxu0 0.0
        %1054 = vmatprep.subr.mxu0 0.0
        %1055 = vmatpush1.msra.mxu0 0.0
        %1056 = vmatprep.subr.mxu0 0.0
        %1057 = vmatpush1.msra.mxu0 0.0
        %1058 = vmatprep.subr.mxu0 0.0
        %1059 = vmatpush1.msra.mxu0 0.0
        %1060 = vmatprep.subr.mxu0 0.0
        %1061 = vmatpush1.msra.mxu0 0.0
        %1062 = vmatprep.subr.mxu0 0.0
        %1063 = vmatpush1.msra.mxu0 0.0
        %1064 = vmatprep.subr.mxu0 0.0
        %1065 = vmatpush1.msra.mxu0 0.0
        %1066 = vmatprep.subr.mxu0 0.0
        %1067 = vmatpush1.msra.mxu0 0.0
        %1068 = vmatprep.subr.mxu0 0.0
        %1069 = vmatpush1.msra.mxu0 0.0
        %1070 = vmatprep.subr.mxu0 0.0
        %1071 = vmatpush1.msra.mxu0 0.0
        %1072 = vmatprep.subr.mxu0 0.0
        %1073 = vmatpush1.msra.mxu0 0.0
        %1074 = vmatprep.subr.mxu0 0.0
        %1075 = vmatpush1.msra.mxu0 0.0
        %1076 = vmatprep.subr.mxu0 0.0
        %1077 = vmatpush1.msra.mxu0 0.0
        %1078 = vmatprep.subr.mxu0 0.0
        %1079 = vmatpush1.msra.mxu0 0.0
        %1080 = vmatprep.subr.mxu0 0.0
        %1081 = vmatpush1.msra.mxu0 0.0
        %1082 = vmatprep.subr.mxu0 0.0
        %1083 = vmatpush1.msra.mxu0 0.0
        %1084 = vmatprep.subr.mxu0 0.0
        %1085 = vmatpush1.msra.mxu0 0.0
        %1086 = vmatprep.subr.mxu0 0.0
        %1087 = vmatpush1.msra.mxu0 0.0
        %1088 = vmatprep.subr.mxu0 0.0
        %1089 = vmatpush1.msra.mxu0 0.0
        %1090 = vmatprep.mubr.f32.mxu0 0.0
        %1091 = vmatmul.mubr.f32.gmra.mrb[0].mxu0 %v1024
        %v1092 = vpop.f32.mrb[0].mxu0
        %v1093 = vadd.f32 0.0, %v1092
        %v1094 = vpop.f32.mrb[0].mxu0
        %1095 = vdwg.mxu0
        %1097 = vrot.lane.b32.xlu0 %v1093, 8
        %v1098 = vpop.permute.xlu0 %1097
        %vm1100 = vcmask 130112
        %1101 = vst.msk [vmem:[#allocation2] sm:$0xff] %vm1100, %v1098
        %1102 = vrot.lane.b32.xlu0 %v752, 112
        %v1103 = vpop.permute.xlu0 %1102
        %1104 = vrot.lane.b32.xlu0 %v752, 80
        %v1105 = vpop.permute.xlu0 %1104
        %v1106 = vsel %vm758, %v1103, 0
        %v1108 = vsel %vm758, %v1105, 0
        %1110 = vmatprep.subr.mxu0 0.0
        %1111 = vmatpush1.xpose.msra.mxu0 %v1108
        %1112 = vmatprep.subr.mxu0 0.0
        %1113 = vmatpush1.xpose.msra.mxu0 0.0
        %1114 = vmatprep.subr.mxu0 0.0
        %1115 = vmatpush1.xpose.msra.mxu0 0.0
        %1116 = vmatprep.subr.mxu0 0.0
        %1117 = vmatpush1.xpose.msra.mxu0 0.0
        %1118 = vmatprep.subr.mxu0 0.0
        %1119 = vmatpush1.xpose.msra.mxu0 0.0
        %1120 = vmatprep.subr.mxu0 0.0
        %1121 = vmatpush1.xpose.msra.mxu0 0.0
        %1122 = vmatprep.subr.mxu0 0.0
        %1123 = vmatpush1.xpose.msra.mxu0 0.0
        %1124 = vmatprep.subr.mxu0 0.0
        %1125 = vmatpush1.xpose.msra.mxu0 0.0
        %1126 = vmatprep.subr.mxu0 0.0
        %1127 = vmatpush1.xpose.msra.mxu0 0.0
        %1128 = vmatprep.subr.mxu0 0.0
        %1129 = vmatpush1.xpose.msra.mxu0 0.0
        %1130 = vmatprep.subr.mxu0 0.0
        %1131 = vmatpush1.xpose.msra.mxu0 0.0
        %1132 = vmatprep.subr.mxu0 0.0
        %1133 = vmatpush1.xpose.msra.mxu0 0.0
        %1134 = vmatprep.subr.mxu0 0.0
        %1135 = vmatpush1.xpose.msra.mxu0 0.0
        %1136 = vmatprep.subr.mxu0 0.0
        %1137 = vmatpush1.xpose.msra.mxu0 0.0
        %1138 = vmatprep.subr.mxu0 0.0
        %1139 = vmatpush1.xpose.msra.mxu0 0.0
        %1140 = vmatprep.subr.mxu0 0.0
        %1141 = vmatpush1.xpose.msra.mxu0 0.0
        %1142 = vmatprep.subr.mxu0 0.0
        %1143 = vmatpush1.xpose.msra.mxu0 0.0
        %1144 = vmatprep.subr.mxu0 0.0
        %1145 = vmatpush1.xpose.msra.mxu0 0.0
        %1146 = vmatprep.subr.mxu0 0.0
        %1147 = vmatpush1.xpose.msra.mxu0 0.0
        %1148 = vmatprep.subr.mxu0 0.0
        %1149 = vmatpush1.xpose.msra.mxu0 0.0
        %1150 = vmatprep.subr.mxu0 0.0
        %1151 = vmatpush1.xpose.msra.mxu0 0.0
        %1152 = vmatprep.subr.mxu0 0.0
        %1153 = vmatpush1.xpose.msra.mxu0 0.0
        %1154 = vmatprep.subr.mxu0 0.0
        %1155 = vmatpush1.xpose.msra.mxu0 0.0
        %1156 = vmatprep.subr.mxu0 0.0
        %1157 = vmatpush1.xpose.msra.mxu0 0.0
        %1158 = vmatprep.subr.mxu0 0.0
        %1159 = vmatpush1.xpose.msra.mxu0 0.0
        %1160 = vmatprep.subr.mxu0 0.0
        %1161 = vmatpush1.xpose.msra.mxu0 0.0
        %1162 = vmatprep.subr.mxu0 0.0
        %1163 = vmatpush1.xpose.msra.mxu0 0.0
        %1164 = vmatprep.subr.mxu0 0.0
        %1165 = vmatpush1.xpose.msra.mxu0 0.0
        %1166 = vmatprep.subr.mxu0 0.0
        %1167 = vmatpush1.xpose.msra.mxu0 0.0
        %1168 = vmatprep.subr.mxu0 0.0
        %1169 = vmatpush1.xpose.msra.mxu0 0.0
        %1170 = vmatprep.subr.mxu0 0.0
        %1171 = vmatpush1.xpose.msra.mxu0 0.0
        %1172 = vmatprep.subr.mxu0 0.0
        %1173 = vmatpush1.xpose.msra.mxu0 0.0
        %1174 = vmatprep.mubr.f32.mxu0 0.0
        %1175 = vmatmul.mubr.f32.gmra.mrb[0].mxu0 %v1106
        %v1176 = vpop.f32.mrb[0].mxu0
        %v1177 = vadd.f32 0.0, %v1176
        %v1178 = vpop.f32.mrb[0].mxu0
        %1179 = vdwg.mxu0
        %v1180 = vmul.f32 %v1177, 0.35355338
        %v1181 = vadd.f32 %v1180, %v838
        %v1182 = vsel %vm758, %v1181, -inf
        %1183 = vmax.xlane.f32.xlu0 %v1182
        %v1184 = vpop.xlane.xlu0 %1183
        %v1185 = vsub.f32 %v1181, %v1184
        %v1186 = vmul.f32 %v1185, 1.442695
        %v1187 = vpow.pop %v1186
        %v1188 = vsel %vm758, %v1187, 0.0
        %1189 = vadd.xlane.f32.xlu0 %v1188
        %v1190 = vpop.xlane.xlu0 %1189
        %v1191 = vrcp.pop %v1190
        %v1192 = vmul.f32 %v1187, %v1191
        %1193 = vrot.lane.b32.xlu0 %v752, 48
        %v1194 = vpop.permute.xlu0 %1193
        %v1197 = vsel %vm758, %v1192, 0
        %1199 = vmatprep.subr.mxu0 0.0
        %1200 = vmatpush1.msra.mxu0 %v1194
        %1201 = vmatprep.subr.mxu0 0.0
        %1202 = vmatpush1.msra.mxu0 0.0
        %1203 = vmatprep.subr.mxu0 0.0
        %1204 = vmatpush1.msra.mxu0 0.0
        %1205 = vmatprep.subr.mxu0 0.0
        %1206 = vmatpush1.msra.mxu0 0.0
        %1207 = vmatprep.subr.mxu0 0.0
        %1208 = vmatpush1.msra.mxu0 0.0
        %1209 = vmatprep.subr.mxu0 0.0
        %1210 = vmatpush1.msra.mxu0 0.0
        %1211 = vmatprep.subr.mxu0 0.0
        %1212 = vmatpush1.msra.mxu0 0.0
        %1213 = vmatprep.subr.mxu0 0.0
        %1214 = vmatpush1.msra.mxu0 0.0
        %1215 = vmatprep.subr.mxu0 0.0
        %1216 = vmatpush1.msra.mxu0 0.0
        %1217 = vmatprep.subr.mxu0 0.0
        %1218 = vmatpush1.msra.mxu0 0.0
        %1219 = vmatprep.subr.mxu0 0.0
        %1220 = vmatpush1.msra.mxu0 0.0
        %1221 = vmatprep.subr.mxu0 0.0
        %1222 = vmatpush1.msra.mxu0 0.0
        %1223 = vmatprep.subr.mxu0 0.0
        %1224 = vmatpush1.msra.mxu0 0.0
        %1225 = vmatprep.subr.mxu0 0.0
        %1226 = vmatpush1.msra.mxu0 0.0
        %1227 = vmatprep.subr.mxu0 0.0
        %1228 = vmatpush1.msra.mxu0 0.0
        %1229 = vmatprep.subr.mxu0 0.0
        %1230 = vmatpush1.msra.mxu0 0.0
        %1231 = vmatprep.subr.mxu0 0.0
        %1232 = vmatpush1.msra.mxu0 0.0
        %1233 = vmatprep.subr.mxu0 0.0
        %1234 = vmatpush1.msra.mxu0 0.0
        %1235 = vmatprep.subr.mxu0 0.0
        %1236 = vmatpush1.msra.mxu0 0.0
        %1237 = vmatprep.subr.mxu0 0.0
        %1238 = vmatpush1.msra.mxu0 0.0
        %1239 = vmatprep.subr.mxu0 0.0
        %1240 = vmatpush1.msra.mxu0 0.0
        %1241 = vmatprep.subr.mxu0 0.0
        %1242 = vmatpush1.msra.mxu0 0.0
        %1243 = vmatprep.subr.mxu0 0.0
        %1244 = vmatpush1.msra.mxu0 0.0
        %1245 = vmatprep.subr.mxu0 0.0
        %1246 = vmatpush1.msra.mxu0 0.0
        %1247 = vmatprep.subr.mxu0 0.0
        %1248 = vmatpush1.msra.mxu0 0.0
        %1249 = vmatprep.subr.mxu0 0.0
        %1250 = vmatpush1.msra.mxu0 0.0
        %1251 = vmatprep.subr.mxu0 0.0
        %1252 = vmatpush1.msra.mxu0 0.0
        %1253 = vmatprep.subr.mxu0 0.0
        %1254 = vmatpush1.msra.mxu0 0.0
        %1255 = vmatprep.subr.mxu0 0.0
        %1256 = vmatpush1.msra.mxu0 0.0
        %1257 = vmatprep.subr.mxu0 0.0
        %1258 = vmatpush1.msra.mxu0 0.0
        %1259 = vmatprep.subr.mxu0 0.0
        %1260 = vmatpush1.msra.mxu0 0.0
        %1261 = vmatprep.subr.mxu0 0.0
        %1262 = vmatpush1.msra.mxu0 0.0
        %1263 = vmatprep.mubr.f32.mxu0 0.0
        %1264 = vmatmul.mubr.f32.gmra.mrb[0].mxu0 %v1197
        %v1265 = vpop.f32.mrb[0].mxu0
        %v1266 = vadd.f32 0.0, %v1265
        %v1267 = vpop.f32.mrb[0].mxu0
        %1268 = vdwg.mxu0
        %1270 = vrot.lane.b32.xlu0 %v1266, 16
        %v1271 = vpop.permute.xlu0 %1270
        %vm1273 = vcmask 195712
        %1274 = vst.msk [vmem:[#allocation2] sm:$0xff] %vm1273, %v1271
        %1275 = vrot.lane.b32.xlu0 %v752, 104
        %v1276 = vpop.permute.xlu0 %1275
        %1277 = vrot.lane.b32.xlu0 %v752, 72
        %v1278 = vpop.permute.xlu0 %1277
        %v1279 = vsel %vm758, %v1276, 0
        %v1281 = vsel %vm758, %v1278, 0
        %1283 = vmatprep.subr.mxu0 0.0
        %1284 = vmatpush1.xpose.msra.mxu0 %v1281
        %1285 = vmatprep.subr.mxu0 0.0
        %1286 = vmatpush1.xpose.msra.mxu0 0.0
        %1287 = vmatprep.subr.mxu0 0.0
        %1288 = vmatpush1.xpose.msra.mxu0 0.0
        %1289 = vmatprep.subr.mxu0 0.0
        %1290 = vmatpush1.xpose.msra.mxu0 0.0
        %1291 = vmatprep.subr.mxu0 0.0
        %1292 = vmatpush1.xpose.msra.mxu0 0.0
        %1293 = vmatprep.subr.mxu0 0.0
        %1294 = vmatpush1.xpose.msra.mxu0 0.0
        %1295 = vmatprep.subr.mxu0 0.0
        %1296 = vmatpush1.xpose.msra.mxu0 0.0
        %1297 = vmatprep.subr.mxu0 0.0
        %1298 = vmatpush1.xpose.msra.mxu0 0.0
        %1299 = vmatprep.subr.mxu0 0.0
        %1300 = vmatpush1.xpose.msra.mxu0 0.0
        %1301 = vmatprep.subr.mxu0 0.0
        %1302 = vmatpush1.xpose.msra.mxu0 0.0
        %1303 = vmatprep.subr.mxu0 0.0
        %1304 = vmatpush1.xpose.msra.mxu0 0.0
        %1305 = vmatprep.subr.mxu0 0.0
        %1306 = vmatpush1.xpose.msra.mxu0 0.0
        %1307 = vmatprep.subr.mxu0 0.0
        %1308 = vmatpush1.xpose.msra.mxu0 0.0
        %1309 = vmatprep.subr.mxu0 0.0
        %1310 = vmatpush1.xpose.msra.mxu0 0.0
        %1311 = vmatprep.subr.mxu0 0.0
        %1312 = vmatpush1.xpose.msra.mxu0 0.0
        %1313 = vmatprep.subr.mxu0 0.0
        %1314 = vmatpush1.xpose.msra.mxu0 0.0
        %1315 = vmatprep.subr.mxu0 0.0
        %1316 = vmatpush1.xpose.msra.mxu0 0.0
        %1317 = vmatprep.subr.mxu0 0.0
        %1318 = vmatpush1.xpose.msra.mxu0 0.0
        %1319 = vmatprep.subr.mxu0 0.0
        %1320 = vmatpush1.xpose.msra.mxu0 0.0
        %1321 = vmatprep.subr.mxu0 0.0
        %1322 = vmatpush1.xpose.msra.mxu0 0.0
        %1323 = vmatprep.subr.mxu0 0.0
        %1324 = vmatpush1.xpose.msra.mxu0 0.0
        %1325 = vmatprep.subr.mxu0 0.0
        %1326 = vmatpush1.xpose.msra.mxu0 0.0
        %1327 = vmatprep.subr.mxu0 0.0
        %1328 = vmatpush1.xpose.msra.mxu0 0.0
        %1329 = vmatprep.subr.mxu0 0.0
        %1330 = vmatpush1.xpose.msra.mxu0 0.0
        %1331 = vmatprep.subr.mxu0 0.0
        %1332 = vmatpush1.xpose.msra.mxu0 0.0
        %1333 = vmatprep.subr.mxu0 0.0
        %1334 = vmatpush1.xpose.msra.mxu0 0.0
        %1335 = vmatprep.subr.mxu0 0.0
        %1336 = vmatpush1.xpose.msra.mxu0 0.0
        %1337 = vmatprep.subr.mxu0 0.0
        %1338 = vmatpush1.xpose.msra.mxu0 0.0
        %1339 = vmatprep.subr.mxu0 0.0
        %1340 = vmatpush1.xpose.msra.mxu0 0.0
        %1341 = vmatprep.subr.mxu0 0.0
        %1342 = vmatpush1.xpose.msra.mxu0 0.0
        %1343 = vmatprep.subr.mxu0 0.0
        %1344 = vmatpush1.xpose.msra.mxu0 0.0
        %1345 = vmatprep.subr.mxu0 0.0
        %1346 = vmatpush1.xpose.msra.mxu0 0.0
        %1347 = vmatprep.mubr.f32.mxu0 0.0
        %1348 = vmatmul.mubr.f32.gmra.mrb[0].mxu0 %v1279
        %v1349 = vpop.f32.mrb[0].mxu0
        %v1350 = vadd.f32 0.0, %v1349
        %v1351 = vpop.f32.mrb[0].mxu0
        %1352 = vdwg.mxu0
        %v1353 = vmul.f32 %v1350, 0.35355338
        %v1354 = vadd.f32 %v1353, %v838
        %v1355 = vsel %vm758, %v1354, -inf
        %1356 = vmax.xlane.f32.xlu0 %v1355
        %v1357 = vpop.xlane.xlu0 %1356
        %v1358 = vsub.f32 %v1354, %v1357
        %v1359 = vmul.f32 %v1358, 1.442695
        %v1360 = vpow.pop %v1359
        %v1361 = vsel %vm758, %v1360, 0.0
        %1362 = vadd.xlane.f32.xlu0 %v1361
        %v1363 = vpop.xlane.xlu0 %1362
        %v1364 = vrcp.pop %v1363
        %v1365 = vmul.f32 %v1360, %v1364
        %1366 = vrot.lane.b32.xlu0 %v752, 40
        %v1367 = vpop.permute.xlu0 %1366
        %v1370 = vsel %vm758, %v1365, 0
        %1372 = vmatprep.subr.mxu0 0.0
        %1373 = vmatpush1.msra.mxu0 %v1367
        %1374 = vmatprep.subr.mxu0 0.0
        %1375 = vmatpush1.msra.mxu0 0.0
        %1376 = vmatprep.subr.mxu0 0.0
        %1377 = vmatpush1.msra.mxu0 0.0
        %1378 = vmatprep.subr.mxu0 0.0
        %1379 = vmatpush1.msra.mxu0 0.0
        %1380 = vmatprep.subr.mxu0 0.0
        %1381 = vmatpush1.msra.mxu0 0.0
        %1382 = vmatprep.subr.mxu0 0.0
        %1383 = vmatpush1.msra.mxu0 0.0
        %1384 = vmatprep.subr.mxu0 0.0
        %1385 = vmatpush1.msra.mxu0 0.0
        %1386 = vmatprep.subr.mxu0 0.0
        %1387 = vmatpush1.msra.mxu0 0.0
        %1388 = vmatprep.subr.mxu0 0.0
        %1389 = vmatpush1.msra.mxu0 0.0
        %1390 = vmatprep.subr.mxu0 0.0
        %1391 = vmatpush1.msra.mxu0 0.0
        %1392 = vmatprep.subr.mxu0 0.0
        %1393 = vmatpush1.msra.mxu0 0.0
        %1394 = vmatprep.subr.mxu0 0.0
        %1395 = vmatpush1.msra.mxu0 0.0
        %1396 = vmatprep.subr.mxu0 0.0
        %1397 = vmatpush1.msra.mxu0 0.0
        %1398 = vmatprep.subr.mxu0 0.0
        %1399 = vmatpush1.msra.mxu0 0.0
        %1400 = vmatprep.subr.mxu0 0.0
        %1401 = vmatpush1.msra.mxu0 0.0
        %1402 = vmatprep.subr.mxu0 0.0
        %1403 = vmatpush1.msra.mxu0 0.0
        %1404 = vmatprep.subr.mxu0 0.0
        %1405 = vmatpush1.msra.mxu0 0.0
        %1406 = vmatprep.subr.mxu0 0.0
        %1407 = vmatpush1.msra.mxu0 0.0
        %1408 = vmatprep.subr.mxu0 0.0
        %1409 = vmatpush1.msra.mxu0 0.0
        %1410 = vmatprep.subr.mxu0 0.0
        %1411 = vmatpush1.msra.mxu0 0.0
        %1412 = vmatprep.subr.mxu0 0.0
        %1413 = vmatpush1.msra.mxu0 0.0
        %1414 = vmatprep.subr.mxu0 0.0
        %1415 = vmatpush1.msra.mxu0 0.0
        %1416 = vmatprep.subr.mxu0 0.0
        %1417 = vmatpush1.msra.mxu0 0.0
        %1418 = vmatprep.subr.mxu0 0.0
        %1419 = vmatpush1.msra.mxu0 0.0
        %1420 = vmatprep.subr.mxu0 0.0
        %1421 = vmatpush1.msra.mxu0 0.0
        %1422 = vmatprep.subr.mxu0 0.0
        %1423 = vmatpush1.msra.mxu0 0.0
        %1424 = vmatprep.subr.mxu0 0.0
        %1425 = vmatpush1.msra.mxu0 0.0
        %1426 = vmatprep.subr.mxu0 0.0
        %1427 = vmatpush1.msra.mxu0 0.0
        %1428 = vmatprep.subr.mxu0 0.0
        %1429 = vmatpush1.msra.mxu0 0.0
        %1430 = vmatprep.subr.mxu0 0.0
        %1431 = vmatpush1.msra.mxu0 0.0
        %1432 = vmatprep.subr.mxu0 0.0
        %1433 = vmatpush1.msra.mxu0 0.0
        %1434 = vmatprep.subr.mxu0 0.0
        %1435 = vmatpush1.msra.mxu0 0.0
        %1436 = vmatprep.mubr.f32.mxu0 0.0
        %1437 = vmatmul.mubr.f32.gmra.mrb[0].mxu0 %v1370
        %v1438 = vpop.f32.mrb[0].mxu0
        %v1439 = vadd.f32 0.0, %v1438
        %v1440 = vpop.f32.mrb[0].mxu0
        %1441 = vdwg.mxu0
        %1443 = vrot.lane.b32.xlu0 %v1439, 24
        %v1444 = vpop.permute.xlu0 %1443
        %vm1446 = vcmask 261312
        %1447 = vst.msk [vmem:[#allocation2] sm:$0xff] %vm1446, %v1444
        %v1448 = vld [vmem:[#allocation2] sm:$0xff]
        %v1449 = vld [vmem:[%s6] sm:$0xff]
        %v1450 = vld [vmem:[%s6 + $0x8] sm:$0xff]
        %v1451 = vld [vmem:[%s6 + $0x10] sm:$0xff]
        %v1452 = vld [vmem:[%s6 + $0x18] sm:$0xff]
        %v1453 = vld [vmem:[%s7] sm:$0x1]
        %v1455 = vlaneseq
        %v1456 = vshrl.u32 %v1455, 7
        %v1457 = vsub.s32 0, %v1456
        %v1458 = vrot.slane %v1453, %v1457
        %v1461 = vsel %vm642, %v1448, 0
        %1463 = vmatprep.subr.mxu0 0.0
        %1464 = vmatpush1.msra.mxu0 %v1449
        %1465 = vmatprep.subr.mxu0 0.0
        %1466 = vmatpush1.msra.mxu0 %v1450
        %1467 = vmatprep.subr.mxu0 0.0
        %1468 = vmatpush1.msra.mxu0 %v1451
        %1469 = vmatprep.subr.mxu0 0.0
        %1470 = vmatpush1.msra.mxu0 %v1452
        %1471 = vmatprep.subr.mxu0 0.0
        %1472 = vmatpush1.msra.mxu0 0.0
        %1473 = vmatprep.subr.mxu0 0.0
        %1474 = vmatpush1.msra.mxu0 0.0
        %1475 = vmatprep.subr.mxu0 0.0
        %1476 = vmatpush1.msra.mxu0 0.0
        %1477 = vmatprep.subr.mxu0 0.0
        %1478 = vmatpush1.msra.mxu0 0.0
        %1479 = vmatprep.subr.mxu0 0.0
        %1480 = vmatpush1.msra.mxu0 0.0
        %1481 = vmatprep.subr.mxu0 0.0
        %1482 = vmatpush1.msra.mxu0 0.0
        %1483 = vmatprep.subr.mxu0 0.0
        %1484 = vmatpush1.msra.mxu0 0.0
        %1485 = vmatprep.subr.mxu0 0.0
        %1486 = vmatpush1.msra.mxu0 0.0
        %1487 = vmatprep.subr.mxu0 0.0
        %1488 = vmatpush1.msra.mxu0 0.0
        %1489 = vmatprep.subr.mxu0 0.0
        %1490 = vmatpush1.msra.mxu0 0.0
        %1491 = vmatprep.subr.mxu0 0.0
        %1492 = vmatpush1.msra.mxu0 0.0
        %1493 = vmatprep.subr.mxu0 0.0
        %1494 = vmatpush1.msra.mxu0 0.0
        %1495 = vmatprep.subr.mxu0 0.0
        %1496 = vmatpush1.msra.mxu0 0.0
        %1497 = vmatprep.subr.mxu0 0.0
        %1498 = vmatpush1.msra.mxu0 0.0
        %1499 = vmatprep.subr.mxu0 0.0
        %1500 = vmatpush1.msra.mxu0 0.0
        %1501 = vmatprep.subr.mxu0 0.0
        %1502 = vmatpush1.msra.mxu0 0.0
        %1503 = vmatprep.subr.mxu0 0.0
        %1504 = vmatpush1.msra.mxu0 0.0
        %1505 = vmatprep.subr.mxu0 0.0
        %1506 = vmatpush1.msra.mxu0 0.0
        %1507 = vmatprep.subr.mxu0 0.0
        %1508 = vmatpush1.msra.mxu0 0.0
        %1509 = vmatprep.subr.mxu0 0.0
        %1510 = vmatpush1.msra.mxu0 0.0
        %1511 = vmatprep.subr.mxu0 0.0
        %1512 = vmatpush1.msra.mxu0 0.0
        %1513 = vmatprep.subr.mxu0 0.0
        %1514 = vmatpush1.msra.mxu0 0.0
        %1515 = vmatprep.subr.mxu0 0.0
        %1516 = vmatpush1.msra.mxu0 0.0
        %1517 = vmatprep.subr.mxu0 0.0
        %1518 = vmatpush1.msra.mxu0 0.0
        %1519 = vmatprep.subr.mxu0 0.0
        %1520 = vmatpush1.msra.mxu0 0.0
        %1521 = vmatprep.subr.mxu0 0.0
        %1522 = vmatpush1.msra.mxu0 0.0
        %1523 = vmatprep.subr.mxu0 0.0
        %1524 = vmatpush1.msra.mxu0 0.0
        %1525 = vmatprep.subr.mxu0 0.0
        %1526 = vmatpush1.msra.mxu0 0.0
        %1527 = vmatprep.mubr.f32.mxu0 0.0
        %1528 = vmatmul.mubr.f32.gmra.mrb[0].mxu0 %v1461
        %v1529 = vpop.f32.mrb[0].mxu0
        %v1530 = vadd.f32 %v1458, %v1529
        %v1531 = vpop.f32.mrb[0].mxu0
        %1532 = vdwg.mxu0
        %v1533 = vadd.f32 %v1530, %v670
        %v1534 = vld [vmem:[%s8] sm:$0x1]
        %v1535 = vld [vmem:[%s9] sm:$0x1]
        %v1536 = vsel %vm642, %v1533, 0.0
        %1537 = vadd.xlane.f32.xlu0 %v1536
        %v1538 = vpop.xlane.xlu0 %1537
        %v1539 = vmul.f32 %v1538, %v646
        %v1540 = vsub.f32 %v1533, %v1539
        %v1541 = vmul.f32 %v1540, %v1540
        %v1542 = vsel %vm642, %v1541, 0.0
        %1543 = vadd.xlane.f32.xlu0 %v1542
        %v1544 = vpop.xlane.xlu0 %1543
        %v1545 = vmul.f32 %v1544, %v646
        %v1546 = vadd.f32 %v1545, 1e-05
        %v1547 = vrsqrt.pop %v1546
        %v1548 = vmul.f32 %v1540, %v1547
        %v1550 = vlaneseq
        %v1551 = vshrl.u32 %v1550, 7
        %v1552 = vsub.s32 0, %v1551
        %v1553 = vrot.slane %v1534, %v1552
        %v1555 = vmul.f32 %v1548, %v1553
        %v1557 = vlaneseq
        %v1558 = vshrl.u32 %v1557, 7
        %v1559 = vsub.s32 0, %v1558
        %v1560 = vrot.slane %v1535, %v1559
        %v1562 = vadd.f32 %v1555, %v1560
        %v1563 = vld [vmem:[%s10] sm:$0xff]
        %v1564 = vld [vmem:[%s10 + $0x8] sm:$0xff]
        %v1565 = vld [vmem:[%s10 + $0x10] sm:$0xff]
        %v1566 = vld [vmem:[%s10 + $0x18] sm:$0xff]
        %v1567 = vld [vmem:[%s11] sm:$0x1]
        %v1569 = vlaneseq
        %v1570 = vshrl.u32 %v1569, 7
        %v1571 = vsub.s32 0, %v1570
        %v1572 = vrot.slane %v1567, %v1571
        %v1575 = vsel %vm642, %v1562, 0
        %1577 = vmatprep.subr.mxu0 0.0
        %1578 = vmatpush1.msra.mxu0 %v1563
        %1579 = vmatprep.subr.mxu0 0.0
        %1580 = vmatpush1.msra.mxu0 %v1564
        %1581 = vmatprep.subr.mxu0 0.0
        %1582 = vmatpush1.msra.mxu0 %v1565
        %1583 = vmatprep.subr.mxu0 0.0
        %1584 = vmatpush1.msra.mxu0 %v1566
        %1585 = vmatprep.subr.mxu0 0.0
        %1586 = vmatpush1.msra.mxu0 0.0
        %1587 = vmatprep.subr.mxu0 0.0
        %1588 = vmatpush1.msra.mxu0 0.0
        %1589 = vmatprep.subr.mxu0 0.0
        %1590 = vmatpush1.msra.mxu0 0.0
        %1591 = vmatprep.subr.mxu0 0.0
        %1592 = vmatpush1.msra.mxu0 0.0
        %1593 = vmatprep.subr.mxu0 0.0
        %1594 = vmatpush1.msra.mxu0 0.0
        %1595 = vmatprep.subr.mxu0 0.0
        %1596 = vmatpush1.msra.mxu0 0.0
        %1597 = vmatprep.subr.mxu0 0.0
        %1598 = vmatpush1.msra.mxu0 0.0
        %1599 = vmatprep.subr.mxu0 0.0
        %1600 = vmatpush1.msra.mxu0 0.0
        %1601 = vmatprep.subr.mxu0 0.0
        %1602 = vmatpush1.msra.mxu0 0.0
        %1603 = vmatprep.subr.mxu0 0.0
        %1604 = vmatpush1.msra.mxu0 0.0
        %1605 = vmatprep.subr.mxu0 0.0
        %1606 = vmatpush1.msra.mxu0 0.0
        %1607 = vmatprep.subr.mxu0 0.0
        %1608 = vmatpush1.msra.mxu0 0.0
        %1609 = vmatprep.subr.mxu0 0.0
        %1610 = vmatpush1.msra.mxu0 0.0
        %1611 = vmatprep.subr.mxu0 0.0
        %1612 = vmatpush1.msra.mxu0 0.0
        %1613 = vmatprep.subr.mxu0 0.0
        %1614 = vmatpush1.msra.mxu0 0.0
        %1615 = vmatprep.subr.mxu0 0.0
        %1616 = vmatpush1.msra.mxu0 0.0
        %1617 = vmatprep.subr.mxu0 0.0
        %1618 = vmatpush1.msra.mxu0 0.0
        %1619 = vmatprep.subr.mxu0 0.0
        %1620 = vmatpush1.msra.mxu0 0.0
        %1621 = vmatprep.subr.mxu0 0.0
        %1622 = vmatpush1.msra.mxu0 0.0
        %1623 = vmatprep.subr.mxu0 0.0
        %1624 = vmatpush1.msra.mxu0 0.0
        %1625 = vmatprep.subr.mxu0 0.0
        %1626 = vmatpush1.msra.mxu0 0.0
        %1627 = vmatprep.subr.mxu0 0.0
        %1628 = vmatpush1.msra.mxu0 0.0
        %1629 = vmatprep.subr.mxu0 0.0
        %1630 = vmatpush1.msra.mxu0 0.0
        %1631 = vmatprep.subr.mxu0 0.0
        %1632 = vmatpush1.msra.mxu0 0.0
        %1633 = vmatprep.subr.mxu0 0.0
        %1634 = vmatpush1.msra.mxu0 0.0
        %1635 = vmatprep.subr.mxu0 0.0
        %1636 = vmatpush1.msra.mxu0 0.0
        %1637 = vmatprep.subr.mxu0 0.0
        %1638 = vmatpush1.msra.mxu0 0.0
        %1639 = vmatprep.subr.mxu0 0.0
        %1640 = vmatpush1.msra.mxu0 0.0
        %1641 = vmatprep.mubr.f32.mxu0 0.0
        %1642 = vmatmul.mubr.f32.gmra.mrb[0].mxu0 %v1575
        %v1643 = vpop.f32.mrb[0].mxu0
        %v1644 = vadd.f32 %v1572, %v1643
        %v1645 = vpop.f32.mrb[0].mxu0
        %1646 = vdwg.mxu0
        %v1647 = vmul.f32 %v1644, %v1644
        %v1648 = vmul.f32 %v1644, %v1647
        %v1649 = vmul.f32 %v1648, 0.044715
        %v1650 = vadd.f32 %v1644, %v1649
        %v1651 = vmul.f32 %v1650, 0.7978846
        %v1652 = vtanh.pop %v1651
        %v1653 = vadd.f32 %v1652, 1.0
        %v1654 = vmul.f32 %v1653, 0.5
        %v1655 = vmul.f32 %v1644, %v1654
        %v1656 = vld [vmem:[%s12] sm:$0xff]
        %v1657 = vld [vmem:[%s12 + $0x8] sm:$0xff]
        %v1658 = vld [vmem:[%s12 + $0x10] sm:$0xff]
        %v1659 = vld [vmem:[%s12 + $0x18] sm:$0xff]
        %v1660 = vld [vmem:[%s12 + $0x20] sm:$0xff]
        %v1661 = vld [vmem:[%s12 + $0x28] sm:$0xff]
        %v1662 = vld [vmem:[%s12 + $0x30] sm:$0xff]
        %v1663 = vld [vmem:[%s12 + $0x38] sm:$0xff]
        %v1664 = vld [vmem:[%s13] sm:$0x1]
        %v1666 = vlaneseq
        %v1667 = vshrl.u32 %v1666, 7
        %v1668 = vsub.s32 0, %v1667
        %v1669 = vrot.slane %v1664, %v1668
        %vm1671 = vcmask 523264
        %v1673 = vsel %vm1671, %v1655, 0
        %1675 = vmatprep.subr.mxu0 0.0
        %1676 = vmatpush1.msra.mxu0 %v1656
        %1677 = vmatprep.subr.mxu0 0.0
        %1678 = vmatpush1.msra.mxu0 %v1657
        %1679 = vmatprep.subr.mxu0 0.0
        %1680 = vmatpush1.msra.mxu0 %v1658
        %1681 = vmatprep.subr.mxu0 0.0
        %1682 = vmatpush1.msra.mxu0 %v1659
        %1683 = vmatprep.subr.mxu0 0.0
        %1684 = vmatpush1.msra.mxu0 %v1660
        %1685 = vmatprep.subr.mxu0 0.0
        %1686 = vmatpush1.msra.mxu0 %v1661
        %1687 = vmatprep.subr.mxu0 0.0
        %1688 = vmatpush1.msra.mxu0 %v1662
        %1689 = vmatprep.subr.mxu0 0.0
        %1690 = vmatpush1.msra.mxu0 %v1663
        %1691 = vmatprep.subr.mxu0 0.0
        %1692 = vmatpush1.msra.mxu0 0.0
        %1693 = vmatprep.subr.mxu0 0.0
        %1694 = vmatpush1.msra.mxu0 0.0
        %1695 = vmatprep.subr.mxu0 0.0
        %1696 = vmatpush1.msra.mxu0 0.0
        %1697 = vmatprep.subr.mxu0 0.0
        %1698 = vmatpush1.msra.mxu0 0.0
        %1699 = vmatprep.subr.mxu0 0.0
        %1700 = vmatpush1.msra.mxu0 0.0
        %1701 = vmatprep.subr.mxu0 0.0
        %1702 = vmatpush1.msra.mxu0 0.0
        %1703 = vmatprep.subr.mxu0 0.0
        %1704 = vmatpush1.msra.mxu0 0.0
        %1705 = vmatprep.subr.mxu0 0.0
        %1706 = vmatpush1.msra.mxu0 0.0
        %1707 = vmatprep.subr.mxu0 0.0
        %1708 = vmatpush1.msra.mxu0 0.0
        %1709 = vmatprep.subr.mxu0 0.0
        %1710 = vmatpush1.msra.mxu0 0.0
        %1711 = vmatprep.subr.mxu0 0.0
        %1712 = vmatpush1.msra.mxu0 0.0
        %1713 = vmatprep.subr.mxu0 0.0
        %1714 = vmatpush1.msra.mxu0 0.0
        %1715 = vmatprep.subr.mxu0 0.0
        %1716 = vmatpush1.msra.mxu0 0.0
        %1717 = vmatprep.subr.mxu0 0.0
        %1718 = vmatpush1.msra.mxu0 0.0
        %1719 = vmatprep.subr.mxu0 0.0
        %1720 = vmatpush1.msra.mxu0 0.0
        %1721 = vmatprep.subr.mxu0 0.0
        %1722 = vmatpush1.msra.mxu0 0.0
        %1723 = vmatprep.subr.mxu0 0.0
        %1724 = vmatpush1.msra.mxu0 0.0
        %1725 = vmatprep.subr.mxu0 0.0
        %1726 = vmatpush1.msra.mxu0 0.0
        %1727 = vmatprep.subr.mxu0 0.0
        %1728 = vmatpush1.msra.mxu0 0.0
        %1729 = vmatprep.subr.mxu0 0.0
        %1730 = vmatpush1.msra.mxu0 0.0
        %1731 = vmatprep.subr.mxu0 0.0
        %1732 = vmatpush1.msra.mxu0 0.0
        %1733 = vmatprep.subr.mxu0 0.0
        %1734 = vmatpush1.msra.mxu0 0.0
        %1735 = vmatprep.subr.mxu0 0.0
        %1736 = vmatpush1.msra.mxu0 0.0
        %1737 = vmatprep.subr.mxu0 0.0
        %1738 = vmatpush1.msra.mxu0 0.0
        %1739 = vmatprep.mubr.f32.mxu0 0.0
        %1740 = vmatmul.mubr.f32.gmra.mrb[0].mxu0 %v1673
        %v1741 = vpop.f32.mrb[0].mxu0
        %v1742 = vadd.f32 %v1669, %v1741
        %v1743 = vpop.f32.mrb[0].mxu0
        %1744 = vdwg.mxu0
        %v1745 = vadd.f32 %v1742, %v1562
        %v1746 = vld [vmem:[%s14] sm:$0x1]
        %v1747 = vld [vmem:[%s15] sm:$0x1]
        %v1748 = vsel %vm642, %v1745, 0.0
        %1749 = vadd.xlane.f32.xlu0 %v1748
        %v1750 = vpop.xlane.xlu0 %1749
        %v1751 = vmul.f32 %v1750, %v646
        %v1752 = vsub.f32 %v1745, %v1751
        %v1753 = vmul.f32 %v1752, %v1752
        %v1754 = vsel %vm642, %v1753, 0.0
        %1755 = vadd.xlane.f32.xlu0 %v1754
        %v1756 = vpop.xlane.xlu0 %1755
        %v1757 = vmul.f32 %v1756, %v646
        %v1758 = vadd.f32 %v1757, 1e-05
        %v1759 = vrsqrt.pop %v1758
        %v1760 = vmul.f32 %v1752, %v1759
        %v1762 = vlaneseq
        %v1763 = vshrl.u32 %v1762, 7
        %v1764 = vsub.s32 0, %v1763
        %v1765 = vrot.slane %v1746, %v1764
        %v1767 = vmul.f32 %v1760, %v1765
        %v1769 = vlaneseq
        %v1770 = vshrl.u32 %v1769, 7
        %v1771 = vsub.s32 0, %v1770
        %v1772 = vrot.slane %v1747, %v1771
        %v1774 = vadd.f32 %v1767, %v1772
        %s1775 = scalar_lea.vmem %s4, 32
        %v1776 = vld [vmem:[%s1775] sm:$0xff]
        %v1777 = vld [vmem:[%s1775 + $0x8] sm:$0xff]
        %v1778 = vld [vmem:[%s1775 + $0x10] sm:$0xff]
        %v1779 = vld [vmem:[%s1775 + $0x18] sm:$0xff]
        %s1780 = scalar_lea.vmem %s5, 1
        %v1781 = vld [vmem:[%s1780] sm:$0x1]
        %v1783 = vlaneseq
        %v1784 = vshrl.u32 %v1783, 7
        %v1785 = vsub.s32 0, %v1784
        %v1786 = vrot.slane %v1781, %v1785
        %v1789 = vsel %vm642, %v1774, 0
        %1791 = vmatprep.subr.mxu0 0.0
        %1792 = vmatpush1.msra.mxu0 %v1776
        %1793 = vmatprep.subr.mxu0 0.0
        %1794 = vmatpush1.msra.mxu0 %v1777
        %1795 = vmatprep.subr.mxu0 0.0
        %1796 = vmatpush1.msra.mxu0 %v1778
        %1797 = vmatprep.subr.mxu0 0.0
        %1798 = vmatpush1.msra.mxu0 %v1779
        %1799 = vmatprep.subr.mxu0 0.0
        %1800 = vmatpush1.msra.mxu0 0.0
        %1801 = vmatprep.subr.mxu0 0.0
        %1802 = vmatpush1.msra.mxu0 0.0
        %1803 = vmatprep.subr.mxu0 0.0
        %1804 = vmatpush1.msra.mxu0 0.0
        %1805 = vmatprep.subr.mxu0 0.0
        %1806 = vmatpush1.msra.mxu0 0.0
        %1807 = vmatprep.subr.mxu0 0.0
        %1808 = vmatpush1.msra.mxu0 0.0
        %1809 = vmatprep.subr.mxu0 0.0
        %1810 = vmatpush1.msra.mxu0 0.0
        %1811 = vmatprep.subr.mxu0 0.0
        %1812 = vmatpush1.msra.mxu0 0.0
        %1813 = vmatprep.subr.mxu0 0.0
        %1814 = vmatpush1.msra.mxu0 0.0
        %1815 = vmatprep.subr.mxu0 0.0
        %1816 = vmatpush1.msra.mxu0 0.0
        %1817 = vmatprep.subr.mxu0 0.0
        %1818 = vmatpush1.msra.mxu0 0.0
        %1819 = vmatprep.subr.mxu0 0.0
        %1820 = vmatpush1.msra.mxu0 0.0
        %1821 = vmatprep.subr.mxu0 0.0
        %1822 = vmatpush1.msra.mxu0 0.0
        %1823 = vmatprep.subr.mxu0 0.0
        %1824 = vmatpush1.msra.mxu0 0.0
        %1825 = vmatprep.subr.mxu0 0.0
        %1826 = vmatpush1.msra.mxu0 0.0
        %1827 = vmatprep.subr.mxu0 0.0
        %1828 = vmatpush1.msra.mxu0 0.0
        %1829 = vmatprep.subr.mxu0 0.0
        %1830 = vmatpush1.msra.mxu0 0.0
        %1831 = vmatprep.subr.mxu0 0.0
        %1832 = vmatpush1.msra.mxu0 0.0
        %1833 = vmatprep.subr.mxu0 0.0
        %1834 = vmatpush1.msra.mxu0 0.0
        %1835 = vmatprep.subr.mxu0 0.0
        %1836 = vmatpush1.msra.mxu0 0.0
        %1837 = vmatprep.subr.mxu0 0.0
        %1838 = vmatpush1.msra.mxu0 0.0
        %1839 = vmatprep.subr.mxu0 0.0
        %1840 = vmatpush1.msra.mxu0 0.0
        %1841 = vmatprep.subr.mxu0 0.0
        %1842 = vmatpush1.msra.mxu0 0.0
        %1843 = vmatprep.subr.mxu0 0.0
        %1844 = vmatpush1.msra.mxu0 0.0
        %1845 = vmatprep.subr.mxu0 0.0
        %1846 = vmatpush1.msra.mxu0 0.0
        %1847 = vmatprep.subr.mxu0 0.0
        %1848 = vmatpush1.msra.mxu0 0.0
        %1849 = vmatprep.subr.mxu0 0.0
        %1850 = vmatpush1.msra.mxu0 0.0
        %1851 = vmatprep.subr.mxu0 0.0
        %1852 = vmatpush1.msra.mxu0 0.0
        %1853 = vmatprep.subr.mxu0 0.0
        %1854 = vmatpush1.msra.mxu0 0.0
        %1855 = vmatprep.mubr.f32.mxu0 0.0
        %1856 = vmatmul.mubr.f32.gmra.mrb[0].mxu0 %v1789
        %v1857 = vpop.f32.mrb[0].mxu0
        %v1858 = vadd.f32 %v1786, %v1857
        %v1859 = vpop.f32.mrb[0].mxu0
        %1860 = vdwg.mxu0
        %1862 = vrot.lane.b32.xlu0 %v1858, 96
        %v1863 = vpop.permute.xlu0 %1862
        %v1864 = vsel %vm758, %v1858, 0
        %v1866 = vsel %vm758, %v1863, 0
        %1868 = vmatprep.subr.mxu0 0.0
        %1869 = vmatpush1.xpose.msra.mxu0 %v1866
        %1870 = vmatprep.subr.mxu0 0.0
        %1871 = vmatpush1.xpose.msra.mxu0 0.0
        %1872 = vmatprep.subr.mxu0 0.0
        %1873 = vmatpush1.xpose.msra.mxu0 0.0
        %1874 = vmatprep.subr.mxu0 0.0
        %1875 = vmatpush1.xpose.msra.mxu0 0.0
        %1876 = vmatprep.subr.mxu0 0.0
        %1877 = vmatpush1.xpose.msra.mxu0 0.0
        %1878 = vmatprep.subr.mxu0 0.0
        %1879 = vmatpush1.xpose.msra.mxu0 0.0
        %1880 = vmatprep.subr.mxu0 0.0
        %1881 = vmatpush1.xpose.msra.mxu0 0.0
        %1882 = vmatprep.subr.mxu0 0.0
        %1883 = vmatpush1.xpose.msra.mxu0 0.0
        %1884 = vmatprep.subr.mxu0 0.0
        %1885 = vmatpush1.xpose.msra.mxu0 0.0
        %1886 = vmatprep.subr.mxu0 0.0
        %1887 = vmatpush1.xpose.msra.mxu0 0.0
        %1888 = vmatprep.subr.mxu0 0.0
        %1889 = vmatpush1.xpose.msra.mxu0 0.0
        %1890 = vmatprep.subr.mxu0 0.0
        %1891 = vmatpush1.xpose.msra.mxu0 0.0
        %1892 = vmatprep.subr.mxu0 0.0
        %1893 = vmatpush1.xpose.msra.mxu0 0.0
        %1894 = vmatprep.subr.mxu0 0.0
        %1895 = vmatpush1.xpose.msra.mxu0 0.0
        %1896 = vmatprep.subr.mxu0 0.0
        %1897 = vmatpush1.xpose.msra.mxu0 0.0
        %1898 = vmatprep.subr.mxu0 0.0
        %1899 = vmatpush1.xpose.msra.mxu0 0.0
        %1900 = vmatprep.subr.mxu0 0.0
        %1901 = vmatpush1.xpose.msra.mxu0 0.0
        %1902 = vmatprep.subr.mxu0 0.0
        %1903 = vmatpush1.xpose.msra.mxu0 0.0
        %1904 = vmatprep.subr.mxu0 0.0
        %1905 = vmatpush1.xpose.msra.mxu0 0.0
        %1906 = vmatprep.subr.mxu0 0.0
        %1907 = vmatpush1.xpose.msra.mxu0 0.0
        %1908 = vmatprep.subr.mxu0 0.0
        %1909 = vmatpush1.xpose.msra.mxu0 0.0
        %1910 = vmatprep.subr.mxu0 0.0
        %1911 = vmatpush1.xpose.msra.mxu0 0.0
        %1912 = vmatprep.subr.mxu0 0.0
        %1913 = vmatpush1.xpose.msra.mxu0 0.0
        %1914 = vmatprep.subr.mxu0 0.0
        %1915 = vmatpush1.xpose.msra.mxu0 0.0
        %1916 = vmatprep.subr.mxu0 0.0
        %1917 = vmatpush1.xpose.msra.mxu0 0.0
        %1918 = vmatprep.subr.mxu0 0.0
        %1919 = vmatpush1.xpose.msra.mxu0 0.0
        %1920 = vmatprep.subr.mxu0 0.0
        %1921 = vmatpush1.xpose.msra.mxu0 0.0
        %1922 = vmatprep.subr.mxu0 0.0
        %1923 = vmatpush1.xpose.msra.mxu0 0.0
        %1924 = vmatprep.subr.mxu0 0.0
        %1925 = vmatpush1.xpose.msra.mxu0 0.0
        %1926 = vmatprep.subr.mxu0 0.0
        %1927 = vmatpush1.xpose.msra.mxu0 0.0
        %1928 = vmatprep.subr.mxu0 0.0
        %1929 = vmatpush1.xpose.msra.mxu0 0.0
        %1930 = vmatprep.subr.mxu0 0.0
        %1931 = vmatpush1.xpose.msra.mxu0 0.0
        %1932 = vmatprep.mubr.f32.mxu0 0.0
        %1933 = vmatmul.mubr.f32.gmra.mrb[0].mxu0 %v1864
        %v1934 = vpop.f32.mrb[0].mxu0
        %v1935 = vadd.f32 0.0, %v1934
        %v1936 = vpop.f32.mrb[0].mxu0
        %1937 = vdwg.mxu0
        %v1938 = vmul.f32 %v1935, 0.35355338
        %v1939 = vadd.f32 %v1938, %v838
        %v1940 = vsel %vm758, %v1939, -inf
        %1941 = vmax.xlane.f32.xlu0 %v1940
        %v1942 = vpop.xlane.xlu0 %1941
        %v1943 = vsub.f32 %v1939, %v1942
        %v1944 = vmul.f32 %v1943, 1.442695
        %v1945 = vpow.pop %v1944
        %v1946 = vsel %vm758, %v1945, 0.0
        %1947 = vadd.xlane.f32.xlu0 %v1946
        %v1948 = vpop.xlane.xlu0 %1947
        %v1949 = vrcp.pop %v1948
        %v1950 = vmul.f32 %v1945, %v1949
        %1951 = vrot.lane.b32.xlu0 %v1858, 64
        %v1952 = vpop.permute.xlu0 %1951
        %v1955 = vsel %vm758, %v1950, 0
        %1957 = vmatprep.subr.mxu0 0.0
        %1958 = vmatpush1.msra.mxu0 %v1952
        %1959 = vmatprep.subr.mxu0 0.0
        %1960 = vmatpush1.msra.mxu0 0.0
        %1961 = vmatprep.subr.mxu0 0.0
        %1962 = vmatpush1.msra.mxu0 0.0
        %1963 = vmatprep.subr.mxu0 0.0
        %1964 = vmatpush1.msra.mxu0 0.0
        %1965 = vmatprep.subr.mxu0 0.0
        %1966 = vmatpush1.msra.mxu0 0.0
        %1967 = vmatprep.subr.mxu0 0.0
        %1968 = vmatpush1.msra.mxu0 0.0
        %1969 = vmatprep.subr.mxu0 0.0
        %1970 = vmatpush1.msra.mxu0 0.0
        %1971 = vmatprep.subr.mxu0 0.0
        %1972 = vmatpush1.msra.mxu0 0.0
        %1973 = vmatprep.subr.mxu0 0.0
        %1974 = vmatpush1.msra.mxu0 0.0
        %1975 = vmatprep.subr.mxu0 0.0
        %1976 = vmatpush1.msra.mxu0 0.0
        %1977 = vmatprep.subr.mxu0 0.0
        %1978 = vmatpush1.msra.mxu0 0.0
        %1979 = vmatprep.subr.mxu0 0.0
        %1980 = vmatpush1.msra.mxu0 0.0
        %1981 = vmatprep.subr.mxu0 0.0
        %1982 = vmatpush1.msra.mxu0 0.0
        %1983 = vmatprep.subr.mxu0 0.0
        %1984 = vmatpush1.msra.mxu0 0.0
        %1985 = vmatprep.subr.mxu0 0.0
        %1986 = vmatpush1.msra.mxu0 0.0
        %1987 = vmatprep.subr.mxu0 0.0
        %1988 = vmatpush1.msra.mxu0 0.0
        %1989 = vmatprep.subr.mxu0 0.0
        %1990 = vmatpush1.msra.mxu0 0.0
        %1991 = vmatprep.subr.mxu0 0.0
        %1992 = vmatpush1.msra.mxu0 0.0
        %1993 = vmatprep.subr.mxu0 0.0
        %1994 = vmatpush1.msra.mxu0 0.0
        %1995 = vmatprep.subr.mxu0 0.0
        %1996 = vmatpush1.msra.mxu0 0.0
        %1997 = vmatprep.subr.mxu0 0.0
        %1998 = vmatpush1.msra.mxu0 0.0
        %1999 = vmatprep.subr.mxu0 0.0
        %2000 = vmatpush1.msra.mxu0 0.0
        %2001 = vmatprep.subr.mxu0 0.0
        %2002 = vmatpush1.msra.mxu0 0.0
        %2003 = vmatprep.subr.mxu0 0.0
        %2004 = vmatpush1.msra.mxu0 0.0
        %2005 = vmatprep.subr.mxu0 0.0
        %2006 = vmatpush1.msra.mxu0 0.0
        %2007 = vmatprep.subr.mxu0 0.0
        %2008 = vmatpush1.msra.mxu0 0.0
        %2009 = vmatprep.subr.mxu0 0.0
        %2010 = vmatpush1.msra.mxu0 0.0
        %2011 = vmatprep.subr.mxu0 0.0
        %2012 = vmatpush1.msra.mxu0 0.0
        %2013 = vmatprep.subr.mxu0 0.0
        %2014 = vmatpush1.msra.mxu0 0.0
        %2015 = vmatprep.subr.mxu0 0.0
        %2016 = vmatpush1.msra.mxu0 0.0
        %2017 = vmatprep.subr.mxu0 0.0
        %2018 = vmatpush1.msra.mxu0 0.0
        %2019 = vmatprep.subr.mxu0 0.0
        %2020 = vmatpush1.msra.mxu0 0.0
        %2021 = vmatprep.mubr.f32.mxu0 0.0
        %2022 = vmatmul.mubr.f32.gmra.mrb[0].mxu0 %v1955
        %v2023 = vpop.f32.mrb[0].mxu0
        %v2024 = vadd.f32 0.0, %v2023
        %v2025 = vpop.f32.mrb[0].mxu0
        %2026 = vdwg.mxu0
        %2027 = vst.msk [vmem:[#allocation2] sm:$0xff] %vm758, %v2024
        %2028 = vrot.lane.b32.xlu0 %v1858, 120
        %v2029 = vpop.permute.xlu0 %2028
        %2030 = vrot.lane.b32.xlu0 %v1858, 88
        %v2031 = vpop.permute.xlu0 %2030
        %v2032 = vsel %vm758, %v2029, 0
        %v2034 = vsel %vm758, %v2031, 0
        %2036 = vmatprep.subr.mxu0 0.0
        %2037 = vmatpush1.xpose.msra.mxu0 %v2034
        %2038 = vmatprep.subr.mxu0 0.0
        %2039 = vmatpush1.xpose.msra.mxu0 0.0
        %2040 = vmatprep.subr.mxu0 0.0
        %2041 = vmatpush1.xpose.msra.mxu0 0.0
        %2042 = vmatprep.subr.mxu0 0.0
        %2043 = vmatpush1.xpose.msra.mxu0 0.0
        %2044 = vmatprep.subr.mxu0 0.0
        %2045 = vmatpush1.xpose.msra.mxu0 0.0
        %2046 = vmatprep.subr.mxu0 0.0
        %2047 = vmatpush1.xpose.msra.mxu0 0.0
        %2048 = vmatprep.subr.mxu0 0.0
        %2049 = vmatpush1.xpose.msra.mxu0 0.0
        %2050 = vmatprep.subr.mxu0 0.0
        %2051 = vmatpush1.xpose.msra.mxu0 0.0
        %2052 = vmatprep.subr.mxu0 0.0
        %2053 = vmatpush1.xpose.msra.mxu0 0.0
        %2054 = vmatprep.subr.mxu0 0.0
        %2055 = vmatpush1.xpose.msra.mxu0 0.0
        %2056 = vmatprep.subr.mxu0 0.0
        %2057 = vmatpush1.xpose.msra.mxu0 0.0
        %2058 = vmatprep.subr.mxu0 0.0
        %2059 = vmatpush1.xpose.msra.mxu0 0.0
        %2060 = vmatprep.subr.mxu0 0.0
        %2061 = vmatpush1.xpose.msra.mxu0 0.0
        %2062 = vmatprep.subr.mxu0 0.0
        %2063 = vmatpush1.xpose.msra.mxu0 0.0
        %2064 = vmatprep.subr.mxu0 0.0
        %2065 = vmatpush1.xpose.msra.mxu0 0.0
        %2066 = vmatprep.subr.mxu0 0.0
        %2067 = vmatpush1.xpose.msra.mxu0 0.0
        %2068 = vmatprep.subr.mxu0 0.0
        %2069 = vmatpush1.xpose.msra.mxu0 0.0
        %2070 = vmatprep.subr.mxu0 0.0
        %2071 = vmatpush1.xpose.msra.mxu0 0.0
        %2072 = vmatprep.subr.mxu0 0.0
        %2073 = vmatpush1.xpose.msra.mxu0 0.0
        %2074 = vmatprep.subr.mxu0 0.0
        %2075 = vmatpush1.xpose.msra.mxu0 0.0
        %2076 = vmatprep.subr.mxu0 0.0
        %2077 = vmatpush1.xpose.msra.mxu0 0.0
        %2078 = vmatprep.subr.mxu0 0.0
        %2079 = vmatpush1.xpose.msra.mxu0 0.0
        %2080 = vmatprep.subr.mxu0 0.0
        %2081 = vmatpush1.xpose.msra.mxu0 0.0
        %2082 = vmatprep.subr.mxu0 0.0
        %2083 = vmatpush1.xpose.msra.mxu0 0.0
        %2084 = vmatprep.subr.mxu0 0.0
        %2085 = vmatpush1.xpose.msra.mxu0 0.0
        %2086 = vmatprep.subr.mxu0 0.0
        %2087 = vmatpush1.xpose.msra.mxu0 0.0
        %2088 = vmatprep.subr.mxu0 0.0
        %2089 = vmatpush1.xpose.msra.mxu0 0.0
        %2090 = vmatprep.subr.mxu0 0.0
        %2091 = vmatpush1.xpose.msra.mxu0 0.0
        %2092 = vmatprep.subr.mxu0 0.0
        %2093 = vmatpush1.xpose.msra.mxu0 0.0
        %2094 = vmatprep.subr.mxu0 0.0
        %2095 = vmatpush1.xpose.msra.mxu0 0.0
        %2096 = vmatprep.subr.mxu0 0.0
        %2097 = vmatpush1.xpose.msra.mxu0 0.0
        %2098 = vmatprep.subr.mxu0 0.0
        %2099 = vmatpush1.xpose.msra.mxu0 0.0
        %2100 = vmatprep.mubr.f32.mxu0 0.0
        %2101 = vmatmul.mubr.f32.gmra.mrb[0].mxu0 %v2032
        %v2102 = vpop.f32.mrb[0].mxu0
        %v2103 = vadd.f32 0.0, %v2102
        %v2104 = vpop.f32.mrb[0].mxu0
        %2105 = vdwg.mxu0
        %v2106 = vmul.f32 %v2103, 0.35355338
        %v2107 = vadd.f32 %v2106, %v838
        %v2108 = vsel %vm758, %v2107, -inf
        %2109 = vmax.xlane.f32.xlu0 %v2108
        %v2110 = vpop.xlane.xlu0 %2109
        %v2111 = vsub.f32 %v2107, %v2110
        %v2112 = vmul.f32 %v2111, 1.442695
        %v2113 = vpow.pop %v2112
        %v2114 = vsel %vm758, %v2113, 0.0
        %2115 = vadd.xlane.f32.xlu0 %v2114
        %v2116 = vpop.xlane.xlu0 %2115
        %v2117 = vrcp.pop %v2116
        %v2118 = vmul.f32 %v2113, %v2117
        %2119 = vrot.lane.b32.xlu0 %v1858, 56
        %v2120 = vpop.permute.xlu0 %2119
        %v2123 = vsel %vm758, %v2118, 0
        %2125 = vmatprep.subr.mxu0 0.0
        %2126 = vmatpush1.msra.mxu0 %v2120
        %2127 = vmatprep.subr.mxu0 0.0
        %2128 = vmatpush1.msra.mxu0 0.0
        %2129 = vmatprep.subr.mxu0 0.0
        %2130 = vmatpush1.msra.mxu0 0.0
        %2131 = vmatprep.subr.mxu0 0.0
        %2132 = vmatpush1.msra.mxu0 0.0
        %2133 = vmatprep.subr.mxu0 0.0
        %2134 = vmatpush1.msra.mxu0 0.0
        %2135 = vmatprep.subr.mxu0 0.0
        %2136 = vmatpush1.msra.mxu0 0.0
        %2137 = vmatprep.subr.mxu0 0.0
        %2138 = vmatpush1.msra.mxu0 0.0
        %2139 = vmatprep.subr.mxu0 0.0
        %2140 = vmatpush1.msra.mxu0 0.0
        %2141 = vmatprep.subr.mxu0 0.0
        %2142 = vmatpush1.msra.mxu0 0.0
        %2143 = vmatprep.subr.mxu0 0.0
        %2144 = vmatpush1.msra.mxu0 0.0
        %2145 = vmatprep.subr.mxu0 0.0
        %2146 = vmatpush1.msra.mxu0 0.0
        %2147 = vmatprep.subr.mxu0 0.0
        %2148 = vmatpush1.msra.mxu0 0.0
        %2149 = vmatprep.subr.mxu0 0.0
        %2150 = vmatpush1.msra.mxu0 0.0
        %2151 = vmatprep.subr.mxu0 0.0
        %2152 = vmatpush1.msra.mxu0 0.0
        %2153 = vmatprep.subr.mxu0 0.0
        %2154 = vmatpush1.msra.mxu0 0.0
        %2155 = vmatprep.subr.mxu0 0.0
        %2156 = vmatpush1.msra.mxu0 0.0
        %2157 = vmatprep.subr.mxu0 0.0
        %2158 = vmatpush1.msra.mxu0 0.0
        %2159 = vmatprep.subr.mxu0 0.0
        %2160 = vmatpush1.msra.mxu0 0.0
        %2161 = vmatprep.subr.mxu0 0.0
        %2162 = vmatpush1.msra.mxu0 0.0
        %2163 = vmatprep.subr.mxu0 0.0
        %2164 = vmatpush1.msra.mxu0 0.0
        %2165 = vmatprep.subr.mxu0 0.0
        %2166 = vmatpush1.msra.mxu0 0.0
        %2167 = vmatprep.subr.mxu0 0.0
        %2168 = vmatpush1.msra.mxu0 0.0
        %2169 = vmatprep.subr.mxu0 0.0
        %2170 = vmatpush1.msra.mxu0 0.0
        %2171 = vmatprep.subr.mxu0 0.0
        %2172 = vmatpush1.msra.mxu0 0.0
        %2173 = vmatprep.subr.mxu0 0.0
        %2174 = vmatpush1.msra.mxu0 0.0
        %2175 = vmatprep.subr.mxu0 0.0
        %2176 = vmatpush1.msra.mxu0 0.0
        %2177 = vmatprep.subr.mxu0 0.0
        %2178 = vmatpush1.msra.mxu0 0.0
        %2179 = vmatprep.subr.mxu0 0.0
        %2180 = vmatpush1.msra.mxu0 0.0
        %2181 = vmatprep.subr.mxu0 0.0
        %2182 = vmatpush1.msra.mxu0 0.0
        %2183 = vmatprep.subr.mxu0 0.0
        %2184 = vmatpush1.msra.mxu0 0.0
        %2185 = vmatprep.subr.mxu0 0.0
        %2186 = vmatpush1.msra.mxu0 0.0
        %2187 = vmatprep.subr.mxu0 0.0
        %2188 = vmatpush1.msra.mxu0 0.0
        %2189 = vmatprep.mubr.f32.mxu0 0.0
        %2190 = vmatmul.mubr.f32.gmra.mrb[0].mxu0 %v2123
        %v2191 = vpop.f32.mrb[0].mxu0
        %v2192 = vadd.f32 0.0, %v2191
        %v2193 = vpop.f32.mrb[0].mxu0
        %2194 = vdwg.mxu0
        %2196 = vrot.lane.b32.xlu0 %v2192, 8
        %v2197 = vpop.permute.xlu0 %2196
        %2199 = vst.msk [vmem:[#allocation2] sm:$0xff] %vm1100, %v2197
        %2200 = vrot.lane.b32.xlu0 %v1858, 112
        %v2201 = vpop.permute.xlu0 %2200
        %2202 = vrot.lane.b32.xlu0 %v1858, 80
        %v2203 = vpop.permute.xlu0 %2202
        %v2204 = vsel %vm758, %v2201, 0
        %v2206 = vsel %vm758, %v2203, 0
        %2208 = vmatprep.subr.mxu0 0.0
        %2209 = vmatpush1.xpose.msra.mxu0 %v2206
        %2210 = vmatprep.subr.mxu0 0.0
        %2211 = vmatpush1.xpose.msra.mxu0 0.0
        %2212 = vmatprep.subr.mxu0 0.0
        %2213 = vmatpush1.xpose.msra.mxu0 0.0
        %2214 = vmatprep.subr.mxu0 0.0
        %2215 = vmatpush1.xpose.msra.mxu0 0.0
        %2216 = vmatprep.subr.mxu0 0.0
        %2217 = vmatpush1.xpose.msra.mxu0 0.0
        %2218 = vmatprep.subr.mxu0 0.0
        %2219 = vmatpush1.xpose.msra.mxu0 0.0
        %2220 = vmatprep.subr.mxu0 0.0
        %2221 = vmatpush1.xpose.msra.mxu0 0.0
        %2222 = vmatprep.subr.mxu0 0.0
        %2223 = vmatpush1.xpose.msra.mxu0 0.0
        %2224 = vmatprep.subr.mxu0 0.0
        %2225 = vmatpush1.xpose.msra.mxu0 0.0
        %2226 = vmatprep.subr.mxu0 0.0
        %2227 = vmatpush1.xpose.msra.mxu0 0.0
        %2228 = vmatprep.subr.mxu0 0.0
        %2229 = vmatpush1.xpose.msra.mxu0 0.0
        %2230 = vmatprep.subr.mxu0 0.0
        %2231 = vmatpush1.xpose.msra.mxu0 0.0
        %2232 = vmatprep.subr.mxu0 0.0
        %2233 = vmatpush1.xpose.msra.mxu0 0.0
        %2234 = vmatprep.subr.mxu0 0.0
        %2235 = vmatpush1.xpose.msra.mxu0 0.0
        %2236 = vmatprep.subr.mxu0 0.0
        %2237 = vmatpush1.xpose.msra.mxu0 0.0
        %2238 = vmatprep.subr.mxu0 0.0
        %2239 = vmatpush1.xpose.msra.mxu0 0.0
        %2240 = vmatprep.subr.mxu0 0.0
        %2241 = vmatpush1.xpose.msra.mxu0 0.0
        %2242 = vmatprep.subr.mxu0 0.0
        %2243 = vmatpush1.xpose.msra.mxu0 0.0
        %2244 = vmatprep.subr.mxu0 0.0
        %2245 = vmatpush1.xpose.msra.mxu0 0.0
        %2246 = vmatprep.subr.mxu0 0.0
        %2247 = vmatpush1.xpose.msra.mxu0 0.0
        %2248 = vmatprep.subr.mxu0 0.0
        %2249 = vmatpush1.xpose.msra.mxu0 0.0
        %2250 = vmatprep.subr.mxu0 0.0
        %2251 = vmatpush1.xpose.msra.mxu0 0.0
        %2252 = vmatprep.subr.mxu0 0.0
        %2253 = vmatpush1.xpose.msra.mxu0 0.0
        %2254 = vmatprep.subr.mxu0 0.0
        %2255 = vmatpush1.xpose.msra.mxu0 0.0
        %2256 = vmatprep.subr.mxu0 0.0
        %2257 = vmatpush1.xpose.msra.mxu0 0.0
        %2258 = vmatprep.subr.mxu0 0.0
        %2259 = vmatpush1.xpose.msra.mxu0 0.0
        %2260 = vmatprep.subr.mxu0 0.0
        %2261 = vmatpush1.xpose.msra.mxu0 0.0
        %2262 = vmatprep.subr.mxu0 0.0
        %2263 = vmatpush1.xpose.msra.mxu0 0.0
        %2264 = vmatprep.subr.mxu0 0.0
        %2265 = vmatpush1.xpose.msra.mxu0 0.0
        %2266 = vmatprep.subr.mxu0 0.0
        %2267 = vmatpush1.xpose.msra.mxu0 0.0
        %2268 = vmatprep.subr.mxu0 0.0
        %2269 = vmatpush1.xpose.msra.mxu0 0.0
        %2270 = vmatprep.subr.mxu0 0.0
        %2271 = vmatpush1.xpose.msra.mxu0 0.0
        %2272 = vmatprep.mubr.f32.mxu0 0.0
        %2273 = vmatmul.mubr.f32.gmra.mrb[0].mxu0 %v2204
        %v2274 = vpop.f32.mrb[0].mxu0
        %v2275 = vadd.f32 0.0, %v2274
        %v2276 = vpop.f32.mrb[0].mxu0
        %2277 = vdwg.mxu0
        %v2278 = vmul.f32 %v2275, 0.35355338
        %v2279 = vadd.f32 %v2278, %v838
        %v2280 = vsel %vm758, %v2279, -inf
        %2281 = vmax.xlane.f32.xlu0 %v2280
        %v2282 = vpop.xlane.xlu0 %2281
        %v2283 = vsub.f32 %v2279, %v2282
        %v2284 = vmul.f32 %v2283, 1.442695
        %v2285 = vpow.pop %v2284
        %v2286 = vsel %vm758, %v2285, 0.0
        %2287 = vadd.xlane.f32.xlu0 %v2286
        %v2288 = vpop.xlane.xlu0 %2287
        %v2289 = vrcp.pop %v2288
        %v2290 = vmul.f32 %v2285, %v2289
        %2291 = vrot.lane.b32.xlu0 %v1858, 48
        %v2292 = vpop.permute.xlu0 %2291
        %v2295 = vsel %vm758, %v2290, 0
        %2297 = vmatprep.subr.mxu0 0.0
        %2298 = vmatpush1.msra.mxu0 %v2292
        %2299 = vmatprep.subr.mxu0 0.0
        %2300 = vmatpush1.msra.mxu0 0.0
        %2301 = vmatprep.subr.mxu0 0.0
        %2302 = vmatpush1.msra.mxu0 0.0
        %2303 = vmatprep.subr.mxu0 0.0
        %2304 = vmatpush1.msra.mxu0 0.0
        %2305 = vmatprep.subr.mxu0 0.0
        %2306 = vmatpush1.msra.mxu0 0.0
        %2307 = vmatprep.subr.mxu0 0.0
        %2308 = vmatpush1.msra.mxu0 0.0
        %2309 = vmatprep.subr.mxu0 0.0
        %2310 = vmatpush1.msra.mxu0 0.0
        %2311 = vmatprep.subr.mxu0 0.0
        %2312 = vmatpush1.msra.mxu0 0.0
        %2313 = vmatprep.subr.mxu0 0.0
        %2314 = vmatpush1.msra.mxu0 0.0
        %2315 = vmatprep.subr.mxu0 0.0
        %2316 = vmatpush1.msra.mxu0 0.0
        %2317 = vmatprep.subr.mxu0 0.0
        %2318 = vmatpush1.msra.mxu0 0.0
        %2319 = vmatprep.subr.mxu0 0.0
        %2320 = vmatpush1.msra.mxu0 0.0
        %2321 = vmatprep.subr.mxu0 0.0
        %2322 = vmatpush1.msra.mxu0 0.0
        %2323 = vmatprep.subr.mxu0 0.0
        %2324 = vmatpush1.msra.mxu0 0.0
        %2325 = vmatprep.subr.mxu0 0.0
        %2326 = vmatpush1.msra.mxu0 0.0
        %2327 = vmatprep.subr.mxu0 0.0
        %2328 = vmatpush1.msra.mxu0 0.0
        %2329 = vmatprep.subr.mxu0 0.0
        %2330 = vmatpush1.msra.mxu0 0.0
        %2331 = vmatprep.subr.mxu0 0.0
        %2332 = vmatpush1.msra.mxu0 0.0
        %2333 = vmatprep.subr.mxu0 0.0
        %2334 = vmatpush1.msra.mxu0 0.0
        %2335 = vmatprep.subr.mxu0 0.0
        %2336 = vmatpush1.msra.mxu0 0.0
        %2337 = vmatprep.subr.mxu0 0.0
        %2338 = vmatpush1.msra.mxu0 0.0
        %2339 = vmatprep.subr.mxu0 0.0
        %2340 = vmatpush1.msra.mxu0 0.0
        %2341 = vmatprep.subr.mxu0 0.0
        %2342 = vmatpush1.msra.mxu0 0.0
        %2343 = vmatprep.subr.mxu0 0.0
        %2344 = vmatpush1.msra.mxu0 0.0
        %2345 = vmatprep.subr.mxu0 0.0
        %2346 = vmatpush1.msra.mxu0 0.0
        %2347 = vmatprep.subr.mxu0 0.0
        %2348 = vmatpush1.msra.mxu0 0.0
        %2349 = vmatprep.subr.mxu0 0.0
        %2350 = vmatpush1.msra.mxu0 0.0
        %2351 = vmatprep.subr.mxu0 0.0
        %2352 = vmatpush1.msra.mxu0 0.0
        %2353 = vmatprep.subr.mxu0 0.0
        %2354 = vmatpush1.msra.mxu0 0.0
        %2355 = vmatprep.subr.mxu0 0.0
        %2356 = vmatpush1.msra.mxu0 0.0
        %2357 = vmatprep.subr.mxu0 0.0
        %2358 = vmatpush1.msra.mxu0 0.0
        %2359 = vmatprep.subr.mxu0 0.0
        %2360 = vmatpush1.msra.mxu0 0.0
        %2361 = vmatprep.mubr.f32.mxu0 0.0
        %2362 = vmatmul.mubr.f32.gmra.mrb[0].mxu0 %v2295
        %v2363 = vpop.f32.mrb[0].mxu0
        %v2364 = vadd.f32 0.0, %v2363
        %v2365 = vpop.f32.mrb[0].mxu0
        %2366 = vdwg.mxu0
        %2368 = vrot.lane.b32.xlu0 %v2364, 16
        %v2369 = vpop.permute.xlu0 %2368
        %2371 = vst.msk [vmem:[#allocation2] sm:$0xff] %vm1273, %v2369
        %2372 = vrot.lane.b32.xlu0 %v1858, 104
        %v2373 = vpop.permute.xlu0 %2372
        %2374 = vrot.lane.b32.xlu0 %v1858, 72
        %v2375 = vpop.permute.xlu0 %2374
        %v2376 = vsel %vm758, %v2373, 0
        %v2378 = vsel %vm758, %v2375, 0
        %2380 = vmatprep.subr.mxu0 0.0
        %2381 = vmatpush1.xpose.msra.mxu0 %v2378
        %2382 = vmatprep.subr.mxu0 0.0
        %2383 = vmatpush1.xpose.msra.mxu0 0.0
        %2384 = vmatprep.subr.mxu0 0.0
        %2385 = vmatpush1.xpose.msra.mxu0 0.0
        %2386 = vmatprep.subr.mxu0 0.0
        %2387 = vmatpush1.xpose.msra.mxu0 0.0
        %2388 = vmatprep.subr.mxu0 0.0
        %2389 = vmatpush1.xpose.msra.mxu0 0.0
        %2390 = vmatprep.subr.mxu0 0.0
        %2391 = vmatpush1.xpose.msra.mxu0 0.0
        %2392 = vmatprep.subr.mxu0 0.0
        %2393 = vmatpush1.xpose.msra.mxu0 0.0
        %2394 = vmatprep.subr.mxu0 0.0
        %2395 = vmatpush1.xpose.msra.mxu0 0.0
        %2396 = vmatprep.subr.mxu0 0.0
        %2397 = vmatpush1.xpose.msra.mxu0 0.0
        %2398 = vmatprep.subr.mxu0 0.0
        %2399 = vmatpush1.xpose.msra.mxu0 0.0
        %2400 = vmatprep.subr.mxu0 0.0
        %2401 = vmatpush1.xpose.msra.mxu0 0.0
        %2402 = vmatprep.subr.mxu0 0.0
        %2403 = vmatpush1.xpose.msra.mxu0 0.0
        %2404 = vmatprep.subr.mxu0 0.0
        %2405 = vmatpush1.xpose.msra.mxu0 0.0
        %2406 = vmatprep.subr.mxu0 0.0
        %2407 = vmatpush1.xpose.msra.mxu0 0.0
        %2408 = vmatprep.subr.mxu0 0.0
        %2409 = vmatpush1.xpose.msra.mxu0 0.0
        %2410 = vmatprep.subr.mxu0 0.0
        %2411 = vmatpush1.xpose.msra.mxu0 0.0
        %2412 = vmatprep.subr.mxu0 0.0
        %2413 = vmatpush1.xpose.msra.mxu0 0.0
        %2414 = vmatprep.subr.mxu0 0.0
        %2415 = vmatpush1.xpose.msra.mxu0 0.0
        %2416 = vmatprep.subr.mxu0 0.0
        %2417 = vmatpush1.xpose.msra.mxu0 0.0
        %2418 = vmatprep.subr.mxu0 0.0
        %2419 = vmatpush1.xpose.msra.mxu0 0.0
        %2420 = vmatprep.subr.mxu0 0.0
        %2421 = vmatpush1.xpose.msra.mxu0 0.0
        %2422 = vmatprep.subr.mxu0 0.0
        %2423 = vmatpush1.xpose.msra.mxu0 0.0
        %2424 = vmatprep.subr.mxu0 0.0
        %2425 = vmatpush1.xpose.msra.mxu0 0.0
        %2426 = vmatprep.subr.mxu0 0.0
        %2427 = vmatpush1.xpose.msra.mxu0 0.0
        %2428 = vmatprep.subr.mxu0 0.0
        %2429 = vmatpush1.xpose.msra.mxu0 0.0
        %2430 = vmatprep.subr.mxu0 0.0
        %2431 = vmatpush1.xpose.msra.mxu0 0.0
        %2432 = vmatprep.subr.mxu0 0.0
        %2433 = vmatpush1.xpose.msra.mxu0 0.0
        %2434 = vmatprep.subr.mxu0 0.0
        %2435 = vmatpush1.xpose.msra.mxu0 0.0
        %2436 = vmatprep.subr.mxu0 0.0
        %2437 = vmatpush1.xpose.msra.mxu0 0.0
        %2438 = vmatprep.subr.mxu0 0.0
        %2439 = vmatpush1.xpose.msra.mxu0 0.0
        %2440 = vmatprep.subr.mxu0 0.0
        %2441 = vmatpush1.xpose.msra.mxu0 0.0
        %2442 = vmatprep.subr.mxu0 0.0
        %2443 = vmatpush1.xpose.msra.mxu0 0.0
        %2444 = vmatprep.mubr.f32.mxu0 0.0
        %2445 = vmatmul.mubr.f32.gmra.mrb[0].mxu0 %v2376
        %v2446 = vpop.f32.mrb[0].mxu0
        %v2447 = vadd.f32 0.0, %v2446
        %v2448 = vpop.f32.mrb[0].mxu0
        %2449 = vdwg.mxu0
        %v2450 = vmul.f32 %v2447, 0.35355338
        %v2451 = vadd.f32 %v2450, %v838
        %v2452 = vsel %vm758, %v2451, -inf
        %2453 = vmax.xlane.f32.xlu0 %v2452
        %v2454 = vpop.xlane.xlu0 %2453
        %v2455 = vsub.f32 %v2451, %v2454
        %v2456 = vmul.f32 %v2455, 1.442695
        %v2457 = vpow.pop %v2456
        %v2458 = vsel %vm758, %v2457, 0.0
        %2459 = vadd.xlane.f32.xlu0 %v2458
        %v2460 = vpop.xlane.xlu0 %2459
        %v2461 = vrcp.pop %v2460
        %v2462 = vmul.f32 %v2457, %v2461
        %2463 = vrot.lane.b32.xlu0 %v1858, 40
        %v2464 = vpop.permute.xlu0 %2463
        %v2467 = vsel %vm758, %v2462, 0
        %2469 = vmatprep.subr.mxu0 0.0
        %2470 = vmatpush1.msra.mxu0 %v2464
        %2471 = vmatprep.subr.mxu0 0.0
        %2472 = vmatpush1.msra.mxu0 0.0
        %2473 = vmatprep.subr.mxu0 0.0
        %2474 = vmatpush1.msra.mxu0 0.0
        %2475 = vmatprep.subr.mxu0 0.0
        %2476 = vmatpush1.msra.mxu0 0.0
        %2477 = vmatprep.subr.mxu0 0.0
        %2478 = vmatpush1.msra.mxu0 0.0
        %2479 = vmatprep.subr.mxu0 0.0
        %2480 = vmatpush1.msra.mxu0 0.0
        %2481 = vmatprep.subr.mxu0 0.0
        %2482 = vmatpush1.msra.mxu0 0.0
        %2483 = vmatprep.subr.mxu0 0.0
        %2484 = vmatpush1.msra.mxu0 0.0
        %2485 = vmatprep.subr.mxu0 0.0
        %2486 = vmatpush1.msra.mxu0 0.0
        %2487 = vmatprep.subr.mxu0 0.0
        %2488 = vmatpush1.msra.mxu0 0.0
        %2489 = vmatprep.subr.mxu0 0.0
        %2490 = vmatpush1.msra.mxu0 0.0
        %2491 = vmatprep.subr.mxu0 0.0
        %2492 = vmatpush1.msra.mxu0 0.0
        %2493 = vmatprep.subr.mxu0 0.0
        %2494 = vmatpush1.msra.mxu0 0.0
        %2495 = vmatprep.subr.mxu0 0.0
        %2496 = vmatpush1.msra.mxu0 0.0
        %2497 = vmatprep.subr.mxu0 0.0
        %2498 = vmatpush1.msra.mxu0 0.0
        %2499 = vmatprep.subr.mxu0 0.0
        %2500 = vmatpush1.msra.mxu0 0.0
        %2501 = vmatprep.subr.mxu0 0.0
        %2502 = vmatpush1.msra.mxu0 0.0
        %2503 = vmatprep.subr.mxu0 0.0
        %2504 = vmatpush1.msra.mxu0 0.0
        %2505 = vmatprep.subr.mxu0 0.0
        %2506 = vmatpush1.msra.mxu0 0.0
        %2507 = vmatprep.subr.mxu0 0.0
        %2508 = vmatpush1.msra.mxu0 0.0
        %2509 = vmatprep.subr.mxu0 0.0
        %2510 = vmatpush1.msra.mxu0 0.0
        %2511 = vmatprep.subr.mxu0 0.0
        %2512 = vmatpush1.msra.mxu0 0.0
        %2513 = vmatprep.subr.mxu0 0.0
        %2514 = vmatpush1.msra.mxu0 0.0
        %2515 = vmatprep.subr.mxu0 0.0
        %2516 = vmatpush1.msra.mxu0 0.0
        %2517 = vmatprep.subr.mxu0 0.0
        %2518 = vmatpush1.msra.mxu0 0.0
        %2519 = vmatprep.subr.mxu0 0.0
        %2520 = vmatpush1.msra.mxu0 0.0
        %2521 = vmatprep.subr.mxu0 0.0
        %2522 = vmatpush1.msra.mxu0 0.0
        %2523 = vmatprep.subr.mxu0 0.0
        %2524 = vmatpush1.msra.mxu0 0.0
        %2525 = vmatprep.subr.mxu0 0.0
        %2526 = vmatpush1.msra.mxu0 0.0
        %2527 = vmatprep.subr.mxu0 0.0
        %2528 = vmatpush1.msra.mxu0 0.0
        %2529 = vmatprep.subr.mxu0 0.0
        %2530 = vmatpush1.msra.mxu0 0.0
        %2531 = vmatprep.subr.mxu0 0.0
        %2532 = vmatpush1.msra.mxu0 0.0
        %2533 = vmatprep.mubr.f32.mxu0 0.0
        %2534 = vmatmul.mubr.f32.gmra.mrb[0].mxu0 %v2467
        %v2535 = vpop.f32.mrb[0].mxu0
        %v2536 = vadd.f32 0.0, %v2535
        %v2537 = vpop.f32.mrb[0].mxu0
        %2538 = vdwg.mxu0
        %2540 = vrot.lane.b32.xlu0 %v2536, 24
        %v2541 = vpop.permute.xlu0 %2540
        %2543 = vst.msk [vmem:[#allocation2] sm:$0xff] %vm1446, %v2541
        %v2544 = vld [vmem:[#allocation2] sm:$0xff]
        %s2545 = scalar_lea.vmem %s6, 32
        %v2546 = vld [vmem:[%s2545] sm:$0xff]
        %v2547 = vld [vmem:[%s2545 + $0x8] sm:$0xff]
        %v2548 = vld [vmem:[%s2545 + $0x10] sm:$0xff]
        %v2549 = vld [vmem:[%s2545 + $0x18] sm:$0xff]
        %s2550 = scalar_lea.vmem %s7, 1
        %v2551 = vld [vmem:[%s2550] sm:$0x1]
        %v2553 = vlaneseq
        %v2554 = vshrl.u32 %v2553, 7
        %v2555 = vsub.s32 0, %v2554
        %v2556 = vrot.slane %v2551, %v2555
        %v2559 = vsel %vm642, %v2544, 0
        %2561 = vmatprep.subr.mxu0 0.0
        %2562 = vmatpush1.msra.mxu0 %v2546
        %2563 = vmatprep.subr.mxu0 0.0
        %2564 = vmatpush1.msra.mxu0 %v2547
        %2565 = vmatprep.subr.mxu0 0.0
        %2566 = vmatpush1.msra.mxu0 %v2548
        %2567 = vmatprep.subr.mxu0 0.0
        %2568 = vmatpush1.msra.mxu0 %v2549
        %2569 = vmatprep.subr.mxu0 0.0
        %2570 = vmatpush1.msra.mxu0 0.0
        %2571 = vmatprep.subr.mxu0 0.0
        %2572 = vmatpush1.msra.mxu0 0.0
        %2573 = vmatprep.subr.mxu0 0.0
        %2574 = vmatpush1.msra.mxu0 0.0
        %2575 = vmatprep.subr.mxu0 0.0
        %2576 = vmatpush1.msra.mxu0 0.0
        %2577 = vmatprep.subr.mxu0 0.0
        %2578 = vmatpush1.msra.mxu0 0.0
        %2579 = vmatprep.subr.mxu0 0.0
        %2580 = vmatpush1.msra.mxu0 0.0
        %2581 = vmatprep.subr.mxu0 0.0
        %2582 = vmatpush1.msra.mxu0 0.0
        %2583 = vmatprep.subr.mxu0 0.0
        %2584 = vmatpush1.msra.mxu0 0.0
        %2585 = vmatprep.subr.mxu0 0.0
        %2586 = vmatpush1.msra.mxu0 0.0
        %2587 = vmatprep.subr.mxu0 0.0
        %2588 = vmatpush1.msra.mxu0 0.0
        %2589 = vmatprep.subr.mxu0 0.0
        %2590 = vmatpush1.msra.mxu0 0.0
        %2591 = vmatprep.subr.mxu0 0.0
        %2592 = vmatpush1.msra.mxu0 0.0
        %2593 = vmatprep.subr.mxu0 0.0
        %2594 = vmatpush1.msra.mxu0 0.0
        %2595 = vmatprep.subr.mxu0 0.0
        %2596 = vmatpush1.msra.mxu0 0.0
        %2597 = vmatprep.subr.mxu0 0.0
        %2598 = vmatpush1.msra.mxu0 0.0
        %2599 = vmatprep.subr.mxu0 0.0
        %2600 = vmatpush1.msra.mxu0 0.0
        %2601 = vmatprep.subr.mxu0 0.0
        %2602 = vmatpush1.msra.mxu0 0.0
        %2603 = vmatprep.subr.mxu0 0.0
        %2604 = vmatpush1.msra.mxu0 0.0
        %2605 = vmatprep.subr.mxu0 0.0
        %2606 = vmatpush1.msra.mxu0 0.0
        %2607 = vmatprep.subr.mxu0 0.0
        %2608 = vmatpush1.msra.mxu0 0.0
        %2609 = vmatprep.subr.mxu0 0.0
        %2610 = vmatpush1.msra.mxu0 0.0
        %2611 = vmatprep.subr.mxu0 0.0
        %2612 = vmatpush1.msra.mxu0 0.0
        %2613 = vmatprep.subr.mxu0 0.0
        %2614 = vmatpush1.msra.mxu0 0.0
        %2615 = vmatprep.subr.mxu0 0.0
        %2616 = vmatpush1.msra.mxu0 0.0
        %2617 = vmatprep.subr.mxu0 0.0
        %2618 = vmatpush1.msra.mxu0 0.0
        %2619 = vmatprep.subr.mxu0 0.0
        %2620 = vmatpush1.msra.mxu0 0.0
        %2621 = vmatprep.subr.mxu0 0.0
        %2622 = vmatpush1.msra.mxu0 0.0
        %2623 = vmatprep.subr.mxu0 0.0
        %2624 = vmatpush1.msra.mxu0 0.0
        %2625 = vmatprep.mubr.f32.mxu0 0.0
        %2626 = vmatmul.mubr.f32.gmra.mrb[0].mxu0 %v2559
        %v2627 = vpop.f32.mrb[0].mxu0
        %v2628 = vadd.f32 %v2556, %v2627
        %v2629 = vpop.f32.mrb[0].mxu0
        %2630 = vdwg.mxu0
        %v2631 = vadd.f32 %v2628, %v1774
        %s2632 = scalar_lea.vmem %s8, 1
        %v2633 = vld [vmem:[%s2632] sm:$0x1]
        %s2634 = scalar_lea.vmem %s9, 1
        %v2635 = vld [vmem:[%s2634] sm:$0x1]
        %v2636 = vsel %vm642, %v2631, 0.0
        %2637 = vadd.xlane.f32.xlu0 %v2636
        %v2638 = vpop.xlane.xlu0 %2637
        %v2639 = vmul.f32 %v2638, %v646
        %v2640 = vsub.f32 %v2631, %v2639
        %v2641 = vmul.f32 %v2640, %v2640
        %v2642 = vsel %vm642, %v2641, 0.0
        %2643 = vadd.xlane.f32.xlu0 %v2642
        %v2644 = vpop.xlane.xlu0 %2643
        %v2645 = vmul.f32 %v2644, %v646
        %v2646 = vadd.f32 %v2645, 1e-05
        %v2647 = vrsqrt.pop %v2646
        %v2648 = vmul.f32 %v2640, %v2647
        %v2650 = vlaneseq
        %v2651 = vshrl.u32 %v2650, 7
        %v2652 = vsub.s32 0, %v2651
        %v2653 = vrot.slane %v2633, %v2652
        %v2655 = vmul.f32 %v2648, %v2653
        %v2657 = vlaneseq
        %v2658 = vshrl.u32 %v2657, 7
        %v2659 = vsub.s32 0, %v2658
        %v2660 = vrot.slane %v2635, %v2659
        %v2662 = vadd.f32 %v2655, %v2660
        %s2663 = scalar_lea.vmem %s10, 32
        %v2664 = vld [vmem:[%s2663] sm:$0xff]
        %v2665 = vld [vmem:[%s2663 + $0x8] sm:$0xff]
        %v2666 = vld [vmem:[%s2663 + $0x10] sm:$0xff]
        %v2667 = vld [vmem:[%s2663 + $0x18] sm:$0xff]
        %s2668 = scalar_lea.vmem %s11, 1
        %v2669 = vld [vmem:[%s2668] sm:$0x1]
        %v2671 = vlaneseq
        %v2672 = vshrl.u32 %v2671, 7
        %v2673 = vsub.s32 0, %v2672
        %v2674 = vrot.slane %v2669, %v2673
        %v2677 = vsel %vm642, %v2662, 0
        %2679 = vmatprep.subr.mxu0 0.0
        %2680 = vmatpush1.msra.mxu0 %v2664
        %2681 = vmatprep.subr.mxu0 0.0
        %2682 = vmatpush1.msra.mxu0 %v2665
        %2683 = vmatprep.subr.mxu0 0.0
        %2684 = vmatpush1.msra.mxu0 %v2666
        %2685 = vmatprep.subr.mxu0 0.0
        %2686 = vmatpush1.msra.mxu0 %v2667
        %2687 = vmatprep.subr.mxu0 0.0
        %2688 = vmatpush1.msra.mxu0 0.0
        %2689 = vmatprep.subr.mxu0 0.0
        %2690 = vmatpush1.msra.mxu0 0.0
        %2691 = vmatprep.subr.mxu0 0.0
        %2692 = vmatpush1.msra.mxu0 0.0
        %2693 = vmatprep.subr.mxu0 0.0
        %2694 = vmatpush1.msra.mxu0 0.0
        %2695 = vmatprep.subr.mxu0 0.0
        %2696 = vmatpush1.msra.mxu0 0.0
        %2697 = vmatprep.subr.mxu0 0.0
        %2698 = vmatpush1.msra.mxu0 0.0
        %2699 = vmatprep.subr.mxu0 0.0
        %2700 = vmatpush1.msra.mxu0 0.0
        %2701 = vmatprep.subr.mxu0 0.0
        %2702 = vmatpush1.msra.mxu0 0.0
        %2703 = vmatprep.subr.mxu0 0.0
        %2704 = vmatpush1.msra.mxu0 0.0
        %2705 = vmatprep.subr.mxu0 0.0
        %2706 = vmatpush1.msra.mxu0 0.0
        %2707 = vmatprep.subr.mxu0 0.0
        %2708 = vmatpush1.msra.mxu0 0.0
        %2709 = vmatprep.subr.mxu0 0.0
        %2710 = vmatpush1.msra.mxu0 0.0
        %2711 = vmatprep.subr.mxu0 0.0
        %2712 = vmatpush1.msra.mxu0 0.0
        %2713 = vmatprep.subr.mxu0 0.0
        %2714 = vmatpush1.msra.mxu0 0.0
        %2715 = vmatprep.subr.mxu0 0.0
        %2716 = vmatpush1.msra.mxu0 0.0
        %2717 = vmatprep.subr.mxu0 0.0
        %2718 = vmatpush1.msra.mxu0 0.0
        %2719 = vmatprep.subr.mxu0 0.0
        %2720 = vmatpush1.msra.mxu0 0.0
        %2721 = vmatprep.subr.mxu0 0.0
        %2722 = vmatpush1.msra.mxu0 0.0
        %2723 = vmatprep.subr.mxu0 0.0
        %2724 = vmatpush1.msra.mxu0 0.0
        %2725 = vmatprep.subr.mxu0 0.0
        %2726 = vmatpush1.msra.mxu0 0.0
        %2727 = vmatprep.subr.mxu0 0.0
        %2728 = vmatpush1.msra.mxu0 0.0
        %2729 = vmatprep.subr.mxu0 0.0
        %2730 = vmatpush1.msra.mxu0 0.0
        %2731 = vmatprep.subr.mxu0 0.0
        %2732 = vmatpush1.msra.mxu0 0.0
        %2733 = vmatprep.subr.mxu0 0.0
        %2734 = vmatpush1.msra.mxu0 0.0
        %2735 = vmatprep.subr.mxu0 0.0
        %2736 = vmatpush1.msra.mxu0 0.0
        %2737 = vmatprep.subr.mxu0 0.0
        %2738 = vmatpush1.msra.mxu0 0.0
        %2739 = vmatprep.subr.mxu0 0.0
        %2740 = vmatpush1.msra.mxu0 0.0
        %2741 = vmatprep.subr.mxu0 0.0
        %2742 = vmatpush1.msra.mxu0 0.0
        %2743 = vmatprep.mubr.f32.mxu0 0.0
        %2744 = vmatmul.mubr.f32.gmra.mrb[0].mxu0 %v2677
        %v2745 = vpop.f32.mrb[0].mxu0
        %v2746 = vadd.f32 %v2674, %v2745
        %v2747 = vpop.f32.mrb[0].mxu0
        %2748 = vdwg.mxu0
        %v2749 = vmul.f32 %v2746, %v2746
        %v2750 = vmul.f32 %v2746, %v2749
        %v2751 = vmul.f32 %v2750, 0.044715
        %v2752 = vadd.f32 %v2746, %v2751
        %v2753 = vmul.f32 %v2752, 0.7978846
        %v2754 = vtanh.pop %v2753
        %v2755 = vadd.f32 %v2754, 1.0
        %v2756 = vmul.f32 %v2755, 0.5
        %v2757 = vmul.f32 %v2746, %v2756
        %s2758 = scalar_lea.vmem %s12, 64
        %v2759 = vld [vmem:[%s2758] sm:$0xff]
        %v2760 = vld [vmem:[%s2758 + $0x8] sm:$0xff]
        %v2761 = vld [vmem:[%s2758 + $0x10] sm:$0xff]
        %v2762 = vld [vmem:[%s2758 + $0x18] sm:$0xff]
        %v2763 = vld [vmem:[%s2758 + $0x20] sm:$0xff]
        %v2764 = vld [vmem:[%s2758 + $0x28] sm:$0xff]
        %v2765 = vld [vmem:[%s2758 + $0x30] sm:$0xff]
        %v2766 = vld [vmem:[%s2758 + $0x38] sm:$0xff]
        %s2767 = scalar_lea.vmem %s13, 1
        %v2768 = vld [vmem:[%s2767] sm:$0x1]
        %v2770 = vlaneseq
        %v2771 = vshrl.u32 %v2770, 7
        %v2772 = vsub.s32 0, %v2771
        %v2773 = vrot.slane %v2768, %v2772
        %v2776 = vsel %vm1671, %v2757, 0
        %2778 = vmatprep.subr.mxu0 0.0
        %2779 = vmatpush1.msra.mxu0 %v2759
        %2780 = vmatprep.subr.mxu0 0.0
        %2781 = vmatpush1.msra.mxu0 %v2760
        %2782 = vmatprep.subr.mxu0 0.0
        %2783 = vmatpush1.msra.mxu0 %v2761
        %2784 = vmatprep.subr.mxu0 0.0
        %2785 = vmatpush1.msra.mxu0 %v2762
        %2786 = vmatprep.subr.mxu0 0.0
        %2787 = vmatpush1.msra.mxu0 %v2763
        %2788 = vmatprep.subr.mxu0 0.0
        %2789 = vmatpush1.msra.mxu0 %v2764
        %2790 = vmatprep.subr.mxu0 0.0
        %2791 = vmatpush1.msra.mxu0 %v2765
        %2792 = vmatprep.subr.mxu0 0.0
        %2793 = vmatpush1.msra.mxu0 %v2766
        %2794 = vmatprep.subr.mxu0 0.0
        %2795 = vmatpush1.msra.mxu0 0.0
        %2796 = vmatprep.subr.mxu0 0.0
        %2797 = vmatpush1.msra.mxu0 0.0
        %2798 = vmatprep.subr.mxu0 0.0
        %2799 = vmatpush1.msra.mxu0 0.0
        %2800 = vmatprep.subr.mxu0 0.0
        %2801 = vmatpush1.msra.mxu0 0.0
        %2802 = vmatprep.subr.mxu0 0.0
        %2803 = vmatpush1.msra.mxu0 0.0
        %2804 = vmatprep.subr.mxu0 0.0
        %2805 = vmatpush1.msra.mxu0 0.0
        %2806 = vmatprep.subr.mxu0 0.0
        %2807 = vmatpush1.msra.mxu0 0.0
        %2808 = vmatprep.subr.mxu0 0.0
        %2809 = vmatpush1.msra.mxu0 0.0
        %2810 = vmatprep.subr.mxu0 0.0
        %2811 = vmatpush1.msra.mxu0 0.0
        %2812 = vmatprep.subr.mxu0 0.0
        %2813 = vmatpush1.msra.mxu0 0.0
        %2814 = vmatprep.subr.mxu0 0.0
        %2815 = vmatpush1.msra.mxu0 0.0
        %2816 = vmatprep.subr.mxu0 0.0
        %2817 = vmatpush1.msra.mxu0 0.0
        %2818 = vmatprep.subr.mxu0 0.0
        %2819 = vmatpush1.msra.mxu0 0.0
        %2820 = vmatprep.subr.mxu0 0.0
        %2821 = vmatpush1.msra.mxu0 0.0
        %2822 = vmatprep.subr.mxu0 0.0
        %2823 = vmatpush1.msra.mxu0 0.0
        %2824 = vmatprep.subr.mxu0 0.0
        %2825 = vmatpush1.msra.mxu0 0.0
        %2826 = vmatprep.subr.mxu0 0.0
        %2827 = vmatpush1.msra.mxu0 0.0
        %2828 = vmatprep.subr.mxu0 0.0
        %2829 = vmatpush1.msra.mxu0 0.0
        %2830 = vmatprep.subr.mxu0 0.0
        %2831 = vmatpush1.msra.mxu0 0.0
        %2832 = vmatprep.subr.mxu0 0.0
        %2833 = vmatpush1.msra.mxu0 0.0
        %2834 = vmatprep.subr.mxu0 0.0
        %2835 = vmatpush1.msra.mxu0 0.0
        %2836 = vmatprep.subr.mxu0 0.0
        %2837 = vmatpush1.msra.mxu0 0.0
        %2838 = vmatprep.subr.mxu0 0.0
        %2839 = vmatpush1.msra.mxu0 0.0
        %2840 = vmatprep.subr.mxu0 0.0
        %2841 = vmatpush1.msra.mxu0 0.0
        %2842 = vmatprep.mubr.f32.mxu0 0.0
        %2843 = vmatmul.mubr.f32.gmra.mrb[0].mxu0 %v2776
        %v2844 = vpop.f32.mrb[0].mxu0
        %v2845 = vadd.f32 %v2773, %v2844
        %v2846 = vpop.f32.mrb[0].mxu0
        %2847 = vdwg.mxu0
        %v2848 = vadd.f32 %v2845, %v2662
        %s2849 = scalar_lea.vmem %s14, 1
        %v2850 = vld [vmem:[%s2849] sm:$0x1]
        %s2851 = scalar_lea.vmem %s15, 1
        %v2852 = vld [vmem:[%s2851] sm:$0x1]
        %v2853 = vsel %vm642, %v2848, 0.0
        %2854 = vadd.xlane.f32.xlu0 %v2853
        %v2855 = vpop.xlane.xlu0 %2854
        %v2856 = vmul.f32 %v2855, %v646
        %v2857 = vsub.f32 %v2848, %v2856
        %v2858 = vmul.f32 %v2857, %v2857
        %v2859 = vsel %vm642, %v2858, 0.0
        %2860 = vadd.xlane.f32.xlu0 %v2859
        %v2861 = vpop.xlane.xlu0 %2860
        %v2862 = vmul.f32 %v2861, %v646
        %v2863 = vadd.f32 %v2862, 1e-05
        %v2864 = vrsqrt.pop %v2863
        %v2865 = vmul.f32 %v2857, %v2864
        %v2867 = vlaneseq
        %v2868 = vshrl.u32 %v2867, 7
        %v2869 = vsub.s32 0, %v2868
        %v2870 = vrot.slane %v2850, %v2869
        %v2872 = vmul.f32 %v2865, %v2870
        %v2874 = vlaneseq
        %v2875 = vshrl.u32 %v2874, 7
        %v2876 = vsub.s32 0, %v2875
        %v2877 = vrot.slane %v2852, %v2876
        %v2879 = vadd.f32 %v2872, %v2877
        %v2880 = vld [vmem:[%s16] sm:$0xff]
        %v2881 = vld [vmem:[%s16 + $0x8] sm:$0xff]
        %v2882 = vld [vmem:[%s16 + $0x10] sm:$0xff]
        %v2883 = vld [vmem:[%s16 + $0x18] sm:$0xff]
        %v2884 = vld [vmem:[%s17] sm:$0x1]
        %v2886 = vsel %vm642, %v2879, 0
        %2888 = vmatprep.subr.mxu0 0.0
        %2889 = vmatpush1.msra.mxu0 %v2880
        %2890 = vmatprep.subr.mxu0 0.0
        %2891 = vmatpush1.msra.mxu0 %v2881
        %2892 = vmatprep.subr.mxu0 0.0
        %2893 = vmatpush1.msra.mxu0 %v2882
        %2894 = vmatprep.subr.mxu0 0.0
        %2895 = vmatpush1.msra.mxu0 %v2883
        %2896 = vmatprep.subr.mxu0 0.0
        %2897 = vmatpush1.msra.mxu0 0.0
        %2898 = vmatprep.subr.mxu0 0.0
        %2899 = vmatpush1.msra.mxu0 0.0
        %2900 = vmatprep.subr.mxu0 0.0
        %2901 = vmatpush1.msra.mxu0 0.0
        %2902 = vmatprep.subr.mxu0 0.0
        %2903 = vmatpush1.msra.mxu0 0.0
        %2904 = vmatprep.subr.mxu0 0.0
        %2905 = vmatpush1.msra.mxu0 0.0
        %2906 = vmatprep.subr.mxu0 0.0
        %2907 = vmatpush1.msra.mxu0 0.0
        %2908 = vmatprep.subr.mxu0 0.0
        %2909 = vmatpush1.msra.mxu0 0.0
        %2910 = vmatprep.subr.mxu0 0.0
        %2911 = vmatpush1.msra.mxu0 0.0
        %2912 = vmatprep.subr.mxu0 0.0
        %2913 = vmatpush1.msra.mxu0 0.0
        %2914 = vmatprep.subr.mxu0 0.0
        %2915 = vmatpush1.msra.mxu0 0.0
        %2916 = vmatprep.subr.mxu0 0.0
        %2917 = vmatpush1.msra.mxu0 0.0
        %2918 = vmatprep.subr.mxu0 0.0
        %2919 = vmatpush1.msra.mxu0 0.0
        %2920 = vmatprep.subr.mxu0 0.0
        %2921 = vmatpush1.msra.mxu0 0.0
        %2922 = vmatprep.subr.mxu0 0.0
        %2923 = vmatpush1.msra.mxu0 0.0
        %2924 = vmatprep.subr.mxu0 0.0
        %2925 = vmatpush1.msra.mxu0 0.0
        %2926 = vmatprep.subr.mxu0 0.0
        %2927 = vmatpush1.msra.mxu0 0.0
        %2928 = vmatprep.subr.mxu0 0.0
        %2929 = vmatpush1.msra.mxu0 0.0
        %2930 = vmatprep.subr.mxu0 0.0
        %2931 = vmatpush1.msra.mxu0 0.0
        %2932 = vmatprep.subr.mxu0 0.0
        %2933 = vmatpush1.msra.mxu0 0.0
        %2934 = vmatprep.subr.mxu0 0.0
        %2935 = vmatpush1.msra.mxu0 0.0
        %2936 = vmatprep.subr.mxu0 0.0
        %2937 = vmatpush1.msra.mxu0 0.0
        %2938 = vmatprep.subr.mxu0 0.0
        %2939 = vmatpush1.msra.mxu0 0.0
        %2940 = vmatprep.subr.mxu0 0.0
        %2941 = vmatpush1.msra.mxu0 0.0
        %2942 = vmatprep.subr.mxu0 0.0
        %2943 = vmatpush1.msra.mxu0 0.0
        %2944 = vmatprep.subr.mxu0 0.0
        %2945 = vmatpush1.msra.mxu0 0.0
        %2946 = vmatprep.subr.mxu0 0.0
        %2947 = vmatpush1.msra.mxu0 0.0
        %2948 = vmatprep.subr.mxu0 0.0
        %2949 = vmatpush1.msra.mxu0 0.0
        %2950 = vmatprep.subr.mxu0 0.0
        %2951 = vmatpush1.msra.mxu0 0.0
        %2952 = vmatprep.mubr.f32.mxu0 0.0
        %2953 = vmatmul.mubr.f32.gmra.mrb[0].mxu0 %v2886
        %v2954 = vpop.f32.mrb[0].mxu0
        %v2955 = vadd.f32 %v2884, %v2954
        %v2956 = vpop.f32.mrb[0].mxu0
        %2957 = vdwg.mxu0
        %v2958 = vtanh.pop %v2955
        %v2959 = vld [vmem:[%s18] sm:$0xff]
        %v2960 = vld [vmem:[%s18 + $0x8] sm:$0xff]
        %v2961 = vld [vmem:[%s18 + $0x10] sm:$0xff]
        %v2962 = vld [vmem:[%s18 + $0x18] sm:$0xff]
        %v2963 = vld [vmem:[%s19] sm:$0x1]
        %v2965 = vsel %vm642, %v2958, 0
        %2967 = vmatprep.subr.mxu0 0.0
        %2968 = vmatpush1.msra.mxu0 %v2959
        %2969 = vmatprep.subr.mxu0 0.0
        %2970 = vmatpush1.msra.mxu0 %v2960
        %2971 = vmatprep.subr.mxu0 0.0
        %2972 = vmatpush1.msra.mxu0 %v2961
        %2973 = vmatprep.subr.mxu0 0.0
        %2974 = vmatpush1.msra.mxu0 %v2962
        %2975 = vmatprep.subr.mxu0 0.0
        %2976 = vmatpush1.msra.mxu0 0.0
        %2977 = vmatprep.subr.mxu0 0.0
        %2978 = vmatpush1.msra.mxu0 0.0
        %2979 = vmatprep.subr.mxu0 0.0
        %2980 = vmatpush1.msra.mxu0 0.0
        %2981 = vmatprep.subr.mxu0 0.0
        %2982 = vmatpush1.msra.mxu0 0.0
        %2983 = vmatprep.subr.mxu0 0.0
        %2984 = vmatpush1.msra.mxu0 0.0
        %2985 = vmatprep.subr.mxu0 0.0
        %2986 = vmatpush1.msra.mxu0 0.0
        %2987 = vmatprep.subr.mxu0 0.0
        %2988 = vmatpush1.msra.mxu0 0.0
        %2989 = vmatprep.subr.mxu0 0.0
        %2990 = vmatpush1.msra.mxu0 0.0
        %2991 = vmatprep.subr.mxu0 0.0
        %2992 = vmatpush1.msra.mxu0 0.0
        %2993 = vmatprep.subr.mxu0 0.0
        %2994 = vmatpush1.msra.mxu0 0.0
        %2995 = vmatprep.subr.mxu0 0.0
        %2996 = vmatpush1.msra.mxu0 0.0
        %2997 = vmatprep.subr.mxu0 0.0
        %2998 = vmatpush1.msra.mxu0 0.0
        %2999 = vmatprep.subr.mxu0 0.0
        %3000 = vmatpush1.msra.mxu0 0.0
        %3001 = vmatprep.subr.mxu0 0.0
        %3002 = vmatpush1.msra.mxu0 0.0
        %3003 = vmatprep.subr.mxu0 0.0
        %3004 = vmatpush1.msra.mxu0 0.0
        %3005 = vmatprep.subr.mxu0 0.0
        %3006 = vmatpush1.msra.mxu0 0.0
        %3007 = vmatprep.subr.mxu0 0.0
        %3008 = vmatpush1.msra.mxu0 0.0
        %3009 = vmatprep.subr.mxu0 0.0
        %3010 = vmatpush1.msra.mxu0 0.0
        %3011 = vmatprep.subr.mxu0 0.0
        %3012 = vmatpush1.msra.mxu0 0.0
        %3013 = vmatprep.subr.mxu0 0.0
        %3014 = vmatpush1.msra.mxu0 0.0
        %3015 = vmatprep.subr.mxu0 0.0
        %3016 = vmatpush1.msra.mxu0 0.0
        %3017 = vmatprep.subr.mxu0 0.0
        %3018 = vmatpush1.msra.mxu0 0.0
        %3019 = vmatprep.subr.mxu0 0.0
        %3020 = vmatpush1.msra.mxu0 0.0
        %3021 = vmatprep.subr.mxu0 0.0
        %3022 = vmatpush1.msra.mxu0 0.0
        %3023 = vmatprep.subr.mxu0 0.0
        %3024 = vmatpush1.msra.mxu0 0.0
        %3025 = vmatprep.subr.mxu0 0.0
        %3026 = vmatpush1.msra.mxu0 0.0
        %3027 = vmatprep.subr.mxu0 0.0
        %3028 = vmatpush1.msra.mxu0 0.0
        %3029 = vmatprep.subr.mxu0 0.0
        %3030 = vmatpush1.msra.mxu0 0.0
        %3031 = vmatprep.mubr.f32.mxu0 0.0
        %3032 = vmatmul.mubr.f32.gmra.mrb[0].mxu0 %v2965
        %v3033 = vpop.f32.mrb[0].mxu0
        %v3034 = vadd.f32 %v2963, %v3033
        %v3035 = vpop.f32.mrb[0].mxu0
        %3036 = vdwg.mxu0
        %vm3037 = vcmask 16384
        %3038 = vst.msk [vmem:[%s630] sm:$0x1] %vm3037, %v3034
        %s3039 = sand.u32 %s472, 1
        %s3040 = scalar_lea.sflag [#allocation4], %s3039
        %s3041 = sand.u32 %s472, 1
        %s3042 = scalar_lea.vmem [#allocation3], %s3041
        // Predicated region
        $region101: #{roberta_classification_forward.1} parent=99 // pred_check
          %p3043 = pneg %p482
        $region102: #{roberta_classification_forward.1} parent=99 // pred_check_branch
          %3045 = sbr.rel (%p3043) target = $region104
        $region103: #{roberta_classification_forward.1} parent=99 // pred_region
          %s3047 = ssub.s32 16, 16
          %3048 = vsyncadd %s3040, %s3047
          %s3049 = smul.addr %s34, 16
          %s3050 = scalar_lea.hbm %s20, %s3049
          %s3052 = sshll.u32 %s3042, 4
          %s3053 = int_to_ptr.vmem [resolvable:$true] %s3052
          %3055 = dma.vmem_to_hbm [thread:$0]  %s3053, 16, %s3050, %s3040
        $region104: #{roberta_classification_forward.1} parent=99 // pred_fallthru
          _
      $region100: #{roberta_classification_forward.1} parent=5 // pred_fallthru
        _
      %p3056 = scmp.le.s32.totalorder 2, %s29
      // Predicated region
      $region105: #{roberta_classification_forward.1} parent=5 // pred_check
        %p3057 = pneg %p3056
      $region106: #{roberta_classification_forward.1} parent=5 // pred_check_branch
        %3059 = sbr.rel (%p3057) target = $region108
      $region107: #{roberta_classification_forward.1} parent=5 // pred_region
        %s3060 = ssub.s32 %s29, 2
        // Predicated region
        $region109: #{roberta_classification_forward.1} parent=107 // pred_check
          %p3061 = pneg %p488
        $region110: #{roberta_classification_forward.1} parent=107 // pred_check_branch
          %3063 = sbr.rel (%p3061) target = $region112
        $region111: #{roberta_classification_forward.1} parent=107 // pred_region
          %s3064 = sand.u32 %s473, 1
          %s3065 = scalar_lea.sflag [#allocation4], %s3064
          %s3066 = sand.u32 %s473, 1
          %s3067 = scalar_lea.vmem [#allocation3], %s3066
          %3068 = dma.done %s3065, 16
        $region112: #{roberta_classification_forward.1} parent=107 // pred_fallthru
          _
      $region108: #{roberta_classification_forward.1} parent=5 // pred_fallthru
        _
    $region6: #{roberta_classification_forward.1} parent=1 // loop_footer
      %s33 = sadd.s32 1, %s29
    $region7: #{roberta_classification_forward.1} parent=1 // loop_footer_branch
      %28 = sbr.rel target = $region3
    $region8: #{roberta_classification_forward.1} parent=1 // loop_exit
      _
    %3069 = vsyncpa [#allocation4], 1
    %s3070 = scalar_lea.sflag [#allocation4], 1
    %3071 = vsyncpa %s3070, 1

</llo_original>
